<compile_context>
chip_gen: v5e
topology: v5e:2x2
jax: 0.10.0
libtpu: 0.0.40
codegen_flags: <defaults>
</compile_context>

<pallas_src>
import jax
import jax.numpy as jnp
from jax.experimental import pallas as pl
from jax.experimental.pallas import tpu as pltpu

# ---- stand-ins for the module's globals (deterministic, small) --------------
TYPE = "RNN"            # tanh RNN cell
NUM_LAYERS = 1
BIDIRECTIONAL = False
BATCH_FIRST = True
HIDDEN_DIM = 32
EMBED_DIM = 32
OUTPUT_DIM = 16         # vocab size
MAX_LENGTH = 8
START = 0
END = 1
BEAM_SIZE = 3


def _iota(shape, dim):
    return jax.lax.broadcasted_iota(jnp.int32, shape, dim)


# ----------------------------- Pallas kernel ---------------------------------
def beam_decode_kernel(h0_ref, wcat_ref, bias_ref, wout_ref, bout_ref,
                       tok_out_ref, h_out_ref):
    """Fused beam-search decode (rows R = batch*beam, 5 matmuls per step)."""
    R, H = h0_ref.shape
    V = wout_ref.shape[1]
    batch, MAXL = tok_out_ref.shape
    beam = R // batch
    K = beam * V
    L = MAXL + 1
    f32 = jnp.float32
    NEG = f32(-1e30)

    def row_mod(rr):          # rr % beam without integer division (rr < R)
        rdiv = jnp.zeros_like(rr)
        for b in range(1, batch):
            rdiv = rdiv + (rr >= b * beam).astype(jnp.int32)
        return rr - beam * rdiv

    # ---- small constants (~12 vregs); weights are NOT hoisted ---------------
    rmod_col = row_mod(_iota((R, 1), 0))                        # (R,1)  r % beam
    laneV = _iota((R, V), 1)
    laneK = _iota((batch, K), 1)
    laneB = _iota((batch, beam), 1)
    lane9 = _iota((R, 3 * beam), 1)
    laneL = _iota((R, L), 1)
    laneBm = _iota((R, beam), 1)
    bbU, rrU = _iota((batch, R), 0), _iota((batch, R), 1)
    Usel = jnp.logical_and(rrU >= bbU * beam, rrU < (bbU + 1) * beam).astype(f32)  # (batch,R)
    rrB, bbB = _iota((R, batch), 0), _iota((R, batch), 1)
    U = jnp.logical_and(rrB >= bbB * beam, rrB < (bbB + 1) * beam).astype(f32)     # (R,batch)
    rrC, ccC = _iota((R, R), 0), _iota((R, R), 1)
    diffC = ccC - (rrC - row_mod(rrC))                          # (R,R): c - base(r)

    # ---- loop-carried state (lives in vregs/VMEM, never hits HBM) -----------
    h = h0_ref[...]
    seq = jnp.where(laneL == 0, f32(START), f32(0.0))           # (R,L) tokens as f32
    scores_col = jnp.zeros((R, 1), f32)
    tok_col = jnp.full((R, 1), f32(START))
    finished = jnp.zeros((R, 1), f32)                           # per-row "emitted END"

    for t in range(MAXL):
        # gate reproducing the reference's `if is_finished.all(): break`
        done_cnt = jnp.sum(finished, axis=0, keepdims=True)     # (1,1)
        g_keep = (done_cnt >= f32(R)).astype(f32)
        g_new = f32(1.0) - g_keep

        # --- RNN cell: ONE fused matmul  [onehot | h] @ [T ; W_hh] -----------
        onehot = (laneV == tok_col.astype(jnp.int32)).astype(f32)          # (R,V)
        xh = jnp.concatenate([onehot, h], axis=1)                          # (R,V+H)
        h_new = jnp.tanh(jnp.dot(xh, wcat_ref[...], preferred_element_type=f32)
                         + bias_ref[...])                                  # (R,H)
        logits = jnp.dot(h_new, wout_ref[...], preferred_element_type=f32) + bout_ref[...]
        mx = jnp.max(logits, axis=-1, keepdims=True)
        shf = logits - mx
        logp = shf - jnp.log(jnp.sum(jnp.exp(shf), axis=-1, keepdims=True))

        cand = scores_col + logp                                           # (R,V)

        # --- flatten (R,V) -> (batch, beam*V) with ONE matmul ----------------
        # row r contributes only to lane block (r % beam); summing the rows of
        # each batch group (0/1 Usel matmul) yields the flat candidate matrix.
        blocks = [jnp.where(rmod_col == j, cand, f32(0.0)) for j in range(beam)]
        spread = jnp.concatenate(blocks, axis=1)                           # (R,K)
        cf = jnp.dot(Usel, spread, preferred_element_type=f32)             # (batch,K)

        # --- per-batch top-beam over the K candidates (iterated max) --------
        # (values equal PyTorch's two-stage topk; ties break to lowest lane,
        #  which reproduces the reference's step-0 "all beams identical" case)
        tsc = jnp.zeros((batch, beam), f32)
        tix = jnp.zeros((batch, beam), jnp.int32)
        work = cf
        for s in range(beam):
            mm = jnp.max(work, axis=-1, keepdims=True)                     # (batch,1)
            idx = jnp.min(jnp.where(work == mm, laneK, K), axis=-1, keepdims=True)
            tsc = tsc + jnp.where(laneB == s, mm, f32(0.0))
            tix = tix + jnp.where(laneB == s, idx, 0)
            work = jnp.where(laneK == idx, NEG, work)

        # flat index -> (parent beam, token) without integer division
        bsel = jnp.zeros((batch, beam), jnp.int32)
        for j in range(1, beam):
            bsel = bsel + (tix >= j * V).astype(jnp.int32)
        tsel = tix - V * bsel

        # --- ONE packed back-map matmul (batch,*) -> (R,*) -------------------
        packed = jnp.concatenate([bsel.astype(f32), tsel.astype(f32), tsc], axis=1)
        back = jnp.dot(U, packed, preferred_element_type=f32)              # (R,3*beam)
        parent_col = jnp.sum(jnp.where(lane9 == rmod_col, back, f32(0.0)),
                             axis=-1, keepdims=True)
        tok_new = jnp.sum(jnp.where(lane9 == rmod_col + beam, back, f32(0.0)),
                          axis=-1, keepdims=True)
        scores_new = jnp.sum(jnp.where(lane9 == rmod_col + 2 * beam, back, f32(0.0)),
                             axis=-1, keepdims=True)

        # --- fused beam reorder of hidden + sequences with ONE matmul --------
        Pm = (diffC == parent_col.astype(jnp.int32)).astype(f32)           # (R,R) 0/1
        fused = jnp.concatenate([h_new, seq], axis=1)                      # (R,H+L)
        reord = jnp.dot(Pm, fused, preferred_element_type=f32)
        h_r = reord[:, :H]
        seq_r = jnp.where(laneL == (t + 1), tok_new, reord[:, H:])

        # --- commit (frozen once every beam has emitted <END>) ---------------
        h = g_keep * h + g_new * h_r
        seq = g_keep * seq + g_new * seq_r
        scores_col = g_keep * scores_col + g_new * scores_new
        tok_col = g_keep * tok_col + g_new * tok_new
        fin_new = jnp.maximum(finished, (tok_new == f32(END)).astype(f32))
        finished = g_keep * finished + g_new * fin_new
        # TODO(synk): the reference returns a shorter sequence when it breaks
        # early; static shapes force MAX_LENGTH tokens here (trailing slots
        # stay START), though scores/winning beam/hidden match at break time.

    h_out_ref[...] = h

    # ---- epilogue: best beam per batch -> token ids --------------------------
    J3 = (laneBm == rmod_col).astype(f32)                                  # (R,beam)
    s_bb = jnp.dot(Usel, scores_col * J3, preferred_element_type=f32)      # (batch,beam)
    mb = jnp.max(s_bb, axis=-1, keepdims=True)
    best = jnp.min(jnp.where(s_bb == mb, laneB, beam), axis=-1, keepdims=True)  # argmax
    best_sel = (rrU == bbU * beam + best).astype(f32)                      # (batch,R)
    best_seq = jnp.dot(best_sel, seq, preferred_element_type=f32)          # (batch,L)
    toks = best_seq[:, 1:]                                                 # drop START
    tok_out_ref[...] = (toks + f32(0.5)).astype(jnp.int32)


# ----------------------------- JAX glue ---------------------------------------
def init_params(key):
    ks = jax.random.split(key, 7)
    s = 1.0 / jnp.sqrt(HIDDEN_DIM).astype(jnp.float32)
    emb = jax.random.normal(ks[0], (OUTPUT_DIM, EMBED_DIM), jnp.float32)
    w_ih = jax.random.uniform(ks[1], (EMBED_DIM, HIDDEN_DIM), jnp.float32, -s, s)
    w_hh = jax.random.uniform(ks[2], (HIDDEN_DIM, HIDDEN_DIM), jnp.float32, -s, s)
    b_ih = jax.random.uniform(ks[3], (1, HIDDEN_DIM), jnp.float32, -s, s)
    b_hh = jax.random.uniform(ks[4], (1, HIDDEN_DIM), jnp.float32, -s, s)
    w_out = jax.random.uniform(ks[5], (HIDDEN_DIM, OUTPUT_DIM), jnp.float32, -s, s)
    b_out = jax.random.uniform(ks[6], (1, OUTPUT_DIM), jnp.float32, -s, s)
    return dict(emb=emb, w_ih=w_ih, w_hh=w_hh, b=b_ih + b_hh,
                w_out=w_out, b_out=b_out)


def match_hidden_shape(hidden):
    needed = NUM_LAYERS * (1 + int(BIDIRECTIONAL))
    if hidden.shape[0] != needed:
        mean = hidden.mean(0)
        return jnp.stack([mean] * needed)
    return hidden


def expand_for_beam(t, beam):
    L, B, H = t.shape
    return jnp.repeat(t[:, :, None, :], beam, axis=2).reshape(L, B * beam, H)


def beam_search_forward(encoder_outputs, encoder_hidden, params):
    """BeamSearchDecoder.forward (beam_size > 1, no teacher forcing)."""
    batch = encoder_outputs.shape[0]
    beam = BEAM_SIZE
    R = batch * beam

    dec_hidden = expand_for_beam(match_hidden_shape(encoder_hidden), beam)
    h0 = dec_hidden[0]                                  # (R, H); num_layers=1, unidir

    # Fold Embedding + ReLU + W_ih into a (V, H) table (exact: one-hot row select)
    # and stack it with W_hh so the cell is a single matmul per decode step.
    tbl = jnp.dot(jnp.maximum(params["emb"], 0.0), params["w_ih"])      # (V, H)
    wcat = jnp.concatenate([tbl, params["w_hh"]], axis=0)               # (V+H, H)

    vspec = pl.BlockSpec(memory_space=pltpu.MemorySpace.VMEM)
    tok, h_fin = pl.pallas_call(
        beam_decode_kernel,
        out_shape=(jax.ShapeDtypeStruct((batch, MAX_LENGTH), jnp.int32),
                   jax.ShapeDtypeStruct((R, HIDDEN_DIM), jnp.float32)),
        in_specs=[vspec] * 5,
        out_specs=(vspec, vspec),
    )(h0, wcat, params["b"], params["w_out"], params["b_out"])

    one_hot = jax.nn.one_hot(tok, OUTPUT_DIM, dtype=jnp.float32)   # (batch, L, V)
    decoder_hidden = h_fin[None]                                   # (1, R, H)
    return one_hot, decoder_hidden


# ----------------------------- main -------------------------------------------
if __name__ == "__main__":
    key = jax.random.PRNGKey(0)
    kp, ke, kh = jax.random.split(key, 3)
    params = init_params(kp)

    batch, enc_seq = 2, 4
    encoder_outputs = jax.random.normal(ke, (batch, enc_seq, HIDDEN_DIM), jnp.float32)
    encoder_hidden = jax.random.normal(
        kh, (NUM_LAYERS * (1 + int(BIDIRECTIONAL)), batch, HIDDEN_DIM), jnp.float32)

    forward = jax.jit(beam_search_forward)
    outputs, hidden = forward(encoder_outputs, encoder_hidden, params)
    jax.block_until_ready((outputs, hidden))

    assert outputs.shape == (batch, MAX_LENGTH, OUTPUT_DIM), outputs.shape
    assert hidden.shape == (NUM_LAYERS, batch * BEAM_SIZE, HIDDEN_DIM), hidden.shape
    assert bool(jnp.all((outputs.sum(-1) == 1.0))), "outputs must be one-hot rows"
    print("KERNEL_OK")
</pallas_src>

<mosaic_0001>
module attributes {stable_mosaic.version = 11 : i64} {
  func.func @beam_decode_kernel(%arg0: memref<6x32xf32, #tpu.memory_space<vmem>>, %arg1: memref<48x32xf32, #tpu.memory_space<vmem>>, %arg2: memref<1x32xf32, #tpu.memory_space<vmem>>, %arg3: memref<32x16xf32, #tpu.memory_space<vmem>>, %arg4: memref<1x16xf32, #tpu.memory_space<vmem>>, %arg5: memref<2x8xi32, #tpu.memory_space<vmem>>, %arg6: memref<6x32xf32, #tpu.memory_space<vmem>>) attributes {dimension_semantics = [], scalar_prefetch = 0 : i64, scratch_operands = 0 : i64, tpu.core_type = #tpu.core_type<tc>} {
    %0 = tpu.iota {dimensions = array<i32: 0>} : vector<6x1xi32>
    %c0_i32 = arith.constant 0 : i32
    %1 = vector.broadcast %c0_i32 : i32 to vector<6x1xi32>
    %c3_i32 = arith.constant 3 : i32
    %2 = vector.broadcast %c3_i32 : i32 to vector<6x1xi32>
    %3 = arith.cmpi sge, %0, %2 : vector<6x1xi32>
    %4 = arith.extui %3 : vector<6x1xi1> to vector<6x1xi32>
    %5 = arith.addi %1, %4 : vector<6x1xi32>
    %c3_i32_0 = arith.constant 3 : i32
    %6 = vector.broadcast %c3_i32_0 : i32 to vector<6x1xi32>
    %7 = arith.muli %6, %5 : vector<6x1xi32>
    %8 = arith.subi %0, %7 : vector<6x1xi32>
    %9 = tpu.iota {dimensions = array<i32: 1>} : vector<6x16xi32>
    %10 = tpu.iota {dimensions = array<i32: 1>} : vector<2x48xi32>
    %11 = tpu.iota {dimensions = array<i32: 1>} : vector<2x3xi32>
    %12 = tpu.iota {dimensions = array<i32: 1>} : vector<6x9xi32>
    %13 = tpu.iota {dimensions = array<i32: 1>} : vector<6x9xi32>
    %14 = tpu.iota {dimensions = array<i32: 1>} : vector<6x3xi32>
    %15 = tpu.iota {dimensions = array<i32: 0>} : vector<2x6xi32>
    %16 = tpu.iota {dimensions = array<i32: 1>} : vector<2x6xi32>
    %c3_i32_1 = arith.constant 3 : i32
    %17 = vector.broadcast %c3_i32_1 : i32 to vector<2x6xi32>
    %18 = arith.muli %15, %17 : vector<2x6xi32>
    %19 = arith.cmpi sge, %16, %18 : vector<2x6xi32>
    %c1_i32 = arith.constant 1 : i32
    %20 = vector.broadcast %c1_i32 : i32 to vector<2x6xi32>
    %21 = arith.addi %15, %20 : vector<2x6xi32>
    %c3_i32_2 = arith.constant 3 : i32
    %22 = vector.broadcast %c3_i32_2 : i32 to vector<2x6xi32>
    %23 = arith.muli %21, %22 : vector<2x6xi32>
    %24 = arith.cmpi slt, %16, %23 : vector<2x6xi32>
    %25 = arith.andi %19, %24 : vector<2x6xi1>
    %26 = arith.extui %25 : vector<2x6xi1> to vector<2x6xi32>
    %27 = arith.sitofp %26 : vector<2x6xi32> to vector<2x6xf32>
    %28 = tpu.iota {dimensions = array<i32: 0>} : vector<6x2xi32>
    %29 = tpu.iota {dimensions = array<i32: 1>} : vector<6x2xi32>
    %c3_i32_3 = arith.constant 3 : i32
    %30 = vector.broadcast %c3_i32_3 : i32 to vector<6x2xi32>
    %31 = arith.muli %29, %30 : vector<6x2xi32>
    %32 = arith.cmpi sge, %28, %31 : vector<6x2xi32>
    %c1_i32_4 = arith.constant 1 : i32
    %33 = vector.broadcast %c1_i32_4 : i32 to vector<6x2xi32>
    %34 = arith.addi %29, %33 : vector<6x2xi32>
    %c3_i32_5 = arith.constant 3 : i32
    %35 = vector.broadcast %c3_i32_5 : i32 to vector<6x2xi32>
    %36 = arith.muli %34, %35 : vector<6x2xi32>
    %37 = arith.cmpi slt, %28, %36 : vector<6x2xi32>
    %38 = arith.andi %32, %37 : vector<6x2xi1>
    %39 = arith.extui %38 : vector<6x2xi1> to vector<6x2xi32>
    %40 = arith.sitofp %39 : vector<6x2xi32> to vector<6x2xf32>
    %41 = tpu.iota {dimensions = array<i32: 0>} : vector<6x6xi32>
    %42 = tpu.iota {dimensions = array<i32: 1>} : vector<6x6xi32>
    %c0_i32_6 = arith.constant 0 : i32
    %43 = vector.broadcast %c0_i32_6 : i32 to vector<6x6xi32>
    %c3_i32_7 = arith.constant 3 : i32
    %44 = vector.broadcast %c3_i32_7 : i32 to vector<6x6xi32>
    %45 = arith.cmpi sge, %41, %44 : vector<6x6xi32>
    %46 = arith.extui %45 : vector<6x6xi1> to vector<6x6xi32>
    %47 = arith.addi %43, %46 : vector<6x6xi32>
    %c3_i32_8 = arith.constant 3 : i32
    %48 = vector.broadcast %c3_i32_8 : i32 to vector<6x6xi32>
    %49 = arith.muli %48, %47 : vector<6x6xi32>
    %50 = arith.subi %41, %49 : vector<6x6xi32>
    %51 = arith.subi %41, %50 : vector<6x6xi32>
    %52 = arith.subi %42, %51 : vector<6x6xi32>
    %c0 = arith.constant 0 : index
    %c0_9 = arith.constant 0 : index
    %53 = vector.load %arg0[%c0, %c0_9] : memref<6x32xf32, #tpu.memory_space<vmem>>, vector<6x32xf32>
    %c0_i32_10 = arith.constant 0 : i32
    %54 = vector.broadcast %c0_i32_10 : i32 to vector<6x9xi32>
    %55 = arith.cmpi eq, %13, %54 : vector<6x9xi32>
    %cst = arith.constant 0.000000e+00 : f32
    %cst_11 = arith.constant 0.000000e+00 : f32
    %56 = vector.broadcast %cst : f32 to vector<6x9xf32>
    %57 = vector.broadcast %cst_11 : f32 to vector<6x9xf32>
    %58 = arith.select %55, %56, %57 : vector<6x9xi1>, vector<6x9xf32>
    %cst_12 = arith.constant 0.000000e+00 : f32
    %59 = vector.broadcast %cst_12 : f32 to vector<6x1xf32>
    %cst_13 = arith.constant 0.000000e+00 : f32
    %60 = vector.broadcast %cst_13 : f32 to vector<6x1xf32>
    %cst_14 = arith.constant 0.000000e+00 : f32
    %61 = vector.broadcast %cst_14 : f32 to vector<6x1xf32>
    %cst_15 = arith.constant dense<0.000000e+00> : vector<1xf32>
    %62 = vector.multi_reduction <add>, %61, %cst_15 [0] : vector<6x1xf32> to vector<1xf32>
    %63 = vector.shape_cast %62 : vector<1xf32> to vector<1x1xf32>
    %cst_16 = arith.constant 6.000000e+00 : f32
    %64 = vector.broadcast %cst_16 : f32 to vector<1x1xf32>
    %65 = arith.cmpf oge, %63, %64 : vector<1x1xf32>
    %66 = arith.extui %65 : vector<1x1xi1> to vector<1x1xi32>
    %67 = arith.sitofp %66 : vector<1x1xi32> to vector<1x1xf32>
    %cst_17 = arith.constant 1.000000e+00 : f32
    %68 = vector.broadcast %cst_17 : f32 to vector<1x1xf32>
    %69 = arith.subf %68, %67 : vector<1x1xf32>
    %70 = arith.fptosi %60 : vector<6x1xf32> to vector<6x1xi32>
    %71 = vector.broadcast %70 : vector<6x1xi32> to vector<6x16xi32>
    %72 = arith.cmpi eq, %9, %71 : vector<6x16xi32>
    %73 = arith.extui %72 : vector<6x16xi1> to vector<6x16xi32>
    %74 = arith.sitofp %73 : vector<6x16xi32> to vector<6x16xf32>
    %75 = tpu.concatenate %74, %53 in 1 : vector<6x16xf32>, vector<6x32xf32> -> vector<6x48xf32>
    %c0_18 = arith.constant 0 : index
    %c0_19 = arith.constant 0 : index
    %76 = vector.load %arg1[%c0_18, %c0_19] : memref<48x32xf32, #tpu.memory_space<vmem>>, vector<48x32xf32>
    %cst_20 = arith.constant dense<0.000000e+00> : vector<6x32xf32>
    %77 = tpu.matmul %75, %76, %cst_20 {dimension_numbers = #tpu.dot_dimension_numbers<[1], [0], [0], [1], [0, 0, 1, 1], [], []>} : vector<6x48xf32>, vector<48x32xf32>, vector<6x32xf32> -> vector<6x32xf32>
    %c0_21 = arith.constant 0 : index
    %c0_22 = arith.constant 0 : index
    %78 = vector.load %arg2[%c0_21, %c0_22] : memref<1x32xf32, #tpu.memory_space<vmem>>, vector<1x32xf32>
    %79 = vector.broadcast %78 : vector<1x32xf32> to vector<6x32xf32>
    %80 = arith.addf %77, %79 : vector<6x32xf32>
    %81 = math.tanh %80 : vector<6x32xf32>
    %c0_23 = arith.constant 0 : index
    %c0_24 = arith.constant 0 : index
    %82 = vector.load %arg3[%c0_23, %c0_24] : memref<32x16xf32, #tpu.memory_space<vmem>>, vector<32x16xf32>
    %cst_25 = arith.constant dense<0.000000e+00> : vector<6x16xf32>
    %83 = tpu.matmul %81, %82, %cst_25 {dimension_numbers = #tpu.dot_dimension_numbers<[1], [0], [0], [1], [0, 0, 1, 1], [], []>} : vector<6x32xf32>, vector<32x16xf32>, vector<6x16xf32> -> vector<6x16xf32>
    %c0_26 = arith.constant 0 : index
    %c0_27 = arith.constant 0 : index
    %84 = vector.load %arg4[%c0_26, %c0_27] : memref<1x16xf32, #tpu.memory_space<vmem>>, vector<1x16xf32>
    %85 = vector.broadcast %84 : vector<1x16xf32> to vector<6x16xf32>
    %86 = arith.addf %83, %85 : vector<6x16xf32>
    %cst_28 = arith.constant dense<0xFF800000> : vector<6xf32>
    %87 = vector.multi_reduction <maximumf>, %86, %cst_28 [1] : vector<6x16xf32> to vector<6xf32>
    %88 = vector.shape_cast %87 : vector<6xf32> to vector<6x1xf32>
    %89 = vector.broadcast %88 : vector<6x1xf32> to vector<6x16xf32>
    %90 = arith.subf %86, %89 : vector<6x16xf32>
    %91 = math.exp %90 : vector<6x16xf32>
    %cst_29 = arith.constant dense<0.000000e+00> : vector<6xf32>
    %92 = vector.multi_reduction <add>, %91, %cst_29 [1] : vector<6x16xf32> to vector<6xf32>
    %93 = vector.shape_cast %92 : vector<6xf32> to vector<6x1xf32>
    %94 = math.log %93 : vector<6x1xf32>
    %95 = vector.broadcast %94 : vector<6x1xf32> to vector<6x16xf32>
    %96 = arith.subf %90, %95 : vector<6x16xf32>
    %97 = vector.broadcast %59 : vector<6x1xf32> to vector<6x16xf32>
    %98 = arith.addf %97, %96 : vector<6x16xf32>
    %c0_i32_30 = arith.constant 0 : i32
    %99 = vector.broadcast %c0_i32_30 : i32 to vector<6x1xi32>
    %100 = arith.cmpi eq, %8, %99 : vector<6x1xi32>
    %cst_31 = arith.constant 0.000000e+00 : f32
    %101 = vector.shape_cast %100 : vector<6x1xi1> to vector<6x1xi1>
    %102 = vector.broadcast %101 : vector<6x1xi1> to vector<6x16xi1>
    %103 = vector.broadcast %cst_31 : f32 to vector<6x16xf32>
    %104 = arith.select %102, %98, %103 : vector<6x16xi1>, vector<6x16xf32>
    %c1_i32_32 = arith.constant 1 : i32
    %105 = vector.broadcast %c1_i32_32 : i32 to vector<6x1xi32>
    %106 = arith.cmpi eq, %8, %105 : vector<6x1xi32>
    %cst_33 = arith.constant 0.000000e+00 : f32
    %107 = vector.shape_cast %106 : vector<6x1xi1> to vector<6x1xi1>
    %108 = vector.broadcast %107 : vector<6x1xi1> to vector<6x16xi1>
    %109 = vector.broadcast %cst_33 : f32 to vector<6x16xf32>
    %110 = arith.select %108, %98, %109 : vector<6x16xi1>, vector<6x16xf32>
    %c2_i32 = arith.constant 2 : i32
    %111 = vector.broadcast %c2_i32 : i32 to vector<6x1xi32>
    %112 = arith.cmpi eq, %8, %111 : vector<6x1xi32>
    %cst_34 = arith.constant 0.000000e+00 : f32
    %113 = vector.shape_cast %112 : vector<6x1xi1> to vector<6x1xi1>
    %114 = vector.broadcast %113 : vector<6x1xi1> to vector<6x16xi1>
    %115 = vector.broadcast %cst_34 : f32 to vector<6x16xf32>
    %116 = arith.select %114, %98, %115 : vector<6x16xi1>, vector<6x16xf32>
    %117 = tpu.concatenate %104, %110, %116 in 1 : vector<6x16xf32>, vector<6x16xf32>, vector<6x16xf32> -> vector<6x48xf32>
    %cst_35 = arith.constant dense<0.000000e+00> : vector<2x48xf32>
    %118 = tpu.matmul %27, %117, %cst_35 {dimension_numbers = #tpu.dot_dimension_numbers<[1], [0], [0], [1], [0, 0, 1, 1], [], []>} : vector<2x6xf32>, vector<6x48xf32>, vector<2x48xf32> -> vector<2x48xf32>
    %cst_36 = arith.constant 0.000000e+00 : f32
    %119 = vector.broadcast %cst_36 : f32 to vector<2x3xf32>
    %c0_i32_37 = arith.constant 0 : i32
    %120 = vector.broadcast %c0_i32_37 : i32 to vector<2x3xi32>
    %cst_38 = arith.constant dense<0xFF800000> : vector<2xf32>
    %121 = vector.multi_reduction <maximumf>, %118, %cst_38 [1] : vector<2x48xf32> to vector<2xf32>
    %122 = vector.shape_cast %121 : vector<2xf32> to vector<2x1xf32>
    %123 = vector.broadcast %122 : vector<2x1xf32> to vector<2x48xf32>
    %124 = arith.cmpf oeq, %118, %123 : vector<2x48xf32>
    %c48_i32 = arith.constant 48 : i32
    %125 = vector.broadcast %c48_i32 : i32 to vector<2x48xi32>
    %126 = arith.select %124, %10, %125 : vector<2x48xi1>, vector<2x48xi32>
    %cst_39 = arith.constant dense<2147483647> : vector<2xi32>
    %127 = vector.multi_reduction <minsi>, %126, %cst_39 [1] : vector<2x48xi32> to vector<2xi32>
    %128 = vector.shape_cast %127 : vector<2xi32> to vector<2x1xi32>
    %c0_i32_40 = arith.constant 0 : i32
    %129 = vector.broadcast %c0_i32_40 : i32 to vector<2x3xi32>
    %130 = arith.cmpi eq, %11, %129 : vector<2x3xi32>
    %cst_41 = arith.constant 0.000000e+00 : f32
    %131 = vector.shape_cast %122 : vector<2x1xf32> to vector<2x1xf32>
    %132 = vector.broadcast %131 : vector<2x1xf32> to vector<2x3xf32>
    %133 = vector.broadcast %cst_41 : f32 to vector<2x3xf32>
    %134 = arith.select %130, %132, %133 : vector<2x3xi1>, vector<2x3xf32>
    %135 = arith.addf %119, %134 : vector<2x3xf32>
    %c0_i32_42 = arith.constant 0 : i32
    %136 = vector.broadcast %c0_i32_42 : i32 to vector<2x3xi32>
    %137 = arith.cmpi eq, %11, %136 : vector<2x3xi32>
    %c0_i32_43 = arith.constant 0 : i32
    %138 = vector.shape_cast %128 : vector<2x1xi32> to vector<2x1xi32>
    %139 = vector.broadcast %138 : vector<2x1xi32> to vector<2x3xi32>
    %140 = vector.broadcast %c0_i32_43 : i32 to vector<2x3xi32>
    %141 = arith.select %137, %139, %140 : vector<2x3xi1>, vector<2x3xi32>
    %142 = arith.addi %120, %141 : vector<2x3xi32>
    %143 = vector.broadcast %128 : vector<2x1xi32> to vector<2x48xi32>
    %144 = arith.cmpi eq, %10, %143 : vector<2x48xi32>
    %cst_44 = arith.constant -1.000000e+30 : f32
    %145 = vector.broadcast %cst_44 : f32 to vector<2x48xf32>
    %146 = arith.select %144, %145, %118 : vector<2x48xi1>, vector<2x48xf32>
    %cst_45 = arith.constant dense<0xFF800000> : vector<2xf32>
    %147 = vector.multi_reduction <maximumf>, %146, %cst_45 [1] : vector<2x48xf32> to vector<2xf32>
    %148 = vector.shape_cast %147 : vector<2xf32> to vector<2x1xf32>
    %149 = vector.broadcast %148 : vector<2x1xf32> to vector<2x48xf32>
    %150 = arith.cmpf oeq, %146, %149 : vector<2x48xf32>
    %c48_i32_46 = arith.constant 48 : i32
    %151 = vector.broadcast %c48_i32_46 : i32 to vector<2x48xi32>
    %152 = arith.select %150, %10, %151 : vector<2x48xi1>, vector<2x48xi32>
    %cst_47 = arith.constant dense<2147483647> : vector<2xi32>
    %153 = vector.multi_reduction <minsi>, %152, %cst_47 [1] : vector<2x48xi32> to vector<2xi32>
    %154 = vector.shape_cast %153 : vector<2xi32> to vector<2x1xi32>
    %c1_i32_48 = arith.constant 1 : i32
    %155 = vector.broadcast %c1_i32_48 : i32 to vector<2x3xi32>
    %156 = arith.cmpi eq, %11, %155 : vector<2x3xi32>
    %cst_49 = arith.constant 0.000000e+00 : f32
    %157 = vector.shape_cast %148 : vector<2x1xf32> to vector<2x1xf32>
    %158 = vector.broadcast %157 : vector<2x1xf32> to vector<2x3xf32>
    %159 = vector.broadcast %cst_49 : f32 to vector<2x3xf32>
    %160 = arith.select %156, %158, %159 : vector<2x3xi1>, vector<2x3xf32>
    %161 = arith.addf %135, %160 : vector<2x3xf32>
    %c1_i32_50 = arith.constant 1 : i32
    %162 = vector.broadcast %c1_i32_50 : i32 to vector<2x3xi32>
    %163 = arith.cmpi eq, %11, %162 : vector<2x3xi32>
    %c0_i32_51 = arith.constant 0 : i32
    %164 = vector.shape_cast %154 : vector<2x1xi32> to vector<2x1xi32>
    %165 = vector.broadcast %164 : vector<2x1xi32> to vector<2x3xi32>
    %166 = vector.broadcast %c0_i32_51 : i32 to vector<2x3xi32>
    %167 = arith.select %163, %165, %166 : vector<2x3xi1>, vector<2x3xi32>
    %168 = arith.addi %142, %167 : vector<2x3xi32>
    %169 = vector.broadcast %154 : vector<2x1xi32> to vector<2x48xi32>
    %170 = arith.cmpi eq, %10, %169 : vector<2x48xi32>
    %cst_52 = arith.constant -1.000000e+30 : f32
    %171 = vector.broadcast %cst_52 : f32 to vector<2x48xf32>
    %172 = arith.select %170, %171, %146 : vector<2x48xi1>, vector<2x48xf32>
    %cst_53 = arith.constant dense<0xFF800000> : vector<2xf32>
    %173 = vector.multi_reduction <maximumf>, %172, %cst_53 [1] : vector<2x48xf32> to vector<2xf32>
    %174 = vector.shape_cast %173 : vector<2xf32> to vector<2x1xf32>
    %175 = vector.broadcast %174 : vector<2x1xf32> to vector<2x48xf32>
    %176 = arith.cmpf oeq, %172, %175 : vector<2x48xf32>
    %c48_i32_54 = arith.constant 48 : i32
    %177 = vector.broadcast %c48_i32_54 : i32 to vector<2x48xi32>
    %178 = arith.select %176, %10, %177 : vector<2x48xi1>, vector<2x48xi32>
    %cst_55 = arith.constant dense<2147483647> : vector<2xi32>
    %179 = vector.multi_reduction <minsi>, %178, %cst_55 [1] : vector<2x48xi32> to vector<2xi32>
    %180 = vector.shape_cast %179 : vector<2xi32> to vector<2x1xi32>
    %c2_i32_56 = arith.constant 2 : i32
    %181 = vector.broadcast %c2_i32_56 : i32 to vector<2x3xi32>
    %182 = arith.cmpi eq, %11, %181 : vector<2x3xi32>
    %cst_57 = arith.constant 0.000000e+00 : f32
    %183 = vector.shape_cast %174 : vector<2x1xf32> to vector<2x1xf32>
    %184 = vector.broadcast %183 : vector<2x1xf32> to vector<2x3xf32>
    %185 = vector.broadcast %cst_57 : f32 to vector<2x3xf32>
    %186 = arith.select %182, %184, %185 : vector<2x3xi1>, vector<2x3xf32>
    %187 = arith.addf %161, %186 : vector<2x3xf32>
    %c2_i32_58 = arith.constant 2 : i32
    %188 = vector.broadcast %c2_i32_58 : i32 to vector<2x3xi32>
    %189 = arith.cmpi eq, %11, %188 : vector<2x3xi32>
    %c0_i32_59 = arith.constant 0 : i32
    %190 = vector.shape_cast %180 : vector<2x1xi32> to vector<2x1xi32>
    %191 = vector.broadcast %190 : vector<2x1xi32> to vector<2x3xi32>
    %192 = vector.broadcast %c0_i32_59 : i32 to vector<2x3xi32>
    %193 = arith.select %189, %191, %192 : vector<2x3xi1>, vector<2x3xi32>
    %194 = arith.addi %168, %193 : vector<2x3xi32>
    %c0_i32_60 = arith.constant 0 : i32
    %195 = vector.broadcast %c0_i32_60 : i32 to vector<2x3xi32>
    %c16_i32 = arith.constant 16 : i32
    %196 = vector.broadcast %c16_i32 : i32 to vector<2x3xi32>
    %197 = arith.cmpi sge, %194, %196 : vector<2x3xi32>
    %198 = arith.extui %197 : vector<2x3xi1> to vector<2x3xi32>
    %199 = arith.addi %195, %198 : vector<2x3xi32>
    %c32_i32 = arith.constant 32 : i32
    %200 = vector.broadcast %c32_i32 : i32 to vector<2x3xi32>
    %201 = arith.cmpi sge, %194, %200 : vector<2x3xi32>
    %202 = arith.extui %201 : vector<2x3xi1> to vector<2x3xi32>
    %203 = arith.addi %199, %202 : vector<2x3xi32>
    %c16_i32_61 = arith.constant 16 : i32
    %204 = vector.broadcast %c16_i32_61 : i32 to vector<2x3xi32>
    %205 = arith.muli %204, %203 : vector<2x3xi32>
    %206 = arith.subi %194, %205 : vector<2x3xi32>
    %207 = arith.sitofp %203 : vector<2x3xi32> to vector<2x3xf32>
    %208 = arith.sitofp %206 : vector<2x3xi32> to vector<2x3xf32>
    %209 = tpu.concatenate %207, %208, %187 in 1 : vector<2x3xf32>, vector<2x3xf32>, vector<2x3xf32> -> vector<2x9xf32>
    %cst_62 = arith.constant dense<0.000000e+00> : vector<6x9xf32>
    %210 = tpu.matmul %40, %209, %cst_62 {dimension_numbers = #tpu.dot_dimension_numbers<[1], [0], [0], [1], [0, 0, 1, 1], [], []>} : vector<6x2xf32>, vector<2x9xf32>, vector<6x9xf32> -> vector<6x9xf32>
    %211 = vector.broadcast %8 : vector<6x1xi32> to vector<6x9xi32>
    %212 = arith.cmpi eq, %12, %211 : vector<6x9xi32>
    %cst_63 = arith.constant 0.000000e+00 : f32
    %213 = vector.broadcast %cst_63 : f32 to vector<6x9xf32>
    %214 = arith.select %212, %210, %213 : vector<6x9xi1>, vector<6x9xf32>
    %cst_64 = arith.constant dense<0.000000e+00> : vector<6xf32>
    %215 = vector.multi_reduction <add>, %214, %cst_64 [1] : vector<6x9xf32> to vector<6xf32>
    %216 = vector.shape_cast %215 : vector<6xf32> to vector<6x1xf32>
    %c3_i32_65 = arith.constant 3 : i32
    %217 = vector.broadcast %c3_i32_65 : i32 to vector<6x1xi32>
    %218 = arith.addi %8, %217 : vector<6x1xi32>
    %219 = vector.broadcast %218 : vector<6x1xi32> to vector<6x9xi32>
    %220 = arith.cmpi eq, %12, %219 : vector<6x9xi32>
    %cst_66 = arith.constant 0.000000e+00 : f32
    %221 = vector.broadcast %cst_66 : f32 to vector<6x9xf32>
    %222 = arith.select %220, %210, %221 : vector<6x9xi1>, vector<6x9xf32>
    %cst_67 = arith.constant dense<0.000000e+00> : vector<6xf32>
    %223 = vector.multi_reduction <add>, %222, %cst_67 [1] : vector<6x9xf32> to vector<6xf32>
    %224 = vector.shape_cast %223 : vector<6xf32> to vector<6x1xf32>
    %c6_i32 = arith.constant 6 : i32
    %225 = vector.broadcast %c6_i32 : i32 to vector<6x1xi32>
    %226 = arith.addi %8, %225 : vector<6x1xi32>
    %227 = vector.broadcast %226 : vector<6x1xi32> to vector<6x9xi32>
    %228 = arith.cmpi eq, %12, %227 : vector<6x9xi32>
    %cst_68 = arith.constant 0.000000e+00 : f32
    %229 = vector.broadcast %cst_68 : f32 to vector<6x9xf32>
    %230 = arith.select %228, %210, %229 : vector<6x9xi1>, vector<6x9xf32>
    %cst_69 = arith.constant dense<0.000000e+00> : vector<6xf32>
    %231 = vector.multi_reduction <add>, %230, %cst_69 [1] : vector<6x9xf32> to vector<6xf32>
    %232 = vector.shape_cast %231 : vector<6xf32> to vector<6x1xf32>
    %233 = arith.fptosi %216 : vector<6x1xf32> to vector<6x1xi32>
    %234 = vector.broadcast %233 : vector<6x1xi32> to vector<6x6xi32>
    %235 = arith.cmpi eq, %52, %234 : vector<6x6xi32>
    %236 = arith.extui %235 : vector<6x6xi1> to vector<6x6xi32>
    %237 = arith.sitofp %236 : vector<6x6xi32> to vector<6x6xf32>
    %238 = tpu.concatenate %81, %58 in 1 : vector<6x32xf32>, vector<6x9xf32> -> vector<6x41xf32>
    %cst_70 = arith.constant dense<0.000000e+00> : vector<6x41xf32>
    %239 = tpu.matmul %237, %238, %cst_70 {dimension_numbers = #tpu.dot_dimension_numbers<[1], [0], [0], [1], [0, 0, 1, 1], [], []>} : vector<6x6xf32>, vector<6x41xf32>, vector<6x41xf32> -> vector<6x41xf32>
    %240 = vector.extract_strided_slice %239 {offsets = [0, 0], sizes = [6, 32], strides = [1, 1]} : vector<6x41xf32> to vector<6x32xf32>
    %c1_i32_71 = arith.constant 1 : i32
    %241 = vector.broadcast %c1_i32_71 : i32 to vector<6x9xi32>
    %242 = arith.cmpi eq, %13, %241 : vector<6x9xi32>
    %243 = vector.extract_strided_slice %239 {offsets = [0, 32], sizes = [6, 9], strides = [1, 1]} : vector<6x41xf32> to vector<6x9xf32>
    %244 = vector.shape_cast %224 : vector<6x1xf32> to vector<6x1xf32>
    %245 = vector.broadcast %244 : vector<6x1xf32> to vector<6x9xf32>
    %246 = arith.select %242, %245, %243 : vector<6x9xi1>, vector<6x9xf32>
    %247 = vector.broadcast %67 : vector<1x1xf32> to vector<6x32xf32>
    %248 = arith.mulf %247, %53 : vector<6x32xf32>
    %249 = vector.broadcast %69 : vector<1x1xf32> to vector<6x32xf32>
    %250 = arith.mulf %249, %240 : vector<6x32xf32>
    %251 = arith.addf %248, %250 : vector<6x32xf32>
    %252 = vector.broadcast %67 : vector<1x1xf32> to vector<6x9xf32>
    %253 = arith.mulf %252, %58 : vector<6x9xf32>
    %254 = vector.broadcast %69 : vector<1x1xf32> to vector<6x9xf32>
    %255 = arith.mulf %254, %246 : vector<6x9xf32>
    %256 = arith.addf %253, %255 : vector<6x9xf32>
    %257 = vector.broadcast %67 : vector<1x1xf32> to vector<6x1xf32>
    %258 = arith.mulf %257, %59 : vector<6x1xf32>
    %259 = vector.broadcast %69 : vector<1x1xf32> to vector<6x1xf32>
    %260 = arith.mulf %259, %232 : vector<6x1xf32>
    %261 = arith.addf %258, %260 : vector<6x1xf32>
    %262 = vector.broadcast %67 : vector<1x1xf32> to vector<6x1xf32>
    %263 = arith.mulf %262, %60 : vector<6x1xf32>
    %264 = vector.broadcast %69 : vector<1x1xf32> to vector<6x1xf32>
    %265 = arith.mulf %264, %224 : vector<6x1xf32>
    %266 = arith.addf %263, %265 : vector<6x1xf32>
    %cst_72 = arith.constant 1.000000e+00 : f32
    %267 = vector.broadcast %cst_72 : f32 to vector<6x1xf32>
    %268 = arith.cmpf oeq, %224, %267 : vector<6x1xf32>
    %269 = arith.extui %268 : vector<6x1xi1> to vector<6x1xi32>
    %270 = arith.sitofp %269 : vector<6x1xi32> to vector<6x1xf32>
    %271 = arith.maximumf %61, %270 : vector<6x1xf32>
    %272 = vector.broadcast %67 : vector<1x1xf32> to vector<6x1xf32>
    %273 = arith.mulf %272, %61 : vector<6x1xf32>
    %274 = vector.broadcast %69 : vector<1x1xf32> to vector<6x1xf32>
    %275 = arith.mulf %274, %271 : vector<6x1xf32>
    %276 = arith.addf %273, %275 : vector<6x1xf32>
    %cst_73 = arith.constant dense<0.000000e+00> : vector<1xf32>
    %277 = vector.multi_reduction <add>, %276, %cst_73 [0] : vector<6x1xf32> to vector<1xf32>
    %278 = vector.shape_cast %277 : vector<1xf32> to vector<1x1xf32>
    %cst_74 = arith.constant 6.000000e+00 : f32
    %279 = vector.broadcast %cst_74 : f32 to vector<1x1xf32>
    %280 = arith.cmpf oge, %278, %279 : vector<1x1xf32>
    %281 = arith.extui %280 : vector<1x1xi1> to vector<1x1xi32>
    %282 = arith.sitofp %281 : vector<1x1xi32> to vector<1x1xf32>
    %cst_75 = arith.constant 1.000000e+00 : f32
    %283 = vector.broadcast %cst_75 : f32 to vector<1x1xf32>
    %284 = arith.subf %283, %282 : vector<1x1xf32>
    %285 = arith.fptosi %266 : vector<6x1xf32> to vector<6x1xi32>
    %286 = vector.broadcast %285 : vector<6x1xi32> to vector<6x16xi32>
    %287 = arith.cmpi eq, %9, %286 : vector<6x16xi32>
    %288 = arith.extui %287 : vector<6x16xi1> to vector<6x16xi32>
    %289 = arith.sitofp %288 : vector<6x16xi32> to vector<6x16xf32>
    %290 = tpu.concatenate %289, %251 in 1 : vector<6x16xf32>, vector<6x32xf32> -> vector<6x48xf32>
    %c0_76 = arith.constant 0 : index
    %c0_77 = arith.constant 0 : index
    %291 = vector.load %arg1[%c0_76, %c0_77] : memref<48x32xf32, #tpu.memory_space<vmem>>, vector<48x32xf32>
    %cst_78 = arith.constant dense<0.000000e+00> : vector<6x32xf32>
    %292 = tpu.matmul %290, %291, %cst_78 {dimension_numbers = #tpu.dot_dimension_numbers<[1], [0], [0], [1], [0, 0, 1, 1], [], []>} : vector<6x48xf32>, vector<48x32xf32>, vector<6x32xf32> -> vector<6x32xf32>
    %c0_79 = arith.constant 0 : index
    %c0_80 = arith.constant 0 : index
    %293 = vector.load %arg2[%c0_79, %c0_80] : memref<1x32xf32, #tpu.memory_space<vmem>>, vector<1x32xf32>
    %294 = vector.broadcast %293 : vector<1x32xf32> to vector<6x32xf32>
    %295 = arith.addf %292, %294 : vector<6x32xf32>
    %296 = math.tanh %295 : vector<6x32xf32>
    %c0_81 = arith.constant 0 : index
    %c0_82 = arith.constant 0 : index
    %297 = vector.load %arg3[%c0_81, %c0_82] : memref<32x16xf32, #tpu.memory_space<vmem>>, vector<32x16xf32>
    %cst_83 = arith.constant dense<0.000000e+00> : vector<6x16xf32>
    %298 = tpu.matmul %296, %297, %cst_83 {dimension_numbers = #tpu.dot_dimension_numbers<[1], [0], [0], [1], [0, 0, 1, 1], [], []>} : vector<6x32xf32>, vector<32x16xf32>, vector<6x16xf32> -> vector<6x16xf32>
    %c0_84 = arith.constant 0 : index
    %c0_85 = arith.constant 0 : index
    %299 = vector.load %arg4[%c0_84, %c0_85] : memref<1x16xf32, #tpu.memory_space<vmem>>, vector<1x16xf32>
    %300 = vector.broadcast %299 : vector<1x16xf32> to vector<6x16xf32>
    %301 = arith.addf %298, %300 : vector<6x16xf32>
    %cst_86 = arith.constant dense<0xFF800000> : vector<6xf32>
    %302 = vector.multi_reduction <maximumf>, %301, %cst_86 [1] : vector<6x16xf32> to vector<6xf32>
    %303 = vector.shape_cast %302 : vector<6xf32> to vector<6x1xf32>
    %304 = vector.broadcast %303 : vector<6x1xf32> to vector<6x16xf32>
    %305 = arith.subf %301, %304 : vector<6x16xf32>
    %306 = math.exp %305 : vector<6x16xf32>
    %cst_87 = arith.constant dense<0.000000e+00> : vector<6xf32>
    %307 = vector.multi_reduction <add>, %306, %cst_87 [1] : vector<6x16xf32> to vector<6xf32>
    %308 = vector.shape_cast %307 : vector<6xf32> to vector<6x1xf32>
    %309 = math.log %308 : vector<6x1xf32>
    %310 = vector.broadcast %309 : vector<6x1xf32> to vector<6x16xf32>
    %311 = arith.subf %305, %310 : vector<6x16xf32>
    %312 = vector.broadcast %261 : vector<6x1xf32> to vector<6x16xf32>
    %313 = arith.addf %312, %311 : vector<6x16xf32>
    %c0_i32_88 = arith.constant 0 : i32
    %314 = vector.broadcast %c0_i32_88 : i32 to vector<6x1xi32>
    %315 = arith.cmpi eq, %8, %314 : vector<6x1xi32>
    %cst_89 = arith.constant 0.000000e+00 : f32
    %316 = vector.shape_cast %315 : vector<6x1xi1> to vector<6x1xi1>
    %317 = vector.broadcast %316 : vector<6x1xi1> to vector<6x16xi1>
    %318 = vector.broadcast %cst_89 : f32 to vector<6x16xf32>
    %319 = arith.select %317, %313, %318 : vector<6x16xi1>, vector<6x16xf32>
    %c1_i32_90 = arith.constant 1 : i32
    %320 = vector.broadcast %c1_i32_90 : i32 to vector<6x1xi32>
    %321 = arith.cmpi eq, %8, %320 : vector<6x1xi32>
    %cst_91 = arith.constant 0.000000e+00 : f32
    %322 = vector.shape_cast %321 : vector<6x1xi1> to vector<6x1xi1>
    %323 = vector.broadcast %322 : vector<6x1xi1> to vector<6x16xi1>
    %324 = vector.broadcast %cst_91 : f32 to vector<6x16xf32>
    %325 = arith.select %323, %313, %324 : vector<6x16xi1>, vector<6x16xf32>
    %c2_i32_92 = arith.constant 2 : i32
    %326 = vector.broadcast %c2_i32_92 : i32 to vector<6x1xi32>
    %327 = arith.cmpi eq, %8, %326 : vector<6x1xi32>
    %cst_93 = arith.constant 0.000000e+00 : f32
    %328 = vector.shape_cast %327 : vector<6x1xi1> to vector<6x1xi1>
    %329 = vector.broadcast %328 : vector<6x1xi1> to vector<6x16xi1>
    %330 = vector.broadcast %cst_93 : f32 to vector<6x16xf32>
    %331 = arith.select %329, %313, %330 : vector<6x16xi1>, vector<6x16xf32>
    %332 = tpu.concatenate %319, %325, %331 in 1 : vector<6x16xf32>, vector<6x16xf32>, vector<6x16xf32> -> vector<6x48xf32>
    %cst_94 = arith.constant dense<0.000000e+00> : vector<2x48xf32>
    %333 = tpu.matmul %27, %332, %cst_94 {dimension_numbers = #tpu.dot_dimension_numbers<[1], [0], [0], [1], [0, 0, 1, 1], [], []>} : vector<2x6xf32>, vector<6x48xf32>, vector<2x48xf32> -> vector<2x48xf32>
    %cst_95 = arith.constant 0.000000e+00 : f32
    %334 = vector.broadcast %cst_95 : f32 to vector<2x3xf32>
    %c0_i32_96 = arith.constant 0 : i32
    %335 = vector.broadcast %c0_i32_96 : i32 to vector<2x3xi32>
    %cst_97 = arith.constant dense<0xFF800000> : vector<2xf32>
    %336 = vector.multi_reduction <maximumf>, %333, %cst_97 [1] : vector<2x48xf32> to vector<2xf32>
    %337 = vector.shape_cast %336 : vector<2xf32> to vector<2x1xf32>
    %338 = vector.broadcast %337 : vector<2x1xf32> to vector<2x48xf32>
    %339 = arith.cmpf oeq, %333, %338 : vector<2x48xf32>
    %c48_i32_98 = arith.constant 48 : i32
    %340 = vector.broadcast %c48_i32_98 : i32 to vector<2x48xi32>
    %341 = arith.select %339, %10, %340 : vector<2x48xi1>, vector<2x48xi32>
    %cst_99 = arith.constant dense<2147483647> : vector<2xi32>
    %342 = vector.multi_reduction <minsi>, %341, %cst_99 [1] : vector<2x48xi32> to vector<2xi32>
    %343 = vector.shape_cast %342 : vector<2xi32> to vector<2x1xi32>
    %c0_i32_100 = arith.constant 0 : i32
    %344 = vector.broadcast %c0_i32_100 : i32 to vector<2x3xi32>
    %345 = arith.cmpi eq, %11, %344 : vector<2x3xi32>
    %cst_101 = arith.constant 0.000000e+00 : f32
    %346 = vector.shape_cast %337 : vector<2x1xf32> to vector<2x1xf32>
    %347 = vector.broadcast %346 : vector<2x1xf32> to vector<2x3xf32>
    %348 = vector.broadcast %cst_101 : f32 to vector<2x3xf32>
    %349 = arith.select %345, %347, %348 : vector<2x3xi1>, vector<2x3xf32>
    %350 = arith.addf %334, %349 : vector<2x3xf32>
    %c0_i32_102 = arith.constant 0 : i32
    %351 = vector.broadcast %c0_i32_102 : i32 to vector<2x3xi32>
    %352 = arith.cmpi eq, %11, %351 : vector<2x3xi32>
    %c0_i32_103 = arith.constant 0 : i32
    %353 = vector.shape_cast %343 : vector<2x1xi32> to vector<2x1xi32>
    %354 = vector.broadcast %353 : vector<2x1xi32> to vector<2x3xi32>
    %355 = vector.broadcast %c0_i32_103 : i32 to vector<2x3xi32>
    %356 = arith.select %352, %354, %355 : vector<2x3xi1>, vector<2x3xi32>
    %357 = arith.addi %335, %356 : vector<2x3xi32>
    %358 = vector.broadcast %343 : vector<2x1xi32> to vector<2x48xi32>
    %359 = arith.cmpi eq, %10, %358 : vector<2x48xi32>
    %cst_104 = arith.constant -1.000000e+30 : f32
    %360 = vector.broadcast %cst_104 : f32 to vector<2x48xf32>
    %361 = arith.select %359, %360, %333 : vector<2x48xi1>, vector<2x48xf32>
    %cst_105 = arith.constant dense<0xFF800000> : vector<2xf32>
    %362 = vector.multi_reduction <maximumf>, %361, %cst_105 [1] : vector<2x48xf32> to vector<2xf32>
    %363 = vector.shape_cast %362 : vector<2xf32> to vector<2x1xf32>
    %364 = vector.broadcast %363 : vector<2x1xf32> to vector<2x48xf32>
    %365 = arith.cmpf oeq, %361, %364 : vector<2x48xf32>
    %c48_i32_106 = arith.constant 48 : i32
    %366 = vector.broadcast %c48_i32_106 : i32 to vector<2x48xi32>
    %367 = arith.select %365, %10, %366 : vector<2x48xi1>, vector<2x48xi32>
    %cst_107 = arith.constant dense<2147483647> : vector<2xi32>
    %368 = vector.multi_reduction <minsi>, %367, %cst_107 [1] : vector<2x48xi32> to vector<2xi32>
    %369 = vector.shape_cast %368 : vector<2xi32> to vector<2x1xi32>
    %c1_i32_108 = arith.constant 1 : i32
    %370 = vector.broadcast %c1_i32_108 : i32 to vector<2x3xi32>
    %371 = arith.cmpi eq, %11, %370 : vector<2x3xi32>
    %cst_109 = arith.constant 0.000000e+00 : f32
    %372 = vector.shape_cast %363 : vector<2x1xf32> to vector<2x1xf32>
    %373 = vector.broadcast %372 : vector<2x1xf32> to vector<2x3xf32>
    %374 = vector.broadcast %cst_109 : f32 to vector<2x3xf32>
    %375 = arith.select %371, %373, %374 : vector<2x3xi1>, vector<2x3xf32>
    %376 = arith.addf %350, %375 : vector<2x3xf32>
    %c1_i32_110 = arith.constant 1 : i32
    %377 = vector.broadcast %c1_i32_110 : i32 to vector<2x3xi32>
    %378 = arith.cmpi eq, %11, %377 : vector<2x3xi32>
    %c0_i32_111 = arith.constant 0 : i32
    %379 = vector.shape_cast %369 : vector<2x1xi32> to vector<2x1xi32>
    %380 = vector.broadcast %379 : vector<2x1xi32> to vector<2x3xi32>
    %381 = vector.broadcast %c0_i32_111 : i32 to vector<2x3xi32>
    %382 = arith.select %378, %380, %381 : vector<2x3xi1>, vector<2x3xi32>
    %383 = arith.addi %357, %382 : vector<2x3xi32>
    %384 = vector.broadcast %369 : vector<2x1xi32> to vector<2x48xi32>
    %385 = arith.cmpi eq, %10, %384 : vector<2x48xi32>
    %cst_112 = arith.constant -1.000000e+30 : f32
    %386 = vector.broadcast %cst_112 : f32 to vector<2x48xf32>
    %387 = arith.select %385, %386, %361 : vector<2x48xi1>, vector<2x48xf32>
    %cst_113 = arith.constant dense<0xFF800000> : vector<2xf32>
    %388 = vector.multi_reduction <maximumf>, %387, %cst_113 [1] : vector<2x48xf32> to vector<2xf32>
    %389 = vector.shape_cast %388 : vector<2xf32> to vector<2x1xf32>
    %390 = vector.broadcast %389 : vector<2x1xf32> to vector<2x48xf32>
    %391 = arith.cmpf oeq, %387, %390 : vector<2x48xf32>
    %c48_i32_114 = arith.constant 48 : i32
    %392 = vector.broadcast %c48_i32_114 : i32 to vector<2x48xi32>
    %393 = arith.select %391, %10, %392 : vector<2x48xi1>, vector<2x48xi32>
    %cst_115 = arith.constant dense<2147483647> : vector<2xi32>
    %394 = vector.multi_reduction <minsi>, %393, %cst_115 [1] : vector<2x48xi32> to vector<2xi32>
    %395 = vector.shape_cast %394 : vector<2xi32> to vector<2x1xi32>
    %c2_i32_116 = arith.constant 2 : i32
    %396 = vector.broadcast %c2_i32_116 : i32 to vector<2x3xi32>
    %397 = arith.cmpi eq, %11, %396 : vector<2x3xi32>
    %cst_117 = arith.constant 0.000000e+00 : f32
    %398 = vector.shape_cast %389 : vector<2x1xf32> to vector<2x1xf32>
    %399 = vector.broadcast %398 : vector<2x1xf32> to vector<2x3xf32>
    %400 = vector.broadcast %cst_117 : f32 to vector<2x3xf32>
    %401 = arith.select %397, %399, %400 : vector<2x3xi1>, vector<2x3xf32>
    %402 = arith.addf %376, %401 : vector<2x3xf32>
    %c2_i32_118 = arith.constant 2 : i32
    %403 = vector.broadcast %c2_i32_118 : i32 to vector<2x3xi32>
    %404 = arith.cmpi eq, %11, %403 : vector<2x3xi32>
    %c0_i32_119 = arith.constant 0 : i32
    %405 = vector.shape_cast %395 : vector<2x1xi32> to vector<2x1xi32>
    %406 = vector.broadcast %405 : vector<2x1xi32> to vector<2x3xi32>
    %407 = vector.broadcast %c0_i32_119 : i32 to vector<2x3xi32>
    %408 = arith.select %404, %406, %407 : vector<2x3xi1>, vector<2x3xi32>
    %409 = arith.addi %383, %408 : vector<2x3xi32>
    %c0_i32_120 = arith.constant 0 : i32
    %410 = vector.broadcast %c0_i32_120 : i32 to vector<2x3xi32>
    %c16_i32_121 = arith.constant 16 : i32
    %411 = vector.broadcast %c16_i32_121 : i32 to vector<2x3xi32>
    %412 = arith.cmpi sge, %409, %411 : vector<2x3xi32>
    %413 = arith.extui %412 : vector<2x3xi1> to vector<2x3xi32>
    %414 = arith.addi %410, %413 : vector<2x3xi32>
    %c32_i32_122 = arith.constant 32 : i32
    %415 = vector.broadcast %c32_i32_122 : i32 to vector<2x3xi32>
    %416 = arith.cmpi sge, %409, %415 : vector<2x3xi32>
    %417 = arith.extui %416 : vector<2x3xi1> to vector<2x3xi32>
    %418 = arith.addi %414, %417 : vector<2x3xi32>
    %c16_i32_123 = arith.constant 16 : i32
    %419 = vector.broadcast %c16_i32_123 : i32 to vector<2x3xi32>
    %420 = arith.muli %419, %418 : vector<2x3xi32>
    %421 = arith.subi %409, %420 : vector<2x3xi32>
    %422 = arith.sitofp %418 : vector<2x3xi32> to vector<2x3xf32>
    %423 = arith.sitofp %421 : vector<2x3xi32> to vector<2x3xf32>
    %424 = tpu.concatenate %422, %423, %402 in 1 : vector<2x3xf32>, vector<2x3xf32>, vector<2x3xf32> -> vector<2x9xf32>
    %cst_124 = arith.constant dense<0.000000e+00> : vector<6x9xf32>
    %425 = tpu.matmul %40, %424, %cst_124 {dimension_numbers = #tpu.dot_dimension_numbers<[1], [0], [0], [1], [0, 0, 1, 1], [], []>} : vector<6x2xf32>, vector<2x9xf32>, vector<6x9xf32> -> vector<6x9xf32>
    %426 = vector.broadcast %8 : vector<6x1xi32> to vector<6x9xi32>
    %427 = arith.cmpi eq, %12, %426 : vector<6x9xi32>
    %cst_125 = arith.constant 0.000000e+00 : f32
    %428 = vector.broadcast %cst_125 : f32 to vector<6x9xf32>
    %429 = arith.select %427, %425, %428 : vector<6x9xi1>, vector<6x9xf32>
    %cst_126 = arith.constant dense<0.000000e+00> : vector<6xf32>
    %430 = vector.multi_reduction <add>, %429, %cst_126 [1] : vector<6x9xf32> to vector<6xf32>
    %431 = vector.shape_cast %430 : vector<6xf32> to vector<6x1xf32>
    %c3_i32_127 = arith.constant 3 : i32
    %432 = vector.broadcast %c3_i32_127 : i32 to vector<6x1xi32>
    %433 = arith.addi %8, %432 : vector<6x1xi32>
    %434 = vector.broadcast %433 : vector<6x1xi32> to vector<6x9xi32>
    %435 = arith.cmpi eq, %12, %434 : vector<6x9xi32>
    %cst_128 = arith.constant 0.000000e+00 : f32
    %436 = vector.broadcast %cst_128 : f32 to vector<6x9xf32>
    %437 = arith.select %435, %425, %436 : vector<6x9xi1>, vector<6x9xf32>
    %cst_129 = arith.constant dense<0.000000e+00> : vector<6xf32>
    %438 = vector.multi_reduction <add>, %437, %cst_129 [1] : vector<6x9xf32> to vector<6xf32>
    %439 = vector.shape_cast %438 : vector<6xf32> to vector<6x1xf32>
    %c6_i32_130 = arith.constant 6 : i32
    %440 = vector.broadcast %c6_i32_130 : i32 to vector<6x1xi32>
    %441 = arith.addi %8, %440 : vector<6x1xi32>
    %442 = vector.broadcast %441 : vector<6x1xi32> to vector<6x9xi32>
    %443 = arith.cmpi eq, %12, %442 : vector<6x9xi32>
    %cst_131 = arith.constant 0.000000e+00 : f32
    %444 = vector.broadcast %cst_131 : f32 to vector<6x9xf32>
    %445 = arith.select %443, %425, %444 : vector<6x9xi1>, vector<6x9xf32>
    %cst_132 = arith.constant dense<0.000000e+00> : vector<6xf32>
    %446 = vector.multi_reduction <add>, %445, %cst_132 [1] : vector<6x9xf32> to vector<6xf32>
    %447 = vector.shape_cast %446 : vector<6xf32> to vector<6x1xf32>
    %448 = arith.fptosi %431 : vector<6x1xf32> to vector<6x1xi32>
    %449 = vector.broadcast %448 : vector<6x1xi32> to vector<6x6xi32>
    %450 = arith.cmpi eq, %52, %449 : vector<6x6xi32>
    %451 = arith.extui %450 : vector<6x6xi1> to vector<6x6xi32>
    %452 = arith.sitofp %451 : vector<6x6xi32> to vector<6x6xf32>
    %453 = tpu.concatenate %296, %256 in 1 : vector<6x32xf32>, vector<6x9xf32> -> vector<6x41xf32>
    %cst_133 = arith.constant dense<0.000000e+00> : vector<6x41xf32>
    %454 = tpu.matmul %452, %453, %cst_133 {dimension_numbers = #tpu.dot_dimension_numbers<[1], [0], [0], [1], [0, 0, 1, 1], [], []>} : vector<6x6xf32>, vector<6x41xf32>, vector<6x41xf32> -> vector<6x41xf32>
    %455 = vector.extract_strided_slice %454 {offsets = [0, 0], sizes = [6, 32], strides = [1, 1]} : vector<6x41xf32> to vector<6x32xf32>
    %c2_i32_134 = arith.constant 2 : i32
    %456 = vector.broadcast %c2_i32_134 : i32 to vector<6x9xi32>
    %457 = arith.cmpi eq, %13, %456 : vector<6x9xi32>
    %458 = vector.extract_strided_slice %454 {offsets = [0, 32], sizes = [6, 9], strides = [1, 1]} : vector<6x41xf32> to vector<6x9xf32>
    %459 = vector.shape_cast %439 : vector<6x1xf32> to vector<6x1xf32>
    %460 = vector.broadcast %459 : vector<6x1xf32> to vector<6x9xf32>
    %461 = arith.select %457, %460, %458 : vector<6x9xi1>, vector<6x9xf32>
    %462 = vector.broadcast %282 : vector<1x1xf32> to vector<6x32xf32>
    %463 = arith.mulf %462, %251 : vector<6x32xf32>
    %464 = vector.broadcast %284 : vector<1x1xf32> to vector<6x32xf32>
    %465 = arith.mulf %464, %455 : vector<6x32xf32>
    %466 = arith.addf %463, %465 : vector<6x32xf32>
    %467 = vector.broadcast %282 : vector<1x1xf32> to vector<6x9xf32>
    %468 = arith.mulf %467, %256 : vector<6x9xf32>
    %469 = vector.broadcast %284 : vector<1x1xf32> to vector<6x9xf32>
    %470 = arith.mulf %469, %461 : vector<6x9xf32>
    %471 = arith.addf %468, %470 : vector<6x9xf32>
    %472 = vector.broadcast %282 : vector<1x1xf32> to vector<6x1xf32>
    %473 = arith.mulf %472, %261 : vector<6x1xf32>
    %474 = vector.broadcast %284 : vector<1x1xf32> to vector<6x1xf32>
    %475 = arith.mulf %474, %447 : vector<6x1xf32>
    %476 = arith.addf %473, %475 : vector<6x1xf32>
    %477 = vector.broadcast %282 : vector<1x1xf32> to vector<6x1xf32>
    %478 = arith.mulf %477, %266 : vector<6x1xf32>
    %479 = vector.broadcast %284 : vector<1x1xf32> to vector<6x1xf32>
    %480 = arith.mulf %479, %439 : vector<6x1xf32>
    %481 = arith.addf %478, %480 : vector<6x1xf32>
    %cst_135 = arith.constant 1.000000e+00 : f32
    %482 = vector.broadcast %cst_135 : f32 to vector<6x1xf32>
    %483 = arith.cmpf oeq, %439, %482 : vector<6x1xf32>
    %484 = arith.extui %483 : vector<6x1xi1> to vector<6x1xi32>
    %485 = arith.sitofp %484 : vector<6x1xi32> to vector<6x1xf32>
    %486 = arith.maximumf %276, %485 : vector<6x1xf32>
    %487 = vector.broadcast %282 : vector<1x1xf32> to vector<6x1xf32>
    %488 = arith.mulf %487, %276 : vector<6x1xf32>
    %489 = vector.broadcast %284 : vector<1x1xf32> to vector<6x1xf32>
    %490 = arith.mulf %489, %486 : vector<6x1xf32>
    %491 = arith.addf %488, %490 : vector<6x1xf32>
    %cst_136 = arith.constant dense<0.000000e+00> : vector<1xf32>
    %492 = vector.multi_reduction <add>, %491, %cst_136 [0] : vector<6x1xf32> to vector<1xf32>
    %493 = vector.shape_cast %492 : vector<1xf32> to vector<1x1xf32>
    %cst_137 = arith.constant 6.000000e+00 : f32
    %494 = vector.broadcast %cst_137 : f32 to vector<1x1xf32>
    %495 = arith.cmpf oge, %493, %494 : vector<1x1xf32>
    %496 = arith.extui %495 : vector<1x1xi1> to vector<1x1xi32>
    %497 = arith.sitofp %496 : vector<1x1xi32> to vector<1x1xf32>
    %cst_138 = arith.constant 1.000000e+00 : f32
    %498 = vector.broadcast %cst_138 : f32 to vector<1x1xf32>
    %499 = arith.subf %498, %497 : vector<1x1xf32>
    %500 = arith.fptosi %481 : vector<6x1xf32> to vector<6x1xi32>
    %501 = vector.broadcast %500 : vector<6x1xi32> to vector<6x16xi32>
    %502 = arith.cmpi eq, %9, %501 : vector<6x16xi32>
    %503 = arith.extui %502 : vector<6x16xi1> to vector<6x16xi32>
    %504 = arith.sitofp %503 : vector<6x16xi32> to vector<6x16xf32>
    %505 = tpu.concatenate %504, %466 in 1 : vector<6x16xf32>, vector<6x32xf32> -> vector<6x48xf32>
    %c0_139 = arith.constant 0 : index
    %c0_140 = arith.constant 0 : index
    %506 = vector.load %arg1[%c0_139, %c0_140] : memref<48x32xf32, #tpu.memory_space<vmem>>, vector<48x32xf32>
    %cst_141 = arith.constant dense<0.000000e+00> : vector<6x32xf32>
    %507 = tpu.matmul %505, %506, %cst_141 {dimension_numbers = #tpu.dot_dimension_numbers<[1], [0], [0], [1], [0, 0, 1, 1], [], []>} : vector<6x48xf32>, vector<48x32xf32>, vector<6x32xf32> -> vector<6x32xf32>
    %c0_142 = arith.constant 0 : index
    %c0_143 = arith.constant 0 : index
    %508 = vector.load %arg2[%c0_142, %c0_143] : memref<1x32xf32, #tpu.memory_space<vmem>>, vector<1x32xf32>
    %509 = vector.broadcast %508 : vector<1x32xf32> to vector<6x32xf32>
    %510 = arith.addf %507, %509 : vector<6x32xf32>
    %511 = math.tanh %510 : vector<6x32xf32>
    %c0_144 = arith.constant 0 : index
    %c0_145 = arith.constant 0 : index
    %512 = vector.load %arg3[%c0_144, %c0_145] : memref<32x16xf32, #tpu.memory_space<vmem>>, vector<32x16xf32>
    %cst_146 = arith.constant dense<0.000000e+00> : vector<6x16xf32>
    %513 = tpu.matmul %511, %512, %cst_146 {dimension_numbers = #tpu.dot_dimension_numbers<[1], [0], [0], [1], [0, 0, 1, 1], [], []>} : vector<6x32xf32>, vector<32x16xf32>, vector<6x16xf32> -> vector<6x16xf32>
    %c0_147 = arith.constant 0 : index
    %c0_148 = arith.constant 0 : index
    %514 = vector.load %arg4[%c0_147, %c0_148] : memref<1x16xf32, #tpu.memory_space<vmem>>, vector<1x16xf32>
    %515 = vector.broadcast %514 : vector<1x16xf32> to vector<6x16xf32>
    %516 = arith.addf %513, %515 : vector<6x16xf32>
    %cst_149 = arith.constant dense<0xFF800000> : vector<6xf32>
    %517 = vector.multi_reduction <maximumf>, %516, %cst_149 [1] : vector<6x16xf32> to vector<6xf32>
    %518 = vector.shape_cast %517 : vector<6xf32> to vector<6x1xf32>
    %519 = vector.broadcast %518 : vector<6x1xf32> to vector<6x16xf32>
    %520 = arith.subf %516, %519 : vector<6x16xf32>
    %521 = math.exp %520 : vector<6x16xf32>
    %cst_150 = arith.constant dense<0.000000e+00> : vector<6xf32>
    %522 = vector.multi_reduction <add>, %521, %cst_150 [1] : vector<6x16xf32> to vector<6xf32>
    %523 = vector.shape_cast %522 : vector<6xf32> to vector<6x1xf32>
    %524 = math.log %523 : vector<6x1xf32>
    %525 = vector.broadcast %524 : vector<6x1xf32> to vector<6x16xf32>
    %526 = arith.subf %520, %525 : vector<6x16xf32>
    %527 = vector.broadcast %476 : vector<6x1xf32> to vector<6x16xf32>
    %528 = arith.addf %527, %526 : vector<6x16xf32>
    %c0_i32_151 = arith.constant 0 : i32
    %529 = vector.broadcast %c0_i32_151 : i32 to vector<6x1xi32>
    %530 = arith.cmpi eq, %8, %529 : vector<6x1xi32>
    %cst_152 = arith.constant 0.000000e+00 : f32
    %531 = vector.shape_cast %530 : vector<6x1xi1> to vector<6x1xi1>
    %532 = vector.broadcast %531 : vector<6x1xi1> to vector<6x16xi1>
    %533 = vector.broadcast %cst_152 : f32 to vector<6x16xf32>
    %534 = arith.select %532, %528, %533 : vector<6x16xi1>, vector<6x16xf32>
    %c1_i32_153 = arith.constant 1 : i32
    %535 = vector.broadcast %c1_i32_153 : i32 to vector<6x1xi32>
    %536 = arith.cmpi eq, %8, %535 : vector<6x1xi32>
    %cst_154 = arith.constant 0.000000e+00 : f32
    %537 = vector.shape_cast %536 : vector<6x1xi1> to vector<6x1xi1>
    %538 = vector.broadcast %537 : vector<6x1xi1> to vector<6x16xi1>
    %539 = vector.broadcast %cst_154 : f32 to vector<6x16xf32>
    %540 = arith.select %538, %528, %539 : vector<6x16xi1>, vector<6x16xf32>
    %c2_i32_155 = arith.constant 2 : i32
    %541 = vector.broadcast %c2_i32_155 : i32 to vector<6x1xi32>
    %542 = arith.cmpi eq, %8, %541 : vector<6x1xi32>
    %cst_156 = arith.constant 0.000000e+00 : f32
    %543 = vector.shape_cast %542 : vector<6x1xi1> to vector<6x1xi1>
    %544 = vector.broadcast %543 : vector<6x1xi1> to vector<6x16xi1>
    %545 = vector.broadcast %cst_156 : f32 to vector<6x16xf32>
    %546 = arith.select %544, %528, %545 : vector<6x16xi1>, vector<6x16xf32>
    %547 = tpu.concatenate %534, %540, %546 in 1 : vector<6x16xf32>, vector<6x16xf32>, vector<6x16xf32> -> vector<6x48xf32>
    %cst_157 = arith.constant dense<0.000000e+00> : vector<2x48xf32>
    %548 = tpu.matmul %27, %547, %cst_157 {dimension_numbers = #tpu.dot_dimension_numbers<[1], [0], [0], [1], [0, 0, 1, 1], [], []>} : vector<2x6xf32>, vector<6x48xf32>, vector<2x48xf32> -> vector<2x48xf32>
    %cst_158 = arith.constant 0.000000e+00 : f32
    %549 = vector.broadcast %cst_158 : f32 to vector<2x3xf32>
    %c0_i32_159 = arith.constant 0 : i32
    %550 = vector.broadcast %c0_i32_159 : i32 to vector<2x3xi32>
    %cst_160 = arith.constant dense<0xFF800000> : vector<2xf32>
    %551 = vector.multi_reduction <maximumf>, %548, %cst_160 [1] : vector<2x48xf32> to vector<2xf32>
    %552 = vector.shape_cast %551 : vector<2xf32> to vector<2x1xf32>
    %553 = vector.broadcast %552 : vector<2x1xf32> to vector<2x48xf32>
    %554 = arith.cmpf oeq, %548, %553 : vector<2x48xf32>
    %c48_i32_161 = arith.constant 48 : i32
    %555 = vector.broadcast %c48_i32_161 : i32 to vector<2x48xi32>
    %556 = arith.select %554, %10, %555 : vector<2x48xi1>, vector<2x48xi32>
    %cst_162 = arith.constant dense<2147483647> : vector<2xi32>
    %557 = vector.multi_reduction <minsi>, %556, %cst_162 [1] : vector<2x48xi32> to vector<2xi32>
    %558 = vector.shape_cast %557 : vector<2xi32> to vector<2x1xi32>
    %c0_i32_163 = arith.constant 0 : i32
    %559 = vector.broadcast %c0_i32_163 : i32 to vector<2x3xi32>
    %560 = arith.cmpi eq, %11, %559 : vector<2x3xi32>
    %cst_164 = arith.constant 0.000000e+00 : f32
    %561 = vector.shape_cast %552 : vector<2x1xf32> to vector<2x1xf32>
    %562 = vector.broadcast %561 : vector<2x1xf32> to vector<2x3xf32>
    %563 = vector.broadcast %cst_164 : f32 to vector<2x3xf32>
    %564 = arith.select %560, %562, %563 : vector<2x3xi1>, vector<2x3xf32>
    %565 = arith.addf %549, %564 : vector<2x3xf32>
    %c0_i32_165 = arith.constant 0 : i32
    %566 = vector.broadcast %c0_i32_165 : i32 to vector<2x3xi32>
    %567 = arith.cmpi eq, %11, %566 : vector<2x3xi32>
    %c0_i32_166 = arith.constant 0 : i32
    %568 = vector.shape_cast %558 : vector<2x1xi32> to vector<2x1xi32>
    %569 = vector.broadcast %568 : vector<2x1xi32> to vector<2x3xi32>
    %570 = vector.broadcast %c0_i32_166 : i32 to vector<2x3xi32>
    %571 = arith.select %567, %569, %570 : vector<2x3xi1>, vector<2x3xi32>
    %572 = arith.addi %550, %571 : vector<2x3xi32>
    %573 = vector.broadcast %558 : vector<2x1xi32> to vector<2x48xi32>
    %574 = arith.cmpi eq, %10, %573 : vector<2x48xi32>
    %cst_167 = arith.constant -1.000000e+30 : f32
    %575 = vector.broadcast %cst_167 : f32 to vector<2x48xf32>
    %576 = arith.select %574, %575, %548 : vector<2x48xi1>, vector<2x48xf32>
    %cst_168 = arith.constant dense<0xFF800000> : vector<2xf32>
    %577 = vector.multi_reduction <maximumf>, %576, %cst_168 [1] : vector<2x48xf32> to vector<2xf32>
    %578 = vector.shape_cast %577 : vector<2xf32> to vector<2x1xf32>
    %579 = vector.broadcast %578 : vector<2x1xf32> to vector<2x48xf32>
    %580 = arith.cmpf oeq, %576, %579 : vector<2x48xf32>
    %c48_i32_169 = arith.constant 48 : i32
    %581 = vector.broadcast %c48_i32_169 : i32 to vector<2x48xi32>
    %582 = arith.select %580, %10, %581 : vector<2x48xi1>, vector<2x48xi32>
    %cst_170 = arith.constant dense<2147483647> : vector<2xi32>
    %583 = vector.multi_reduction <minsi>, %582, %cst_170 [1] : vector<2x48xi32> to vector<2xi32>
    %584 = vector.shape_cast %583 : vector<2xi32> to vector<2x1xi32>
    %c1_i32_171 = arith.constant 1 : i32
    %585 = vector.broadcast %c1_i32_171 : i32 to vector<2x3xi32>
    %586 = arith.cmpi eq, %11, %585 : vector<2x3xi32>
    %cst_172 = arith.constant 0.000000e+00 : f32
    %587 = vector.shape_cast %578 : vector<2x1xf32> to vector<2x1xf32>
    %588 = vector.broadcast %587 : vector<2x1xf32> to vector<2x3xf32>
    %589 = vector.broadcast %cst_172 : f32 to vector<2x3xf32>
    %590 = arith.select %586, %588, %589 : vector<2x3xi1>, vector<2x3xf32>
    %591 = arith.addf %565, %590 : vector<2x3xf32>
    %c1_i32_173 = arith.constant 1 : i32
    %592 = vector.broadcast %c1_i32_173 : i32 to vector<2x3xi32>
    %593 = arith.cmpi eq, %11, %592 : vector<2x3xi32>
    %c0_i32_174 = arith.constant 0 : i32
    %594 = vector.shape_cast %584 : vector<2x1xi32> to vector<2x1xi32>
    %595 = vector.broadcast %594 : vector<2x1xi32> to vector<2x3xi32>
    %596 = vector.broadcast %c0_i32_174 : i32 to vector<2x3xi32>
    %597 = arith.select %593, %595, %596 : vector<2x3xi1>, vector<2x3xi32>
    %598 = arith.addi %572, %597 : vector<2x3xi32>
    %599 = vector.broadcast %584 : vector<2x1xi32> to vector<2x48xi32>
    %600 = arith.cmpi eq, %10, %599 : vector<2x48xi32>
    %cst_175 = arith.constant -1.000000e+30 : f32
    %601 = vector.broadcast %cst_175 : f32 to vector<2x48xf32>
    %602 = arith.select %600, %601, %576 : vector<2x48xi1>, vector<2x48xf32>
    %cst_176 = arith.constant dense<0xFF800000> : vector<2xf32>
    %603 = vector.multi_reduction <maximumf>, %602, %cst_176 [1] : vector<2x48xf32> to vector<2xf32>
    %604 = vector.shape_cast %603 : vector<2xf32> to vector<2x1xf32>
    %605 = vector.broadcast %604 : vector<2x1xf32> to vector<2x48xf32>
    %606 = arith.cmpf oeq, %602, %605 : vector<2x48xf32>
    %c48_i32_177 = arith.constant 48 : i32
    %607 = vector.broadcast %c48_i32_177 : i32 to vector<2x48xi32>
    %608 = arith.select %606, %10, %607 : vector<2x48xi1>, vector<2x48xi32>
    %cst_178 = arith.constant dense<2147483647> : vector<2xi32>
    %609 = vector.multi_reduction <minsi>, %608, %cst_178 [1] : vector<2x48xi32> to vector<2xi32>
    %610 = vector.shape_cast %609 : vector<2xi32> to vector<2x1xi32>
    %c2_i32_179 = arith.constant 2 : i32
    %611 = vector.broadcast %c2_i32_179 : i32 to vector<2x3xi32>
    %612 = arith.cmpi eq, %11, %611 : vector<2x3xi32>
    %cst_180 = arith.constant 0.000000e+00 : f32
    %613 = vector.shape_cast %604 : vector<2x1xf32> to vector<2x1xf32>
    %614 = vector.broadcast %613 : vector<2x1xf32> to vector<2x3xf32>
    %615 = vector.broadcast %cst_180 : f32 to vector<2x3xf32>
    %616 = arith.select %612, %614, %615 : vector<2x3xi1>, vector<2x3xf32>
    %617 = arith.addf %591, %616 : vector<2x3xf32>
    %c2_i32_181 = arith.constant 2 : i32
    %618 = vector.broadcast %c2_i32_181 : i32 to vector<2x3xi32>
    %619 = arith.cmpi eq, %11, %618 : vector<2x3xi32>
    %c0_i32_182 = arith.constant 0 : i32
    %620 = vector.shape_cast %610 : vector<2x1xi32> to vector<2x1xi32>
    %621 = vector.broadcast %620 : vector<2x1xi32> to vector<2x3xi32>
    %622 = vector.broadcast %c0_i32_182 : i32 to vector<2x3xi32>
    %623 = arith.select %619, %621, %622 : vector<2x3xi1>, vector<2x3xi32>
    %624 = arith.addi %598, %623 : vector<2x3xi32>
    %c0_i32_183 = arith.constant 0 : i32
    %625 = vector.broadcast %c0_i32_183 : i32 to vector<2x3xi32>
    %c16_i32_184 = arith.constant 16 : i32
    %626 = vector.broadcast %c16_i32_184 : i32 to vector<2x3xi32>
    %627 = arith.cmpi sge, %624, %626 : vector<2x3xi32>
    %628 = arith.extui %627 : vector<2x3xi1> to vector<2x3xi32>
    %629 = arith.addi %625, %628 : vector<2x3xi32>
    %c32_i32_185 = arith.constant 32 : i32
    %630 = vector.broadcast %c32_i32_185 : i32 to vector<2x3xi32>
    %631 = arith.cmpi sge, %624, %630 : vector<2x3xi32>
    %632 = arith.extui %631 : vector<2x3xi1> to vector<2x3xi32>
    %633 = arith.addi %629, %632 : vector<2x3xi32>
    %c16_i32_186 = arith.constant 16 : i32
    %634 = vector.broadcast %c16_i32_186 : i32 to vector<2x3xi32>
    %635 = arith.muli %634, %633 : vector<2x3xi32>
    %636 = arith.subi %624, %635 : vector<2x3xi32>
    %637 = arith.sitofp %633 : vector<2x3xi32> to vector<2x3xf32>
    %638 = arith.sitofp %636 : vector<2x3xi32> to vector<2x3xf32>
    %639 = tpu.concatenate %637, %638, %617 in 1 : vector<2x3xf32>, vector<2x3xf32>, vector<2x3xf32> -> vector<2x9xf32>
    %cst_187 = arith.constant dense<0.000000e+00> : vector<6x9xf32>
    %640 = tpu.matmul %40, %639, %cst_187 {dimension_numbers = #tpu.dot_dimension_numbers<[1], [0], [0], [1], [0, 0, 1, 1], [], []>} : vector<6x2xf32>, vector<2x9xf32>, vector<6x9xf32> -> vector<6x9xf32>
    %641 = vector.broadcast %8 : vector<6x1xi32> to vector<6x9xi32>
    %642 = arith.cmpi eq, %12, %641 : vector<6x9xi32>
    %cst_188 = arith.constant 0.000000e+00 : f32
    %643 = vector.broadcast %cst_188 : f32 to vector<6x9xf32>
    %644 = arith.select %642, %640, %643 : vector<6x9xi1>, vector<6x9xf32>
    %cst_189 = arith.constant dense<0.000000e+00> : vector<6xf32>
    %645 = vector.multi_reduction <add>, %644, %cst_189 [1] : vector<6x9xf32> to vector<6xf32>
    %646 = vector.shape_cast %645 : vector<6xf32> to vector<6x1xf32>
    %c3_i32_190 = arith.constant 3 : i32
    %647 = vector.broadcast %c3_i32_190 : i32 to vector<6x1xi32>
    %648 = arith.addi %8, %647 : vector<6x1xi32>
    %649 = vector.broadcast %648 : vector<6x1xi32> to vector<6x9xi32>
    %650 = arith.cmpi eq, %12, %649 : vector<6x9xi32>
    %cst_191 = arith.constant 0.000000e+00 : f32
    %651 = vector.broadcast %cst_191 : f32 to vector<6x9xf32>
    %652 = arith.select %650, %640, %651 : vector<6x9xi1>, vector<6x9xf32>
    %cst_192 = arith.constant dense<0.000000e+00> : vector<6xf32>
    %653 = vector.multi_reduction <add>, %652, %cst_192 [1] : vector<6x9xf32> to vector<6xf32>
    %654 = vector.shape_cast %653 : vector<6xf32> to vector<6x1xf32>
    %c6_i32_193 = arith.constant 6 : i32
    %655 = vector.broadcast %c6_i32_193 : i32 to vector<6x1xi32>
    %656 = arith.addi %8, %655 : vector<6x1xi32>
    %657 = vector.broadcast %656 : vector<6x1xi32> to vector<6x9xi32>
    %658 = arith.cmpi eq, %12, %657 : vector<6x9xi32>
    %cst_194 = arith.constant 0.000000e+00 : f32
    %659 = vector.broadcast %cst_194 : f32 to vector<6x9xf32>
    %660 = arith.select %658, %640, %659 : vector<6x9xi1>, vector<6x9xf32>
    %cst_195 = arith.constant dense<0.000000e+00> : vector<6xf32>
    %661 = vector.multi_reduction <add>, %660, %cst_195 [1] : vector<6x9xf32> to vector<6xf32>
    %662 = vector.shape_cast %661 : vector<6xf32> to vector<6x1xf32>
    %663 = arith.fptosi %646 : vector<6x1xf32> to vector<6x1xi32>
    %664 = vector.broadcast %663 : vector<6x1xi32> to vector<6x6xi32>
    %665 = arith.cmpi eq, %52, %664 : vector<6x6xi32>
    %666 = arith.extui %665 : vector<6x6xi1> to vector<6x6xi32>
    %667 = arith.sitofp %666 : vector<6x6xi32> to vector<6x6xf32>
    %668 = tpu.concatenate %511, %471 in 1 : vector<6x32xf32>, vector<6x9xf32> -> vector<6x41xf32>
    %cst_196 = arith.constant dense<0.000000e+00> : vector<6x41xf32>
    %669 = tpu.matmul %667, %668, %cst_196 {dimension_numbers = #tpu.dot_dimension_numbers<[1], [0], [0], [1], [0, 0, 1, 1], [], []>} : vector<6x6xf32>, vector<6x41xf32>, vector<6x41xf32> -> vector<6x41xf32>
    %670 = vector.extract_strided_slice %669 {offsets = [0, 0], sizes = [6, 32], strides = [1, 1]} : vector<6x41xf32> to vector<6x32xf32>
    %c3_i32_197 = arith.constant 3 : i32
    %671 = vector.broadcast %c3_i32_197 : i32 to vector<6x9xi32>
    %672 = arith.cmpi eq, %13, %671 : vector<6x9xi32>
    %673 = vector.extract_strided_slice %669 {offsets = [0, 32], sizes = [6, 9], strides = [1, 1]} : vector<6x41xf32> to vector<6x9xf32>
    %674 = vector.shape_cast %654 : vector<6x1xf32> to vector<6x1xf32>
    %675 = vector.broadcast %674 : vector<6x1xf32> to vector<6x9xf32>
    %676 = arith.select %672, %675, %673 : vector<6x9xi1>, vector<6x9xf32>
    %677 = vector.broadcast %497 : vector<1x1xf32> to vector<6x32xf32>
    %678 = arith.mulf %677, %466 : vector<6x32xf32>
    %679 = vector.broadcast %499 : vector<1x1xf32> to vector<6x32xf32>
    %680 = arith.mulf %679, %670 : vector<6x32xf32>
    %681 = arith.addf %678, %680 : vector<6x32xf32>
    %682 = vector.broadcast %497 : vector<1x1xf32> to vector<6x9xf32>
    %683 = arith.mulf %682, %471 : vector<6x9xf32>
    %684 = vector.broadcast %499 : vector<1x1xf32> to vector<6x9xf32>
    %685 = arith.mulf %684, %676 : vector<6x9xf32>
    %686 = arith.addf %683, %685 : vector<6x9xf32>
    %687 = vector.broadcast %497 : vector<1x1xf32> to vector<6x1xf32>
    %688 = arith.mulf %687, %476 : vector<6x1xf32>
    %689 = vector.broadcast %499 : vector<1x1xf32> to vector<6x1xf32>
    %690 = arith.mulf %689, %662 : vector<6x1xf32>
    %691 = arith.addf %688, %690 : vector<6x1xf32>
    %692 = vector.broadcast %497 : vector<1x1xf32> to vector<6x1xf32>
    %693 = arith.mulf %692, %481 : vector<6x1xf32>
    %694 = vector.broadcast %499 : vector<1x1xf32> to vector<6x1xf32>
    %695 = arith.mulf %694, %654 : vector<6x1xf32>
    %696 = arith.addf %693, %695 : vector<6x1xf32>
    %cst_198 = arith.constant 1.000000e+00 : f32
    %697 = vector.broadcast %cst_198 : f32 to vector<6x1xf32>
    %698 = arith.cmpf oeq, %654, %697 : vector<6x1xf32>
    %699 = arith.extui %698 : vector<6x1xi1> to vector<6x1xi32>
    %700 = arith.sitofp %699 : vector<6x1xi32> to vector<6x1xf32>
    %701 = arith.maximumf %491, %700 : vector<6x1xf32>
    %702 = vector.broadcast %497 : vector<1x1xf32> to vector<6x1xf32>
    %703 = arith.mulf %702, %491 : vector<6x1xf32>
    %704 = vector.broadcast %499 : vector<1x1xf32> to vector<6x1xf32>
    %705 = arith.mulf %704, %701 : vector<6x1xf32>
    %706 = arith.addf %703, %705 : vector<6x1xf32>
    %cst_199 = arith.constant dense<0.000000e+00> : vector<1xf32>
    %707 = vector.multi_reduction <add>, %706, %cst_199 [0] : vector<6x1xf32> to vector<1xf32>
    %708 = vector.shape_cast %707 : vector<1xf32> to vector<1x1xf32>
    %cst_200 = arith.constant 6.000000e+00 : f32
    %709 = vector.broadcast %cst_200 : f32 to vector<1x1xf32>
    %710 = arith.cmpf oge, %708, %709 : vector<1x1xf32>
    %711 = arith.extui %710 : vector<1x1xi1> to vector<1x1xi32>
    %712 = arith.sitofp %711 : vector<1x1xi32> to vector<1x1xf32>
    %cst_201 = arith.constant 1.000000e+00 : f32
    %713 = vector.broadcast %cst_201 : f32 to vector<1x1xf32>
    %714 = arith.subf %713, %712 : vector<1x1xf32>
    %715 = arith.fptosi %696 : vector<6x1xf32> to vector<6x1xi32>
    %716 = vector.broadcast %715 : vector<6x1xi32> to vector<6x16xi32>
    %717 = arith.cmpi eq, %9, %716 : vector<6x16xi32>
    %718 = arith.extui %717 : vector<6x16xi1> to vector<6x16xi32>
    %719 = arith.sitofp %718 : vector<6x16xi32> to vector<6x16xf32>
    %720 = tpu.concatenate %719, %681 in 1 : vector<6x16xf32>, vector<6x32xf32> -> vector<6x48xf32>
    %c0_202 = arith.constant 0 : index
    %c0_203 = arith.constant 0 : index
    %721 = vector.load %arg1[%c0_202, %c0_203] : memref<48x32xf32, #tpu.memory_space<vmem>>, vector<48x32xf32>
    %cst_204 = arith.constant dense<0.000000e+00> : vector<6x32xf32>
    %722 = tpu.matmul %720, %721, %cst_204 {dimension_numbers = #tpu.dot_dimension_numbers<[1], [0], [0], [1], [0, 0, 1, 1], [], []>} : vector<6x48xf32>, vector<48x32xf32>, vector<6x32xf32> -> vector<6x32xf32>
    %c0_205 = arith.constant 0 : index
    %c0_206 = arith.constant 0 : index
    %723 = vector.load %arg2[%c0_205, %c0_206] : memref<1x32xf32, #tpu.memory_space<vmem>>, vector<1x32xf32>
    %724 = vector.broadcast %723 : vector<1x32xf32> to vector<6x32xf32>
    %725 = arith.addf %722, %724 : vector<6x32xf32>
    %726 = math.tanh %725 : vector<6x32xf32>
    %c0_207 = arith.constant 0 : index
    %c0_208 = arith.constant 0 : index
    %727 = vector.load %arg3[%c0_207, %c0_208] : memref<32x16xf32, #tpu.memory_space<vmem>>, vector<32x16xf32>
    %cst_209 = arith.constant dense<0.000000e+00> : vector<6x16xf32>
    %728 = tpu.matmul %726, %727, %cst_209 {dimension_numbers = #tpu.dot_dimension_numbers<[1], [0], [0], [1], [0, 0, 1, 1], [], []>} : vector<6x32xf32>, vector<32x16xf32>, vector<6x16xf32> -> vector<6x16xf32>
    %c0_210 = arith.constant 0 : index
    %c0_211 = arith.constant 0 : index
    %729 = vector.load %arg4[%c0_210, %c0_211] : memref<1x16xf32, #tpu.memory_space<vmem>>, vector<1x16xf32>
    %730 = vector.broadcast %729 : vector<1x16xf32> to vector<6x16xf32>
    %731 = arith.addf %728, %730 : vector<6x16xf32>
    %cst_212 = arith.constant dense<0xFF800000> : vector<6xf32>
    %732 = vector.multi_reduction <maximumf>, %731, %cst_212 [1] : vector<6x16xf32> to vector<6xf32>
    %733 = vector.shape_cast %732 : vector<6xf32> to vector<6x1xf32>
    %734 = vector.broadcast %733 : vector<6x1xf32> to vector<6x16xf32>
    %735 = arith.subf %731, %734 : vector<6x16xf32>
    %736 = math.exp %735 : vector<6x16xf32>
    %cst_213 = arith.constant dense<0.000000e+00> : vector<6xf32>
    %737 = vector.multi_reduction <add>, %736, %cst_213 [1] : vector<6x16xf32> to vector<6xf32>
    %738 = vector.shape_cast %737 : vector<6xf32> to vector<6x1xf32>
    %739 = math.log %738 : vector<6x1xf32>
    %740 = vector.broadcast %739 : vector<6x1xf32> to vector<6x16xf32>
    %741 = arith.subf %735, %740 : vector<6x16xf32>
    %742 = vector.broadcast %691 : vector<6x1xf32> to vector<6x16xf32>
    %743 = arith.addf %742, %741 : vector<6x16xf32>
    %c0_i32_214 = arith.constant 0 : i32
    %744 = vector.broadcast %c0_i32_214 : i32 to vector<6x1xi32>
    %745 = arith.cmpi eq, %8, %744 : vector<6x1xi32>
    %cst_215 = arith.constant 0.000000e+00 : f32
    %746 = vector.shape_cast %745 : vector<6x1xi1> to vector<6x1xi1>
    %747 = vector.broadcast %746 : vector<6x1xi1> to vector<6x16xi1>
    %748 = vector.broadcast %cst_215 : f32 to vector<6x16xf32>
    %749 = arith.select %747, %743, %748 : vector<6x16xi1>, vector<6x16xf32>
    %c1_i32_216 = arith.constant 1 : i32
    %750 = vector.broadcast %c1_i32_216 : i32 to vector<6x1xi32>
    %751 = arith.cmpi eq, %8, %750 : vector<6x1xi32>
    %cst_217 = arith.constant 0.000000e+00 : f32
    %752 = vector.shape_cast %751 : vector<6x1xi1> to vector<6x1xi1>
    %753 = vector.broadcast %752 : vector<6x1xi1> to vector<6x16xi1>
    %754 = vector.broadcast %cst_217 : f32 to vector<6x16xf32>
    %755 = arith.select %753, %743, %754 : vector<6x16xi1>, vector<6x16xf32>
    %c2_i32_218 = arith.constant 2 : i32
    %756 = vector.broadcast %c2_i32_218 : i32 to vector<6x1xi32>
    %757 = arith.cmpi eq, %8, %756 : vector<6x1xi32>
    %cst_219 = arith.constant 0.000000e+00 : f32
    %758 = vector.shape_cast %757 : vector<6x1xi1> to vector<6x1xi1>
    %759 = vector.broadcast %758 : vector<6x1xi1> to vector<6x16xi1>
    %760 = vector.broadcast %cst_219 : f32 to vector<6x16xf32>
    %761 = arith.select %759, %743, %760 : vector<6x16xi1>, vector<6x16xf32>
    %762 = tpu.concatenate %749, %755, %761 in 1 : vector<6x16xf32>, vector<6x16xf32>, vector<6x16xf32> -> vector<6x48xf32>
    %cst_220 = arith.constant dense<0.000000e+00> : vector<2x48xf32>
    %763 = tpu.matmul %27, %762, %cst_220 {dimension_numbers = #tpu.dot_dimension_numbers<[1], [0], [0], [1], [0, 0, 1, 1], [], []>} : vector<2x6xf32>, vector<6x48xf32>, vector<2x48xf32> -> vector<2x48xf32>
    %cst_221 = arith.constant 0.000000e+00 : f32
    %764 = vector.broadcast %cst_221 : f32 to vector<2x3xf32>
    %c0_i32_222 = arith.constant 0 : i32
    %765 = vector.broadcast %c0_i32_222 : i32 to vector<2x3xi32>
    %cst_223 = arith.constant dense<0xFF800000> : vector<2xf32>
    %766 = vector.multi_reduction <maximumf>, %763, %cst_223 [1] : vector<2x48xf32> to vector<2xf32>
    %767 = vector.shape_cast %766 : vector<2xf32> to vector<2x1xf32>
    %768 = vector.broadcast %767 : vector<2x1xf32> to vector<2x48xf32>
    %769 = arith.cmpf oeq, %763, %768 : vector<2x48xf32>
    %c48_i32_224 = arith.constant 48 : i32
    %770 = vector.broadcast %c48_i32_224 : i32 to vector<2x48xi32>
    %771 = arith.select %769, %10, %770 : vector<2x48xi1>, vector<2x48xi32>
    %cst_225 = arith.constant dense<2147483647> : vector<2xi32>
    %772 = vector.multi_reduction <minsi>, %771, %cst_225 [1] : vector<2x48xi32> to vector<2xi32>
    %773 = vector.shape_cast %772 : vector<2xi32> to vector<2x1xi32>
    %c0_i32_226 = arith.constant 0 : i32
    %774 = vector.broadcast %c0_i32_226 : i32 to vector<2x3xi32>
    %775 = arith.cmpi eq, %11, %774 : vector<2x3xi32>
    %cst_227 = arith.constant 0.000000e+00 : f32
    %776 = vector.shape_cast %767 : vector<2x1xf32> to vector<2x1xf32>
    %777 = vector.broadcast %776 : vector<2x1xf32> to vector<2x3xf32>
    %778 = vector.broadcast %cst_227 : f32 to vector<2x3xf32>
    %779 = arith.select %775, %777, %778 : vector<2x3xi1>, vector<2x3xf32>
    %780 = arith.addf %764, %779 : vector<2x3xf32>
    %c0_i32_228 = arith.constant 0 : i32
    %781 = vector.broadcast %c0_i32_228 : i32 to vector<2x3xi32>
    %782 = arith.cmpi eq, %11, %781 : vector<2x3xi32>
    %c0_i32_229 = arith.constant 0 : i32
    %783 = vector.shape_cast %773 : vector<2x1xi32> to vector<2x1xi32>
    %784 = vector.broadcast %783 : vector<2x1xi32> to vector<2x3xi32>
    %785 = vector.broadcast %c0_i32_229 : i32 to vector<2x3xi32>
    %786 = arith.select %782, %784, %785 : vector<2x3xi1>, vector<2x3xi32>
    %787 = arith.addi %765, %786 : vector<2x3xi32>
    %788 = vector.broadcast %773 : vector<2x1xi32> to vector<2x48xi32>
    %789 = arith.cmpi eq, %10, %788 : vector<2x48xi32>
    %cst_230 = arith.constant -1.000000e+30 : f32
    %790 = vector.broadcast %cst_230 : f32 to vector<2x48xf32>
    %791 = arith.select %789, %790, %763 : vector<2x48xi1>, vector<2x48xf32>
    %cst_231 = arith.constant dense<0xFF800000> : vector<2xf32>
    %792 = vector.multi_reduction <maximumf>, %791, %cst_231 [1] : vector<2x48xf32> to vector<2xf32>
    %793 = vector.shape_cast %792 : vector<2xf32> to vector<2x1xf32>
    %794 = vector.broadcast %793 : vector<2x1xf32> to vector<2x48xf32>
    %795 = arith.cmpf oeq, %791, %794 : vector<2x48xf32>
    %c48_i32_232 = arith.constant 48 : i32
    %796 = vector.broadcast %c48_i32_232 : i32 to vector<2x48xi32>
    %797 = arith.select %795, %10, %796 : vector<2x48xi1>, vector<2x48xi32>
    %cst_233 = arith.constant dense<2147483647> : vector<2xi32>
    %798 = vector.multi_reduction <minsi>, %797, %cst_233 [1] : vector<2x48xi32> to vector<2xi32>
    %799 = vector.shape_cast %798 : vector<2xi32> to vector<2x1xi32>
    %c1_i32_234 = arith.constant 1 : i32
    %800 = vector.broadcast %c1_i32_234 : i32 to vector<2x3xi32>
    %801 = arith.cmpi eq, %11, %800 : vector<2x3xi32>
    %cst_235 = arith.constant 0.000000e+00 : f32
    %802 = vector.shape_cast %793 : vector<2x1xf32> to vector<2x1xf32>
    %803 = vector.broadcast %802 : vector<2x1xf32> to vector<2x3xf32>
    %804 = vector.broadcast %cst_235 : f32 to vector<2x3xf32>
    %805 = arith.select %801, %803, %804 : vector<2x3xi1>, vector<2x3xf32>
    %806 = arith.addf %780, %805 : vector<2x3xf32>
    %c1_i32_236 = arith.constant 1 : i32
    %807 = vector.broadcast %c1_i32_236 : i32 to vector<2x3xi32>
    %808 = arith.cmpi eq, %11, %807 : vector<2x3xi32>
    %c0_i32_237 = arith.constant 0 : i32
    %809 = vector.shape_cast %799 : vector<2x1xi32> to vector<2x1xi32>
    %810 = vector.broadcast %809 : vector<2x1xi32> to vector<2x3xi32>
    %811 = vector.broadcast %c0_i32_237 : i32 to vector<2x3xi32>
    %812 = arith.select %808, %810, %811 : vector<2x3xi1>, vector<2x3xi32>
    %813 = arith.addi %787, %812 : vector<2x3xi32>
    %814 = vector.broadcast %799 : vector<2x1xi32> to vector<2x48xi32>
    %815 = arith.cmpi eq, %10, %814 : vector<2x48xi32>
    %cst_238 = arith.constant -1.000000e+30 : f32
    %816 = vector.broadcast %cst_238 : f32 to vector<2x48xf32>
    %817 = arith.select %815, %816, %791 : vector<2x48xi1>, vector<2x48xf32>
    %cst_239 = arith.constant dense<0xFF800000> : vector<2xf32>
    %818 = vector.multi_reduction <maximumf>, %817, %cst_239 [1] : vector<2x48xf32> to vector<2xf32>
    %819 = vector.shape_cast %818 : vector<2xf32> to vector<2x1xf32>
    %820 = vector.broadcast %819 : vector<2x1xf32> to vector<2x48xf32>
    %821 = arith.cmpf oeq, %817, %820 : vector<2x48xf32>
    %c48_i32_240 = arith.constant 48 : i32
    %822 = vector.broadcast %c48_i32_240 : i32 to vector<2x48xi32>
    %823 = arith.select %821, %10, %822 : vector<2x48xi1>, vector<2x48xi32>
    %cst_241 = arith.constant dense<2147483647> : vector<2xi32>
    %824 = vector.multi_reduction <minsi>, %823, %cst_241 [1] : vector<2x48xi32> to vector<2xi32>
    %825 = vector.shape_cast %824 : vector<2xi32> to vector<2x1xi32>
    %c2_i32_242 = arith.constant 2 : i32
    %826 = vector.broadcast %c2_i32_242 : i32 to vector<2x3xi32>
    %827 = arith.cmpi eq, %11, %826 : vector<2x3xi32>
    %cst_243 = arith.constant 0.000000e+00 : f32
    %828 = vector.shape_cast %819 : vector<2x1xf32> to vector<2x1xf32>
    %829 = vector.broadcast %828 : vector<2x1xf32> to vector<2x3xf32>
    %830 = vector.broadcast %cst_243 : f32 to vector<2x3xf32>
    %831 = arith.select %827, %829, %830 : vector<2x3xi1>, vector<2x3xf32>
    %832 = arith.addf %806, %831 : vector<2x3xf32>
    %c2_i32_244 = arith.constant 2 : i32
    %833 = vector.broadcast %c2_i32_244 : i32 to vector<2x3xi32>
    %834 = arith.cmpi eq, %11, %833 : vector<2x3xi32>
    %c0_i32_245 = arith.constant 0 : i32
    %835 = vector.shape_cast %825 : vector<2x1xi32> to vector<2x1xi32>
    %836 = vector.broadcast %835 : vector<2x1xi32> to vector<2x3xi32>
    %837 = vector.broadcast %c0_i32_245 : i32 to vector<2x3xi32>
    %838 = arith.select %834, %836, %837 : vector<2x3xi1>, vector<2x3xi32>
    %839 = arith.addi %813, %838 : vector<2x3xi32>
    %c0_i32_246 = arith.constant 0 : i32
    %840 = vector.broadcast %c0_i32_246 : i32 to vector<2x3xi32>
    %c16_i32_247 = arith.constant 16 : i32
    %841 = vector.broadcast %c16_i32_247 : i32 to vector<2x3xi32>
    %842 = arith.cmpi sge, %839, %841 : vector<2x3xi32>
    %843 = arith.extui %842 : vector<2x3xi1> to vector<2x3xi32>
    %844 = arith.addi %840, %843 : vector<2x3xi32>
    %c32_i32_248 = arith.constant 32 : i32
    %845 = vector.broadcast %c32_i32_248 : i32 to vector<2x3xi32>
    %846 = arith.cmpi sge, %839, %845 : vector<2x3xi32>
    %847 = arith.extui %846 : vector<2x3xi1> to vector<2x3xi32>
    %848 = arith.addi %844, %847 : vector<2x3xi32>
    %c16_i32_249 = arith.constant 16 : i32
    %849 = vector.broadcast %c16_i32_249 : i32 to vector<2x3xi32>
    %850 = arith.muli %849, %848 : vector<2x3xi32>
    %851 = arith.subi %839, %850 : vector<2x3xi32>
    %852 = arith.sitofp %848 : vector<2x3xi32> to vector<2x3xf32>
    %853 = arith.sitofp %851 : vector<2x3xi32> to vector<2x3xf32>
    %854 = tpu.concatenate %852, %853, %832 in 1 : vector<2x3xf32>, vector<2x3xf32>, vector<2x3xf32> -> vector<2x9xf32>
    %cst_250 = arith.constant dense<0.000000e+00> : vector<6x9xf32>
    %855 = tpu.matmul %40, %854, %cst_250 {dimension_numbers = #tpu.dot_dimension_numbers<[1], [0], [0], [1], [0, 0, 1, 1], [], []>} : vector<6x2xf32>, vector<2x9xf32>, vector<6x9xf32> -> vector<6x9xf32>
    %856 = vector.broadcast %8 : vector<6x1xi32> to vector<6x9xi32>
    %857 = arith.cmpi eq, %12, %856 : vector<6x9xi32>
    %cst_251 = arith.constant 0.000000e+00 : f32
    %858 = vector.broadcast %cst_251 : f32 to vector<6x9xf32>
    %859 = arith.select %857, %855, %858 : vector<6x9xi1>, vector<6x9xf32>
    %cst_252 = arith.constant dense<0.000000e+00> : vector<6xf32>
    %860 = vector.multi_reduction <add>, %859, %cst_252 [1] : vector<6x9xf32> to vector<6xf32>
    %861 = vector.shape_cast %860 : vector<6xf32> to vector<6x1xf32>
    %c3_i32_253 = arith.constant 3 : i32
    %862 = vector.broadcast %c3_i32_253 : i32 to vector<6x1xi32>
    %863 = arith.addi %8, %862 : vector<6x1xi32>
    %864 = vector.broadcast %863 : vector<6x1xi32> to vector<6x9xi32>
    %865 = arith.cmpi eq, %12, %864 : vector<6x9xi32>
    %cst_254 = arith.constant 0.000000e+00 : f32
    %866 = vector.broadcast %cst_254 : f32 to vector<6x9xf32>
    %867 = arith.select %865, %855, %866 : vector<6x9xi1>, vector<6x9xf32>
    %cst_255 = arith.constant dense<0.000000e+00> : vector<6xf32>
    %868 = vector.multi_reduction <add>, %867, %cst_255 [1] : vector<6x9xf32> to vector<6xf32>
    %869 = vector.shape_cast %868 : vector<6xf32> to vector<6x1xf32>
    %c6_i32_256 = arith.constant 6 : i32
    %870 = vector.broadcast %c6_i32_256 : i32 to vector<6x1xi32>
    %871 = arith.addi %8, %870 : vector<6x1xi32>
    %872 = vector.broadcast %871 : vector<6x1xi32> to vector<6x9xi32>
    %873 = arith.cmpi eq, %12, %872 : vector<6x9xi32>
    %cst_257 = arith.constant 0.000000e+00 : f32
    %874 = vector.broadcast %cst_257 : f32 to vector<6x9xf32>
    %875 = arith.select %873, %855, %874 : vector<6x9xi1>, vector<6x9xf32>
    %cst_258 = arith.constant dense<0.000000e+00> : vector<6xf32>
    %876 = vector.multi_reduction <add>, %875, %cst_258 [1] : vector<6x9xf32> to vector<6xf32>
    %877 = vector.shape_cast %876 : vector<6xf32> to vector<6x1xf32>
    %878 = arith.fptosi %861 : vector<6x1xf32> to vector<6x1xi32>
    %879 = vector.broadcast %878 : vector<6x1xi32> to vector<6x6xi32>
    %880 = arith.cmpi eq, %52, %879 : vector<6x6xi32>
    %881 = arith.extui %880 : vector<6x6xi1> to vector<6x6xi32>
    %882 = arith.sitofp %881 : vector<6x6xi32> to vector<6x6xf32>
    %883 = tpu.concatenate %726, %686 in 1 : vector<6x32xf32>, vector<6x9xf32> -> vector<6x41xf32>
    %cst_259 = arith.constant dense<0.000000e+00> : vector<6x41xf32>
    %884 = tpu.matmul %882, %883, %cst_259 {dimension_numbers = #tpu.dot_dimension_numbers<[1], [0], [0], [1], [0, 0, 1, 1], [], []>} : vector<6x6xf32>, vector<6x41xf32>, vector<6x41xf32> -> vector<6x41xf32>
    %885 = vector.extract_strided_slice %884 {offsets = [0, 0], sizes = [6, 32], strides = [1, 1]} : vector<6x41xf32> to vector<6x32xf32>
    %c4_i32 = arith.constant 4 : i32
    %886 = vector.broadcast %c4_i32 : i32 to vector<6x9xi32>
    %887 = arith.cmpi eq, %13, %886 : vector<6x9xi32>
    %888 = vector.extract_strided_slice %884 {offsets = [0, 32], sizes = [6, 9], strides = [1, 1]} : vector<6x41xf32> to vector<6x9xf32>
    %889 = vector.shape_cast %869 : vector<6x1xf32> to vector<6x1xf32>
    %890 = vector.broadcast %889 : vector<6x1xf32> to vector<6x9xf32>
    %891 = arith.select %887, %890, %888 : vector<6x9xi1>, vector<6x9xf32>
    %892 = vector.broadcast %712 : vector<1x1xf32> to vector<6x32xf32>
    %893 = arith.mulf %892, %681 : vector<6x32xf32>
    %894 = vector.broadcast %714 : vector<1x1xf32> to vector<6x32xf32>
    %895 = arith.mulf %894, %885 : vector<6x32xf32>
    %896 = arith.addf %893, %895 : vector<6x32xf32>
    %897 = vector.broadcast %712 : vector<1x1xf32> to vector<6x9xf32>
    %898 = arith.mulf %897, %686 : vector<6x9xf32>
    %899 = vector.broadcast %714 : vector<1x1xf32> to vector<6x9xf32>
    %900 = arith.mulf %899, %891 : vector<6x9xf32>
    %901 = arith.addf %898, %900 : vector<6x9xf32>
    %902 = vector.broadcast %712 : vector<1x1xf32> to vector<6x1xf32>
    %903 = arith.mulf %902, %691 : vector<6x1xf32>
    %904 = vector.broadcast %714 : vector<1x1xf32> to vector<6x1xf32>
    %905 = arith.mulf %904, %877 : vector<6x1xf32>
    %906 = arith.addf %903, %905 : vector<6x1xf32>
    %907 = vector.broadcast %712 : vector<1x1xf32> to vector<6x1xf32>
    %908 = arith.mulf %907, %696 : vector<6x1xf32>
    %909 = vector.broadcast %714 : vector<1x1xf32> to vector<6x1xf32>
    %910 = arith.mulf %909, %869 : vector<6x1xf32>
    %911 = arith.addf %908, %910 : vector<6x1xf32>
    %cst_260 = arith.constant 1.000000e+00 : f32
    %912 = vector.broadcast %cst_260 : f32 to vector<6x1xf32>
    %913 = arith.cmpf oeq, %869, %912 : vector<6x1xf32>
    %914 = arith.extui %913 : vector<6x1xi1> to vector<6x1xi32>
    %915 = arith.sitofp %914 : vector<6x1xi32> to vector<6x1xf32>
    %916 = arith.maximumf %706, %915 : vector<6x1xf32>
    %917 = vector.broadcast %712 : vector<1x1xf32> to vector<6x1xf32>
    %918 = arith.mulf %917, %706 : vector<6x1xf32>
    %919 = vector.broadcast %714 : vector<1x1xf32> to vector<6x1xf32>
    %920 = arith.mulf %919, %916 : vector<6x1xf32>
    %921 = arith.addf %918, %920 : vector<6x1xf32>
    %cst_261 = arith.constant dense<0.000000e+00> : vector<1xf32>
    %922 = vector.multi_reduction <add>, %921, %cst_261 [0] : vector<6x1xf32> to vector<1xf32>
    %923 = vector.shape_cast %922 : vector<1xf32> to vector<1x1xf32>
    %cst_262 = arith.constant 6.000000e+00 : f32
    %924 = vector.broadcast %cst_262 : f32 to vector<1x1xf32>
    %925 = arith.cmpf oge, %923, %924 : vector<1x1xf32>
    %926 = arith.extui %925 : vector<1x1xi1> to vector<1x1xi32>
    %927 = arith.sitofp %926 : vector<1x1xi32> to vector<1x1xf32>
    %cst_263 = arith.constant 1.000000e+00 : f32
    %928 = vector.broadcast %cst_263 : f32 to vector<1x1xf32>
    %929 = arith.subf %928, %927 : vector<1x1xf32>
    %930 = arith.fptosi %911 : vector<6x1xf32> to vector<6x1xi32>
    %931 = vector.broadcast %930 : vector<6x1xi32> to vector<6x16xi32>
    %932 = arith.cmpi eq, %9, %931 : vector<6x16xi32>
    %933 = arith.extui %932 : vector<6x16xi1> to vector<6x16xi32>
    %934 = arith.sitofp %933 : vector<6x16xi32> to vector<6x16xf32>
    %935 = tpu.concatenate %934, %896 in 1 : vector<6x16xf32>, vector<6x32xf32> -> vector<6x48xf32>
    %c0_264 = arith.constant 0 : index
    %c0_265 = arith.constant 0 : index
    %936 = vector.load %arg1[%c0_264, %c0_265] : memref<48x32xf32, #tpu.memory_space<vmem>>, vector<48x32xf32>
    %cst_266 = arith.constant dense<0.000000e+00> : vector<6x32xf32>
    %937 = tpu.matmul %935, %936, %cst_266 {dimension_numbers = #tpu.dot_dimension_numbers<[1], [0], [0], [1], [0, 0, 1, 1], [], []>} : vector<6x48xf32>, vector<48x32xf32>, vector<6x32xf32> -> vector<6x32xf32>
    %c0_267 = arith.constant 0 : index
    %c0_268 = arith.constant 0 : index
    %938 = vector.load %arg2[%c0_267, %c0_268] : memref<1x32xf32, #tpu.memory_space<vmem>>, vector<1x32xf32>
    %939 = vector.broadcast %938 : vector<1x32xf32> to vector<6x32xf32>
    %940 = arith.addf %937, %939 : vector<6x32xf32>
    %941 = math.tanh %940 : vector<6x32xf32>
    %c0_269 = arith.constant 0 : index
    %c0_270 = arith.constant 0 : index
    %942 = vector.load %arg3[%c0_269, %c0_270] : memref<32x16xf32, #tpu.memory_space<vmem>>, vector<32x16xf32>
    %cst_271 = arith.constant dense<0.000000e+00> : vector<6x16xf32>
    %943 = tpu.matmul %941, %942, %cst_271 {dimension_numbers = #tpu.dot_dimension_numbers<[1], [0], [0], [1], [0, 0, 1, 1], [], []>} : vector<6x32xf32>, vector<32x16xf32>, vector<6x16xf32> -> vector<6x16xf32>
    %c0_272 = arith.constant 0 : index
    %c0_273 = arith.constant 0 : index
    %944 = vector.load %arg4[%c0_272, %c0_273] : memref<1x16xf32, #tpu.memory_space<vmem>>, vector<1x16xf32>
    %945 = vector.broadcast %944 : vector<1x16xf32> to vector<6x16xf32>
    %946 = arith.addf %943, %945 : vector<6x16xf32>
    %cst_274 = arith.constant dense<0xFF800000> : vector<6xf32>
    %947 = vector.multi_reduction <maximumf>, %946, %cst_274 [1] : vector<6x16xf32> to vector<6xf32>
    %948 = vector.shape_cast %947 : vector<6xf32> to vector<6x1xf32>
    %949 = vector.broadcast %948 : vector<6x1xf32> to vector<6x16xf32>
    %950 = arith.subf %946, %949 : vector<6x16xf32>
    %951 = math.exp %950 : vector<6x16xf32>
    %cst_275 = arith.constant dense<0.000000e+00> : vector<6xf32>
    %952 = vector.multi_reduction <add>, %951, %cst_275 [1] : vector<6x16xf32> to vector<6xf32>
    %953 = vector.shape_cast %952 : vector<6xf32> to vector<6x1xf32>
    %954 = math.log %953 : vector<6x1xf32>
    %955 = vector.broadcast %954 : vector<6x1xf32> to vector<6x16xf32>
    %956 = arith.subf %950, %955 : vector<6x16xf32>
    %957 = vector.broadcast %906 : vector<6x1xf32> to vector<6x16xf32>
    %958 = arith.addf %957, %956 : vector<6x16xf32>
    %c0_i32_276 = arith.constant 0 : i32
    %959 = vector.broadcast %c0_i32_276 : i32 to vector<6x1xi32>
    %960 = arith.cmpi eq, %8, %959 : vector<6x1xi32>
    %cst_277 = arith.constant 0.000000e+00 : f32
    %961 = vector.shape_cast %960 : vector<6x1xi1> to vector<6x1xi1>
    %962 = vector.broadcast %961 : vector<6x1xi1> to vector<6x16xi1>
    %963 = vector.broadcast %cst_277 : f32 to vector<6x16xf32>
    %964 = arith.select %962, %958, %963 : vector<6x16xi1>, vector<6x16xf32>
    %c1_i32_278 = arith.constant 1 : i32
    %965 = vector.broadcast %c1_i32_278 : i32 to vector<6x1xi32>
    %966 = arith.cmpi eq, %8, %965 : vector<6x1xi32>
    %cst_279 = arith.constant 0.000000e+00 : f32
    %967 = vector.shape_cast %966 : vector<6x1xi1> to vector<6x1xi1>
    %968 = vector.broadcast %967 : vector<6x1xi1> to vector<6x16xi1>
    %969 = vector.broadcast %cst_279 : f32 to vector<6x16xf32>
    %970 = arith.select %968, %958, %969 : vector<6x16xi1>, vector<6x16xf32>
    %c2_i32_280 = arith.constant 2 : i32
    %971 = vector.broadcast %c2_i32_280 : i32 to vector<6x1xi32>
    %972 = arith.cmpi eq, %8, %971 : vector<6x1xi32>
    %cst_281 = arith.constant 0.000000e+00 : f32
    %973 = vector.shape_cast %972 : vector<6x1xi1> to vector<6x1xi1>
    %974 = vector.broadcast %973 : vector<6x1xi1> to vector<6x16xi1>
    %975 = vector.broadcast %cst_281 : f32 to vector<6x16xf32>
    %976 = arith.select %974, %958, %975 : vector<6x16xi1>, vector<6x16xf32>
    %977 = tpu.concatenate %964, %970, %976 in 1 : vector<6x16xf32>, vector<6x16xf32>, vector<6x16xf32> -> vector<6x48xf32>
    %cst_282 = arith.constant dense<0.000000e+00> : vector<2x48xf32>
    %978 = tpu.matmul %27, %977, %cst_282 {dimension_numbers = #tpu.dot_dimension_numbers<[1], [0], [0], [1], [0, 0, 1, 1], [], []>} : vector<2x6xf32>, vector<6x48xf32>, vector<2x48xf32> -> vector<2x48xf32>
    %cst_283 = arith.constant 0.000000e+00 : f32
    %979 = vector.broadcast %cst_283 : f32 to vector<2x3xf32>
    %c0_i32_284 = arith.constant 0 : i32
    %980 = vector.broadcast %c0_i32_284 : i32 to vector<2x3xi32>
    %cst_285 = arith.constant dense<0xFF800000> : vector<2xf32>
    %981 = vector.multi_reduction <maximumf>, %978, %cst_285 [1] : vector<2x48xf32> to vector<2xf32>
    %982 = vector.shape_cast %981 : vector<2xf32> to vector<2x1xf32>
    %983 = vector.broadcast %982 : vector<2x1xf32> to vector<2x48xf32>
    %984 = arith.cmpf oeq, %978, %983 : vector<2x48xf32>
    %c48_i32_286 = arith.constant 48 : i32
    %985 = vector.broadcast %c48_i32_286 : i32 to vector<2x48xi32>
    %986 = arith.select %984, %10, %985 : vector<2x48xi1>, vector<2x48xi32>
    %cst_287 = arith.constant dense<2147483647> : vector<2xi32>
    %987 = vector.multi_reduction <minsi>, %986, %cst_287 [1] : vector<2x48xi32> to vector<2xi32>
    %988 = vector.shape_cast %987 : vector<2xi32> to vector<2x1xi32>
    %c0_i32_288 = arith.constant 0 : i32
    %989 = vector.broadcast %c0_i32_288 : i32 to vector<2x3xi32>
    %990 = arith.cmpi eq, %11, %989 : vector<2x3xi32>
    %cst_289 = arith.constant 0.000000e+00 : f32
    %991 = vector.shape_cast %982 : vector<2x1xf32> to vector<2x1xf32>
    %992 = vector.broadcast %991 : vector<2x1xf32> to vector<2x3xf32>
    %993 = vector.broadcast %cst_289 : f32 to vector<2x3xf32>
    %994 = arith.select %990, %992, %993 : vector<2x3xi1>, vector<2x3xf32>
    %995 = arith.addf %979, %994 : vector<2x3xf32>
    %c0_i32_290 = arith.constant 0 : i32
    %996 = vector.broadcast %c0_i32_290 : i32 to vector<2x3xi32>
    %997 = arith.cmpi eq, %11, %996 : vector<2x3xi32>
    %c0_i32_291 = arith.constant 0 : i32
    %998 = vector.shape_cast %988 : vector<2x1xi32> to vector<2x1xi32>
    %999 = vector.broadcast %998 : vector<2x1xi32> to vector<2x3xi32>
    %1000 = vector.broadcast %c0_i32_291 : i32 to vector<2x3xi32>
    %1001 = arith.select %997, %999, %1000 : vector<2x3xi1>, vector<2x3xi32>
    %1002 = arith.addi %980, %1001 : vector<2x3xi32>
    %1003 = vector.broadcast %988 : vector<2x1xi32> to vector<2x48xi32>
    %1004 = arith.cmpi eq, %10, %1003 : vector<2x48xi32>
    %cst_292 = arith.constant -1.000000e+30 : f32
    %1005 = vector.broadcast %cst_292 : f32 to vector<2x48xf32>
    %1006 = arith.select %1004, %1005, %978 : vector<2x48xi1>, vector<2x48xf32>
    %cst_293 = arith.constant dense<0xFF800000> : vector<2xf32>
    %1007 = vector.multi_reduction <maximumf>, %1006, %cst_293 [1] : vector<2x48xf32> to vector<2xf32>
    %1008 = vector.shape_cast %1007 : vector<2xf32> to vector<2x1xf32>
    %1009 = vector.broadcast %1008 : vector<2x1xf32> to vector<2x48xf32>
    %1010 = arith.cmpf oeq, %1006, %1009 : vector<2x48xf32>
    %c48_i32_294 = arith.constant 48 : i32
    %1011 = vector.broadcast %c48_i32_294 : i32 to vector<2x48xi32>
    %1012 = arith.select %1010, %10, %1011 : vector<2x48xi1>, vector<2x48xi32>
    %cst_295 = arith.constant dense<2147483647> : vector<2xi32>
    %1013 = vector.multi_reduction <minsi>, %1012, %cst_295 [1] : vector<2x48xi32> to vector<2xi32>
    %1014 = vector.shape_cast %1013 : vector<2xi32> to vector<2x1xi32>
    %c1_i32_296 = arith.constant 1 : i32
    %1015 = vector.broadcast %c1_i32_296 : i32 to vector<2x3xi32>
    %1016 = arith.cmpi eq, %11, %1015 : vector<2x3xi32>
    %cst_297 = arith.constant 0.000000e+00 : f32
    %1017 = vector.shape_cast %1008 : vector<2x1xf32> to vector<2x1xf32>
    %1018 = vector.broadcast %1017 : vector<2x1xf32> to vector<2x3xf32>
    %1019 = vector.broadcast %cst_297 : f32 to vector<2x3xf32>
    %1020 = arith.select %1016, %1018, %1019 : vector<2x3xi1>, vector<2x3xf32>
    %1021 = arith.addf %995, %1020 : vector<2x3xf32>
    %c1_i32_298 = arith.constant 1 : i32
    %1022 = vector.broadcast %c1_i32_298 : i32 to vector<2x3xi32>
    %1023 = arith.cmpi eq, %11, %1022 : vector<2x3xi32>
    %c0_i32_299 = arith.constant 0 : i32
    %1024 = vector.shape_cast %1014 : vector<2x1xi32> to vector<2x1xi32>
    %1025 = vector.broadcast %1024 : vector<2x1xi32> to vector<2x3xi32>
    %1026 = vector.broadcast %c0_i32_299 : i32 to vector<2x3xi32>
    %1027 = arith.select %1023, %1025, %1026 : vector<2x3xi1>, vector<2x3xi32>
    %1028 = arith.addi %1002, %1027 : vector<2x3xi32>
    %1029 = vector.broadcast %1014 : vector<2x1xi32> to vector<2x48xi32>
    %1030 = arith.cmpi eq, %10, %1029 : vector<2x48xi32>
    %cst_300 = arith.constant -1.000000e+30 : f32
    %1031 = vector.broadcast %cst_300 : f32 to vector<2x48xf32>
    %1032 = arith.select %1030, %1031, %1006 : vector<2x48xi1>, vector<2x48xf32>
    %cst_301 = arith.constant dense<0xFF800000> : vector<2xf32>
    %1033 = vector.multi_reduction <maximumf>, %1032, %cst_301 [1] : vector<2x48xf32> to vector<2xf32>
    %1034 = vector.shape_cast %1033 : vector<2xf32> to vector<2x1xf32>
    %1035 = vector.broadcast %1034 : vector<2x1xf32> to vector<2x48xf32>
    %1036 = arith.cmpf oeq, %1032, %1035 : vector<2x48xf32>
    %c48_i32_302 = arith.constant 48 : i32
    %1037 = vector.broadcast %c48_i32_302 : i32 to vector<2x48xi32>
    %1038 = arith.select %1036, %10, %1037 : vector<2x48xi1>, vector<2x48xi32>
    %cst_303 = arith.constant dense<2147483647> : vector<2xi32>
    %1039 = vector.multi_reduction <minsi>, %1038, %cst_303 [1] : vector<2x48xi32> to vector<2xi32>
    %1040 = vector.shape_cast %1039 : vector<2xi32> to vector<2x1xi32>
    %c2_i32_304 = arith.constant 2 : i32
    %1041 = vector.broadcast %c2_i32_304 : i32 to vector<2x3xi32>
    %1042 = arith.cmpi eq, %11, %1041 : vector<2x3xi32>
    %cst_305 = arith.constant 0.000000e+00 : f32
    %1043 = vector.shape_cast %1034 : vector<2x1xf32> to vector<2x1xf32>
    %1044 = vector.broadcast %1043 : vector<2x1xf32> to vector<2x3xf32>
    %1045 = vector.broadcast %cst_305 : f32 to vector<2x3xf32>
    %1046 = arith.select %1042, %1044, %1045 : vector<2x3xi1>, vector<2x3xf32>
    %1047 = arith.addf %1021, %1046 : vector<2x3xf32>
    %c2_i32_306 = arith.constant 2 : i32
    %1048 = vector.broadcast %c2_i32_306 : i32 to vector<2x3xi32>
    %1049 = arith.cmpi eq, %11, %1048 : vector<2x3xi32>
    %c0_i32_307 = arith.constant 0 : i32
    %1050 = vector.shape_cast %1040 : vector<2x1xi32> to vector<2x1xi32>
    %1051 = vector.broadcast %1050 : vector<2x1xi32> to vector<2x3xi32>
    %1052 = vector.broadcast %c0_i32_307 : i32 to vector<2x3xi32>
    %1053 = arith.select %1049, %1051, %1052 : vector<2x3xi1>, vector<2x3xi32>
    %1054 = arith.addi %1028, %1053 : vector<2x3xi32>
    %c0_i32_308 = arith.constant 0 : i32
    %1055 = vector.broadcast %c0_i32_308 : i32 to vector<2x3xi32>
    %c16_i32_309 = arith.constant 16 : i32
    %1056 = vector.broadcast %c16_i32_309 : i32 to vector<2x3xi32>
    %1057 = arith.cmpi sge, %1054, %1056 : vector<2x3xi32>
    %1058 = arith.extui %1057 : vector<2x3xi1> to vector<2x3xi32>
    %1059 = arith.addi %1055, %1058 : vector<2x3xi32>
    %c32_i32_310 = arith.constant 32 : i32
    %1060 = vector.broadcast %c32_i32_310 : i32 to vector<2x3xi32>
    %1061 = arith.cmpi sge, %1054, %1060 : vector<2x3xi32>
    %1062 = arith.extui %1061 : vector<2x3xi1> to vector<2x3xi32>
    %1063 = arith.addi %1059, %1062 : vector<2x3xi32>
    %c16_i32_311 = arith.constant 16 : i32
    %1064 = vector.broadcast %c16_i32_311 : i32 to vector<2x3xi32>
    %1065 = arith.muli %1064, %1063 : vector<2x3xi32>
    %1066 = arith.subi %1054, %1065 : vector<2x3xi32>
    %1067 = arith.sitofp %1063 : vector<2x3xi32> to vector<2x3xf32>
    %1068 = arith.sitofp %1066 : vector<2x3xi32> to vector<2x3xf32>
    %1069 = tpu.concatenate %1067, %1068, %1047 in 1 : vector<2x3xf32>, vector<2x3xf32>, vector<2x3xf32> -> vector<2x9xf32>
    %cst_312 = arith.constant dense<0.000000e+00> : vector<6x9xf32>
    %1070 = tpu.matmul %40, %1069, %cst_312 {dimension_numbers = #tpu.dot_dimension_numbers<[1], [0], [0], [1], [0, 0, 1, 1], [], []>} : vector<6x2xf32>, vector<2x9xf32>, vector<6x9xf32> -> vector<6x9xf32>
    %1071 = vector.broadcast %8 : vector<6x1xi32> to vector<6x9xi32>
    %1072 = arith.cmpi eq, %12, %1071 : vector<6x9xi32>
    %cst_313 = arith.constant 0.000000e+00 : f32
    %1073 = vector.broadcast %cst_313 : f32 to vector<6x9xf32>
    %1074 = arith.select %1072, %1070, %1073 : vector<6x9xi1>, vector<6x9xf32>
    %cst_314 = arith.constant dense<0.000000e+00> : vector<6xf32>
    %1075 = vector.multi_reduction <add>, %1074, %cst_314 [1] : vector<6x9xf32> to vector<6xf32>
    %1076 = vector.shape_cast %1075 : vector<6xf32> to vector<6x1xf32>
    %c3_i32_315 = arith.constant 3 : i32
    %1077 = vector.broadcast %c3_i32_315 : i32 to vector<6x1xi32>
    %1078 = arith.addi %8, %1077 : vector<6x1xi32>
    %1079 = vector.broadcast %1078 : vector<6x1xi32> to vector<6x9xi32>
    %1080 = arith.cmpi eq, %12, %1079 : vector<6x9xi32>
    %cst_316 = arith.constant 0.000000e+00 : f32
    %1081 = vector.broadcast %cst_316 : f32 to vector<6x9xf32>
    %1082 = arith.select %1080, %1070, %1081 : vector<6x9xi1>, vector<6x9xf32>
    %cst_317 = arith.constant dense<0.000000e+00> : vector<6xf32>
    %1083 = vector.multi_reduction <add>, %1082, %cst_317 [1] : vector<6x9xf32> to vector<6xf32>
    %1084 = vector.shape_cast %1083 : vector<6xf32> to vector<6x1xf32>
    %c6_i32_318 = arith.constant 6 : i32
    %1085 = vector.broadcast %c6_i32_318 : i32 to vector<6x1xi32>
    %1086 = arith.addi %8, %1085 : vector<6x1xi32>
    %1087 = vector.broadcast %1086 : vector<6x1xi32> to vector<6x9xi32>
    %1088 = arith.cmpi eq, %12, %1087 : vector<6x9xi32>
    %cst_319 = arith.constant 0.000000e+00 : f32
    %1089 = vector.broadcast %cst_319 : f32 to vector<6x9xf32>
    %1090 = arith.select %1088, %1070, %1089 : vector<6x9xi1>, vector<6x9xf32>
    %cst_320 = arith.constant dense<0.000000e+00> : vector<6xf32>
    %1091 = vector.multi_reduction <add>, %1090, %cst_320 [1] : vector<6x9xf32> to vector<6xf32>
    %1092 = vector.shape_cast %1091 : vector<6xf32> to vector<6x1xf32>
    %1093 = arith.fptosi %1076 : vector<6x1xf32> to vector<6x1xi32>
    %1094 = vector.broadcast %1093 : vector<6x1xi32> to vector<6x6xi32>
    %1095 = arith.cmpi eq, %52, %1094 : vector<6x6xi32>
    %1096 = arith.extui %1095 : vector<6x6xi1> to vector<6x6xi32>
    %1097 = arith.sitofp %1096 : vector<6x6xi32> to vector<6x6xf32>
    %1098 = tpu.concatenate %941, %901 in 1 : vector<6x32xf32>, vector<6x9xf32> -> vector<6x41xf32>
    %cst_321 = arith.constant dense<0.000000e+00> : vector<6x41xf32>
    %1099 = tpu.matmul %1097, %1098, %cst_321 {dimension_numbers = #tpu.dot_dimension_numbers<[1], [0], [0], [1], [0, 0, 1, 1], [], []>} : vector<6x6xf32>, vector<6x41xf32>, vector<6x41xf32> -> vector<6x41xf32>
    %1100 = vector.extract_strided_slice %1099 {offsets = [0, 0], sizes = [6, 32], strides = [1, 1]} : vector<6x41xf32> to vector<6x32xf32>
    %c5_i32 = arith.constant 5 : i32
    %1101 = vector.broadcast %c5_i32 : i32 to vector<6x9xi32>
    %1102 = arith.cmpi eq, %13, %1101 : vector<6x9xi32>
    %1103 = vector.extract_strided_slice %1099 {offsets = [0, 32], sizes = [6, 9], strides = [1, 1]} : vector<6x41xf32> to vector<6x9xf32>
    %1104 = vector.shape_cast %1084 : vector<6x1xf32> to vector<6x1xf32>
    %1105 = vector.broadcast %1104 : vector<6x1xf32> to vector<6x9xf32>
    %1106 = arith.select %1102, %1105, %1103 : vector<6x9xi1>, vector<6x9xf32>
    %1107 = vector.broadcast %927 : vector<1x1xf32> to vector<6x32xf32>
    %1108 = arith.mulf %1107, %896 : vector<6x32xf32>
    %1109 = vector.broadcast %929 : vector<1x1xf32> to vector<6x32xf32>
    %1110 = arith.mulf %1109, %1100 : vector<6x32xf32>
    %1111 = arith.addf %1108, %1110 : vector<6x32xf32>
    %1112 = vector.broadcast %927 : vector<1x1xf32> to vector<6x9xf32>
    %1113 = arith.mulf %1112, %901 : vector<6x9xf32>
    %1114 = vector.broadcast %929 : vector<1x1xf32> to vector<6x9xf32>
    %1115 = arith.mulf %1114, %1106 : vector<6x9xf32>
    %1116 = arith.addf %1113, %1115 : vector<6x9xf32>
    %1117 = vector.broadcast %927 : vector<1x1xf32> to vector<6x1xf32>
    %1118 = arith.mulf %1117, %906 : vector<6x1xf32>
    %1119 = vector.broadcast %929 : vector<1x1xf32> to vector<6x1xf32>
    %1120 = arith.mulf %1119, %1092 : vector<6x1xf32>
    %1121 = arith.addf %1118, %1120 : vector<6x1xf32>
    %1122 = vector.broadcast %927 : vector<1x1xf32> to vector<6x1xf32>
    %1123 = arith.mulf %1122, %911 : vector<6x1xf32>
    %1124 = vector.broadcast %929 : vector<1x1xf32> to vector<6x1xf32>
    %1125 = arith.mulf %1124, %1084 : vector<6x1xf32>
    %1126 = arith.addf %1123, %1125 : vector<6x1xf32>
    %cst_322 = arith.constant 1.000000e+00 : f32
    %1127 = vector.broadcast %cst_322 : f32 to vector<6x1xf32>
    %1128 = arith.cmpf oeq, %1084, %1127 : vector<6x1xf32>
    %1129 = arith.extui %1128 : vector<6x1xi1> to vector<6x1xi32>
    %1130 = arith.sitofp %1129 : vector<6x1xi32> to vector<6x1xf32>
    %1131 = arith.maximumf %921, %1130 : vector<6x1xf32>
    %1132 = vector.broadcast %927 : vector<1x1xf32> to vector<6x1xf32>
    %1133 = arith.mulf %1132, %921 : vector<6x1xf32>
    %1134 = vector.broadcast %929 : vector<1x1xf32> to vector<6x1xf32>
    %1135 = arith.mulf %1134, %1131 : vector<6x1xf32>
    %1136 = arith.addf %1133, %1135 : vector<6x1xf32>
    %cst_323 = arith.constant dense<0.000000e+00> : vector<1xf32>
    %1137 = vector.multi_reduction <add>, %1136, %cst_323 [0] : vector<6x1xf32> to vector<1xf32>
    %1138 = vector.shape_cast %1137 : vector<1xf32> to vector<1x1xf32>
    %cst_324 = arith.constant 6.000000e+00 : f32
    %1139 = vector.broadcast %cst_324 : f32 to vector<1x1xf32>
    %1140 = arith.cmpf oge, %1138, %1139 : vector<1x1xf32>
    %1141 = arith.extui %1140 : vector<1x1xi1> to vector<1x1xi32>
    %1142 = arith.sitofp %1141 : vector<1x1xi32> to vector<1x1xf32>
    %cst_325 = arith.constant 1.000000e+00 : f32
    %1143 = vector.broadcast %cst_325 : f32 to vector<1x1xf32>
    %1144 = arith.subf %1143, %1142 : vector<1x1xf32>
    %1145 = arith.fptosi %1126 : vector<6x1xf32> to vector<6x1xi32>
    %1146 = vector.broadcast %1145 : vector<6x1xi32> to vector<6x16xi32>
    %1147 = arith.cmpi eq, %9, %1146 : vector<6x16xi32>
    %1148 = arith.extui %1147 : vector<6x16xi1> to vector<6x16xi32>
    %1149 = arith.sitofp %1148 : vector<6x16xi32> to vector<6x16xf32>
    %1150 = tpu.concatenate %1149, %1111 in 1 : vector<6x16xf32>, vector<6x32xf32> -> vector<6x48xf32>
    %c0_326 = arith.constant 0 : index
    %c0_327 = arith.constant 0 : index
    %1151 = vector.load %arg1[%c0_326, %c0_327] : memref<48x32xf32, #tpu.memory_space<vmem>>, vector<48x32xf32>
    %cst_328 = arith.constant dense<0.000000e+00> : vector<6x32xf32>
    %1152 = tpu.matmul %1150, %1151, %cst_328 {dimension_numbers = #tpu.dot_dimension_numbers<[1], [0], [0], [1], [0, 0, 1, 1], [], []>} : vector<6x48xf32>, vector<48x32xf32>, vector<6x32xf32> -> vector<6x32xf32>
    %c0_329 = arith.constant 0 : index
    %c0_330 = arith.constant 0 : index
    %1153 = vector.load %arg2[%c0_329, %c0_330] : memref<1x32xf32, #tpu.memory_space<vmem>>, vector<1x32xf32>
    %1154 = vector.broadcast %1153 : vector<1x32xf32> to vector<6x32xf32>
    %1155 = arith.addf %1152, %1154 : vector<6x32xf32>
    %1156 = math.tanh %1155 : vector<6x32xf32>
    %c0_331 = arith.constant 0 : index
    %c0_332 = arith.constant 0 : index
    %1157 = vector.load %arg3[%c0_331, %c0_332] : memref<32x16xf32, #tpu.memory_space<vmem>>, vector<32x16xf32>
    %cst_333 = arith.constant dense<0.000000e+00> : vector<6x16xf32>
    %1158 = tpu.matmul %1156, %1157, %cst_333 {dimension_numbers = #tpu.dot_dimension_numbers<[1], [0], [0], [1], [0, 0, 1, 1], [], []>} : vector<6x32xf32>, vector<32x16xf32>, vector<6x16xf32> -> vector<6x16xf32>
    %c0_334 = arith.constant 0 : index
    %c0_335 = arith.constant 0 : index
    %1159 = vector.load %arg4[%c0_334, %c0_335] : memref<1x16xf32, #tpu.memory_space<vmem>>, vector<1x16xf32>
    %1160 = vector.broadcast %1159 : vector<1x16xf32> to vector<6x16xf32>
    %1161 = arith.addf %1158, %1160 : vector<6x16xf32>
    %cst_336 = arith.constant dense<0xFF800000> : vector<6xf32>
    %1162 = vector.multi_reduction <maximumf>, %1161, %cst_336 [1] : vector<6x16xf32> to vector<6xf32>
    %1163 = vector.shape_cast %1162 : vector<6xf32> to vector<6x1xf32>
    %1164 = vector.broadcast %1163 : vector<6x1xf32> to vector<6x16xf32>
    %1165 = arith.subf %1161, %1164 : vector<6x16xf32>
    %1166 = math.exp %1165 : vector<6x16xf32>
    %cst_337 = arith.constant dense<0.000000e+00> : vector<6xf32>
    %1167 = vector.multi_reduction <add>, %1166, %cst_337 [1] : vector<6x16xf32> to vector<6xf32>
    %1168 = vector.shape_cast %1167 : vector<6xf32> to vector<6x1xf32>
    %1169 = math.log %1168 : vector<6x1xf32>
    %1170 = vector.broadcast %1169 : vector<6x1xf32> to vector<6x16xf32>
    %1171 = arith.subf %1165, %1170 : vector<6x16xf32>
    %1172 = vector.broadcast %1121 : vector<6x1xf32> to vector<6x16xf32>
    %1173 = arith.addf %1172, %1171 : vector<6x16xf32>
    %c0_i32_338 = arith.constant 0 : i32
    %1174 = vector.broadcast %c0_i32_338 : i32 to vector<6x1xi32>
    %1175 = arith.cmpi eq, %8, %1174 : vector<6x1xi32>
    %cst_339 = arith.constant 0.000000e+00 : f32
    %1176 = vector.shape_cast %1175 : vector<6x1xi1> to vector<6x1xi1>
    %1177 = vector.broadcast %1176 : vector<6x1xi1> to vector<6x16xi1>
    %1178 = vector.broadcast %cst_339 : f32 to vector<6x16xf32>
    %1179 = arith.select %1177, %1173, %1178 : vector<6x16xi1>, vector<6x16xf32>
    %c1_i32_340 = arith.constant 1 : i32
    %1180 = vector.broadcast %c1_i32_340 : i32 to vector<6x1xi32>
    %1181 = arith.cmpi eq, %8, %1180 : vector<6x1xi32>
    %cst_341 = arith.constant 0.000000e+00 : f32
    %1182 = vector.shape_cast %1181 : vector<6x1xi1> to vector<6x1xi1>
    %1183 = vector.broadcast %1182 : vector<6x1xi1> to vector<6x16xi1>
    %1184 = vector.broadcast %cst_341 : f32 to vector<6x16xf32>
    %1185 = arith.select %1183, %1173, %1184 : vector<6x16xi1>, vector<6x16xf32>
    %c2_i32_342 = arith.constant 2 : i32
    %1186 = vector.broadcast %c2_i32_342 : i32 to vector<6x1xi32>
    %1187 = arith.cmpi eq, %8, %1186 : vector<6x1xi32>
    %cst_343 = arith.constant 0.000000e+00 : f32
    %1188 = vector.shape_cast %1187 : vector<6x1xi1> to vector<6x1xi1>
    %1189 = vector.broadcast %1188 : vector<6x1xi1> to vector<6x16xi1>
    %1190 = vector.broadcast %cst_343 : f32 to vector<6x16xf32>
    %1191 = arith.select %1189, %1173, %1190 : vector<6x16xi1>, vector<6x16xf32>
    %1192 = tpu.concatenate %1179, %1185, %1191 in 1 : vector<6x16xf32>, vector<6x16xf32>, vector<6x16xf32> -> vector<6x48xf32>
    %cst_344 = arith.constant dense<0.000000e+00> : vector<2x48xf32>
    %1193 = tpu.matmul %27, %1192, %cst_344 {dimension_numbers = #tpu.dot_dimension_numbers<[1], [0], [0], [1], [0, 0, 1, 1], [], []>} : vector<2x6xf32>, vector<6x48xf32>, vector<2x48xf32> -> vector<2x48xf32>
    %cst_345 = arith.constant 0.000000e+00 : f32
    %1194 = vector.broadcast %cst_345 : f32 to vector<2x3xf32>
    %c0_i32_346 = arith.constant 0 : i32
    %1195 = vector.broadcast %c0_i32_346 : i32 to vector<2x3xi32>
    %cst_347 = arith.constant dense<0xFF800000> : vector<2xf32>
    %1196 = vector.multi_reduction <maximumf>, %1193, %cst_347 [1] : vector<2x48xf32> to vector<2xf32>
    %1197 = vector.shape_cast %1196 : vector<2xf32> to vector<2x1xf32>
    %1198 = vector.broadcast %1197 : vector<2x1xf32> to vector<2x48xf32>
    %1199 = arith.cmpf oeq, %1193, %1198 : vector<2x48xf32>
    %c48_i32_348 = arith.constant 48 : i32
    %1200 = vector.broadcast %c48_i32_348 : i32 to vector<2x48xi32>
    %1201 = arith.select %1199, %10, %1200 : vector<2x48xi1>, vector<2x48xi32>
    %cst_349 = arith.constant dense<2147483647> : vector<2xi32>
    %1202 = vector.multi_reduction <minsi>, %1201, %cst_349 [1] : vector<2x48xi32> to vector<2xi32>
    %1203 = vector.shape_cast %1202 : vector<2xi32> to vector<2x1xi32>
    %c0_i32_350 = arith.constant 0 : i32
    %1204 = vector.broadcast %c0_i32_350 : i32 to vector<2x3xi32>
    %1205 = arith.cmpi eq, %11, %1204 : vector<2x3xi32>
    %cst_351 = arith.constant 0.000000e+00 : f32
    %1206 = vector.shape_cast %1197 : vector<2x1xf32> to vector<2x1xf32>
    %1207 = vector.broadcast %1206 : vector<2x1xf32> to vector<2x3xf32>
    %1208 = vector.broadcast %cst_351 : f32 to vector<2x3xf32>
    %1209 = arith.select %1205, %1207, %1208 : vector<2x3xi1>, vector<2x3xf32>
    %1210 = arith.addf %1194, %1209 : vector<2x3xf32>
    %c0_i32_352 = arith.constant 0 : i32
    %1211 = vector.broadcast %c0_i32_352 : i32 to vector<2x3xi32>
    %1212 = arith.cmpi eq, %11, %1211 : vector<2x3xi32>
    %c0_i32_353 = arith.constant 0 : i32
    %1213 = vector.shape_cast %1203 : vector<2x1xi32> to vector<2x1xi32>
    %1214 = vector.broadcast %1213 : vector<2x1xi32> to vector<2x3xi32>
    %1215 = vector.broadcast %c0_i32_353 : i32 to vector<2x3xi32>
    %1216 = arith.select %1212, %1214, %1215 : vector<2x3xi1>, vector<2x3xi32>
    %1217 = arith.addi %1195, %1216 : vector<2x3xi32>
    %1218 = vector.broadcast %1203 : vector<2x1xi32> to vector<2x48xi32>
    %1219 = arith.cmpi eq, %10, %1218 : vector<2x48xi32>
    %cst_354 = arith.constant -1.000000e+30 : f32
    %1220 = vector.broadcast %cst_354 : f32 to vector<2x48xf32>
    %1221 = arith.select %1219, %1220, %1193 : vector<2x48xi1>, vector<2x48xf32>
    %cst_355 = arith.constant dense<0xFF800000> : vector<2xf32>
    %1222 = vector.multi_reduction <maximumf>, %1221, %cst_355 [1] : vector<2x48xf32> to vector<2xf32>
    %1223 = vector.shape_cast %1222 : vector<2xf32> to vector<2x1xf32>
    %1224 = vector.broadcast %1223 : vector<2x1xf32> to vector<2x48xf32>
    %1225 = arith.cmpf oeq, %1221, %1224 : vector<2x48xf32>
    %c48_i32_356 = arith.constant 48 : i32
    %1226 = vector.broadcast %c48_i32_356 : i32 to vector<2x48xi32>
    %1227 = arith.select %1225, %10, %1226 : vector<2x48xi1>, vector<2x48xi32>
    %cst_357 = arith.constant dense<2147483647> : vector<2xi32>
    %1228 = vector.multi_reduction <minsi>, %1227, %cst_357 [1] : vector<2x48xi32> to vector<2xi32>
    %1229 = vector.shape_cast %1228 : vector<2xi32> to vector<2x1xi32>
    %c1_i32_358 = arith.constant 1 : i32
    %1230 = vector.broadcast %c1_i32_358 : i32 to vector<2x3xi32>
    %1231 = arith.cmpi eq, %11, %1230 : vector<2x3xi32>
    %cst_359 = arith.constant 0.000000e+00 : f32
    %1232 = vector.shape_cast %1223 : vector<2x1xf32> to vector<2x1xf32>
    %1233 = vector.broadcast %1232 : vector<2x1xf32> to vector<2x3xf32>
    %1234 = vector.broadcast %cst_359 : f32 to vector<2x3xf32>
    %1235 = arith.select %1231, %1233, %1234 : vector<2x3xi1>, vector<2x3xf32>
    %1236 = arith.addf %1210, %1235 : vector<2x3xf32>
    %c1_i32_360 = arith.constant 1 : i32
    %1237 = vector.broadcast %c1_i32_360 : i32 to vector<2x3xi32>
    %1238 = arith.cmpi eq, %11, %1237 : vector<2x3xi32>
    %c0_i32_361 = arith.constant 0 : i32
    %1239 = vector.shape_cast %1229 : vector<2x1xi32> to vector<2x1xi32>
    %1240 = vector.broadcast %1239 : vector<2x1xi32> to vector<2x3xi32>
    %1241 = vector.broadcast %c0_i32_361 : i32 to vector<2x3xi32>
    %1242 = arith.select %1238, %1240, %1241 : vector<2x3xi1>, vector<2x3xi32>
    %1243 = arith.addi %1217, %1242 : vector<2x3xi32>
    %1244 = vector.broadcast %1229 : vector<2x1xi32> to vector<2x48xi32>
    %1245 = arith.cmpi eq, %10, %1244 : vector<2x48xi32>
    %cst_362 = arith.constant -1.000000e+30 : f32
    %1246 = vector.broadcast %cst_362 : f32 to vector<2x48xf32>
    %1247 = arith.select %1245, %1246, %1221 : vector<2x48xi1>, vector<2x48xf32>
    %cst_363 = arith.constant dense<0xFF800000> : vector<2xf32>
    %1248 = vector.multi_reduction <maximumf>, %1247, %cst_363 [1] : vector<2x48xf32> to vector<2xf32>
    %1249 = vector.shape_cast %1248 : vector<2xf32> to vector<2x1xf32>
    %1250 = vector.broadcast %1249 : vector<2x1xf32> to vector<2x48xf32>
    %1251 = arith.cmpf oeq, %1247, %1250 : vector<2x48xf32>
    %c48_i32_364 = arith.constant 48 : i32
    %1252 = vector.broadcast %c48_i32_364 : i32 to vector<2x48xi32>
    %1253 = arith.select %1251, %10, %1252 : vector<2x48xi1>, vector<2x48xi32>
    %cst_365 = arith.constant dense<2147483647> : vector<2xi32>
    %1254 = vector.multi_reduction <minsi>, %1253, %cst_365 [1] : vector<2x48xi32> to vector<2xi32>
    %1255 = vector.shape_cast %1254 : vector<2xi32> to vector<2x1xi32>
    %c2_i32_366 = arith.constant 2 : i32
    %1256 = vector.broadcast %c2_i32_366 : i32 to vector<2x3xi32>
    %1257 = arith.cmpi eq, %11, %1256 : vector<2x3xi32>
    %cst_367 = arith.constant 0.000000e+00 : f32
    %1258 = vector.shape_cast %1249 : vector<2x1xf32> to vector<2x1xf32>
    %1259 = vector.broadcast %1258 : vector<2x1xf32> to vector<2x3xf32>
    %1260 = vector.broadcast %cst_367 : f32 to vector<2x3xf32>
    %1261 = arith.select %1257, %1259, %1260 : vector<2x3xi1>, vector<2x3xf32>
    %1262 = arith.addf %1236, %1261 : vector<2x3xf32>
    %c2_i32_368 = arith.constant 2 : i32
    %1263 = vector.broadcast %c2_i32_368 : i32 to vector<2x3xi32>
    %1264 = arith.cmpi eq, %11, %1263 : vector<2x3xi32>
    %c0_i32_369 = arith.constant 0 : i32
    %1265 = vector.shape_cast %1255 : vector<2x1xi32> to vector<2x1xi32>
    %1266 = vector.broadcast %1265 : vector<2x1xi32> to vector<2x3xi32>
    %1267 = vector.broadcast %c0_i32_369 : i32 to vector<2x3xi32>
    %1268 = arith.select %1264, %1266, %1267 : vector<2x3xi1>, vector<2x3xi32>
    %1269 = arith.addi %1243, %1268 : vector<2x3xi32>
    %c0_i32_370 = arith.constant 0 : i32
    %1270 = vector.broadcast %c0_i32_370 : i32 to vector<2x3xi32>
    %c16_i32_371 = arith.constant 16 : i32
    %1271 = vector.broadcast %c16_i32_371 : i32 to vector<2x3xi32>
    %1272 = arith.cmpi sge, %1269, %1271 : vector<2x3xi32>
    %1273 = arith.extui %1272 : vector<2x3xi1> to vector<2x3xi32>
    %1274 = arith.addi %1270, %1273 : vector<2x3xi32>
    %c32_i32_372 = arith.constant 32 : i32
    %1275 = vector.broadcast %c32_i32_372 : i32 to vector<2x3xi32>
    %1276 = arith.cmpi sge, %1269, %1275 : vector<2x3xi32>
    %1277 = arith.extui %1276 : vector<2x3xi1> to vector<2x3xi32>
    %1278 = arith.addi %1274, %1277 : vector<2x3xi32>
    %c16_i32_373 = arith.constant 16 : i32
    %1279 = vector.broadcast %c16_i32_373 : i32 to vector<2x3xi32>
    %1280 = arith.muli %1279, %1278 : vector<2x3xi32>
    %1281 = arith.subi %1269, %1280 : vector<2x3xi32>
    %1282 = arith.sitofp %1278 : vector<2x3xi32> to vector<2x3xf32>
    %1283 = arith.sitofp %1281 : vector<2x3xi32> to vector<2x3xf32>
    %1284 = tpu.concatenate %1282, %1283, %1262 in 1 : vector<2x3xf32>, vector<2x3xf32>, vector<2x3xf32> -> vector<2x9xf32>
    %cst_374 = arith.constant dense<0.000000e+00> : vector<6x9xf32>
    %1285 = tpu.matmul %40, %1284, %cst_374 {dimension_numbers = #tpu.dot_dimension_numbers<[1], [0], [0], [1], [0, 0, 1, 1], [], []>} : vector<6x2xf32>, vector<2x9xf32>, vector<6x9xf32> -> vector<6x9xf32>
    %1286 = vector.broadcast %8 : vector<6x1xi32> to vector<6x9xi32>
    %1287 = arith.cmpi eq, %12, %1286 : vector<6x9xi32>
    %cst_375 = arith.constant 0.000000e+00 : f32
    %1288 = vector.broadcast %cst_375 : f32 to vector<6x9xf32>
    %1289 = arith.select %1287, %1285, %1288 : vector<6x9xi1>, vector<6x9xf32>
    %cst_376 = arith.constant dense<0.000000e+00> : vector<6xf32>
    %1290 = vector.multi_reduction <add>, %1289, %cst_376 [1] : vector<6x9xf32> to vector<6xf32>
    %1291 = vector.shape_cast %1290 : vector<6xf32> to vector<6x1xf32>
    %c3_i32_377 = arith.constant 3 : i32
    %1292 = vector.broadcast %c3_i32_377 : i32 to vector<6x1xi32>
    %1293 = arith.addi %8, %1292 : vector<6x1xi32>
    %1294 = vector.broadcast %1293 : vector<6x1xi32> to vector<6x9xi32>
    %1295 = arith.cmpi eq, %12, %1294 : vector<6x9xi32>
    %cst_378 = arith.constant 0.000000e+00 : f32
    %1296 = vector.broadcast %cst_378 : f32 to vector<6x9xf32>
    %1297 = arith.select %1295, %1285, %1296 : vector<6x9xi1>, vector<6x9xf32>
    %cst_379 = arith.constant dense<0.000000e+00> : vector<6xf32>
    %1298 = vector.multi_reduction <add>, %1297, %cst_379 [1] : vector<6x9xf32> to vector<6xf32>
    %1299 = vector.shape_cast %1298 : vector<6xf32> to vector<6x1xf32>
    %c6_i32_380 = arith.constant 6 : i32
    %1300 = vector.broadcast %c6_i32_380 : i32 to vector<6x1xi32>
    %1301 = arith.addi %8, %1300 : vector<6x1xi32>
    %1302 = vector.broadcast %1301 : vector<6x1xi32> to vector<6x9xi32>
    %1303 = arith.cmpi eq, %12, %1302 : vector<6x9xi32>
    %cst_381 = arith.constant 0.000000e+00 : f32
    %1304 = vector.broadcast %cst_381 : f32 to vector<6x9xf32>
    %1305 = arith.select %1303, %1285, %1304 : vector<6x9xi1>, vector<6x9xf32>
    %cst_382 = arith.constant dense<0.000000e+00> : vector<6xf32>
    %1306 = vector.multi_reduction <add>, %1305, %cst_382 [1] : vector<6x9xf32> to vector<6xf32>
    %1307 = vector.shape_cast %1306 : vector<6xf32> to vector<6x1xf32>
    %1308 = arith.fptosi %1291 : vector<6x1xf32> to vector<6x1xi32>
    %1309 = vector.broadcast %1308 : vector<6x1xi32> to vector<6x6xi32>
    %1310 = arith.cmpi eq, %52, %1309 : vector<6x6xi32>
    %1311 = arith.extui %1310 : vector<6x6xi1> to vector<6x6xi32>
    %1312 = arith.sitofp %1311 : vector<6x6xi32> to vector<6x6xf32>
    %1313 = tpu.concatenate %1156, %1116 in 1 : vector<6x32xf32>, vector<6x9xf32> -> vector<6x41xf32>
    %cst_383 = arith.constant dense<0.000000e+00> : vector<6x41xf32>
    %1314 = tpu.matmul %1312, %1313, %cst_383 {dimension_numbers = #tpu.dot_dimension_numbers<[1], [0], [0], [1], [0, 0, 1, 1], [], []>} : vector<6x6xf32>, vector<6x41xf32>, vector<6x41xf32> -> vector<6x41xf32>
    %1315 = vector.extract_strided_slice %1314 {offsets = [0, 0], sizes = [6, 32], strides = [1, 1]} : vector<6x41xf32> to vector<6x32xf32>
    %c6_i32_384 = arith.constant 6 : i32
    %1316 = vector.broadcast %c6_i32_384 : i32 to vector<6x9xi32>
    %1317 = arith.cmpi eq, %13, %1316 : vector<6x9xi32>
    %1318 = vector.extract_strided_slice %1314 {offsets = [0, 32], sizes = [6, 9], strides = [1, 1]} : vector<6x41xf32> to vector<6x9xf32>
    %1319 = vector.shape_cast %1299 : vector<6x1xf32> to vector<6x1xf32>
    %1320 = vector.broadcast %1319 : vector<6x1xf32> to vector<6x9xf32>
    %1321 = arith.select %1317, %1320, %1318 : vector<6x9xi1>, vector<6x9xf32>
    %1322 = vector.broadcast %1142 : vector<1x1xf32> to vector<6x32xf32>
    %1323 = arith.mulf %1322, %1111 : vector<6x32xf32>
    %1324 = vector.broadcast %1144 : vector<1x1xf32> to vector<6x32xf32>
    %1325 = arith.mulf %1324, %1315 : vector<6x32xf32>
    %1326 = arith.addf %1323, %1325 : vector<6x32xf32>
    %1327 = vector.broadcast %1142 : vector<1x1xf32> to vector<6x9xf32>
    %1328 = arith.mulf %1327, %1116 : vector<6x9xf32>
    %1329 = vector.broadcast %1144 : vector<1x1xf32> to vector<6x9xf32>
    %1330 = arith.mulf %1329, %1321 : vector<6x9xf32>
    %1331 = arith.addf %1328, %1330 : vector<6x9xf32>
    %1332 = vector.broadcast %1142 : vector<1x1xf32> to vector<6x1xf32>
    %1333 = arith.mulf %1332, %1121 : vector<6x1xf32>
    %1334 = vector.broadcast %1144 : vector<1x1xf32> to vector<6x1xf32>
    %1335 = arith.mulf %1334, %1307 : vector<6x1xf32>
    %1336 = arith.addf %1333, %1335 : vector<6x1xf32>
    %1337 = vector.broadcast %1142 : vector<1x1xf32> to vector<6x1xf32>
    %1338 = arith.mulf %1337, %1126 : vector<6x1xf32>
    %1339 = vector.broadcast %1144 : vector<1x1xf32> to vector<6x1xf32>
    %1340 = arith.mulf %1339, %1299 : vector<6x1xf32>
    %1341 = arith.addf %1338, %1340 : vector<6x1xf32>
    %cst_385 = arith.constant 1.000000e+00 : f32
    %1342 = vector.broadcast %cst_385 : f32 to vector<6x1xf32>
    %1343 = arith.cmpf oeq, %1299, %1342 : vector<6x1xf32>
    %1344 = arith.extui %1343 : vector<6x1xi1> to vector<6x1xi32>
    %1345 = arith.sitofp %1344 : vector<6x1xi32> to vector<6x1xf32>
    %1346 = arith.maximumf %1136, %1345 : vector<6x1xf32>
    %1347 = vector.broadcast %1142 : vector<1x1xf32> to vector<6x1xf32>
    %1348 = arith.mulf %1347, %1136 : vector<6x1xf32>
    %1349 = vector.broadcast %1144 : vector<1x1xf32> to vector<6x1xf32>
    %1350 = arith.mulf %1349, %1346 : vector<6x1xf32>
    %1351 = arith.addf %1348, %1350 : vector<6x1xf32>
    %cst_386 = arith.constant dense<0.000000e+00> : vector<1xf32>
    %1352 = vector.multi_reduction <add>, %1351, %cst_386 [0] : vector<6x1xf32> to vector<1xf32>
    %1353 = vector.shape_cast %1352 : vector<1xf32> to vector<1x1xf32>
    %cst_387 = arith.constant 6.000000e+00 : f32
    %1354 = vector.broadcast %cst_387 : f32 to vector<1x1xf32>
    %1355 = arith.cmpf oge, %1353, %1354 : vector<1x1xf32>
    %1356 = arith.extui %1355 : vector<1x1xi1> to vector<1x1xi32>
    %1357 = arith.sitofp %1356 : vector<1x1xi32> to vector<1x1xf32>
    %cst_388 = arith.constant 1.000000e+00 : f32
    %1358 = vector.broadcast %cst_388 : f32 to vector<1x1xf32>
    %1359 = arith.subf %1358, %1357 : vector<1x1xf32>
    %1360 = arith.fptosi %1341 : vector<6x1xf32> to vector<6x1xi32>
    %1361 = vector.broadcast %1360 : vector<6x1xi32> to vector<6x16xi32>
    %1362 = arith.cmpi eq, %9, %1361 : vector<6x16xi32>
    %1363 = arith.extui %1362 : vector<6x16xi1> to vector<6x16xi32>
    %1364 = arith.sitofp %1363 : vector<6x16xi32> to vector<6x16xf32>
    %1365 = tpu.concatenate %1364, %1326 in 1 : vector<6x16xf32>, vector<6x32xf32> -> vector<6x48xf32>
    %c0_389 = arith.constant 0 : index
    %c0_390 = arith.constant 0 : index
    %1366 = vector.load %arg1[%c0_389, %c0_390] : memref<48x32xf32, #tpu.memory_space<vmem>>, vector<48x32xf32>
    %cst_391 = arith.constant dense<0.000000e+00> : vector<6x32xf32>
    %1367 = tpu.matmul %1365, %1366, %cst_391 {dimension_numbers = #tpu.dot_dimension_numbers<[1], [0], [0], [1], [0, 0, 1, 1], [], []>} : vector<6x48xf32>, vector<48x32xf32>, vector<6x32xf32> -> vector<6x32xf32>
    %c0_392 = arith.constant 0 : index
    %c0_393 = arith.constant 0 : index
    %1368 = vector.load %arg2[%c0_392, %c0_393] : memref<1x32xf32, #tpu.memory_space<vmem>>, vector<1x32xf32>
    %1369 = vector.broadcast %1368 : vector<1x32xf32> to vector<6x32xf32>
    %1370 = arith.addf %1367, %1369 : vector<6x32xf32>
    %1371 = math.tanh %1370 : vector<6x32xf32>
    %c0_394 = arith.constant 0 : index
    %c0_395 = arith.constant 0 : index
    %1372 = vector.load %arg3[%c0_394, %c0_395] : memref<32x16xf32, #tpu.memory_space<vmem>>, vector<32x16xf32>
    %cst_396 = arith.constant dense<0.000000e+00> : vector<6x16xf32>
    %1373 = tpu.matmul %1371, %1372, %cst_396 {dimension_numbers = #tpu.dot_dimension_numbers<[1], [0], [0], [1], [0, 0, 1, 1], [], []>} : vector<6x32xf32>, vector<32x16xf32>, vector<6x16xf32> -> vector<6x16xf32>
    %c0_397 = arith.constant 0 : index
    %c0_398 = arith.constant 0 : index
    %1374 = vector.load %arg4[%c0_397, %c0_398] : memref<1x16xf32, #tpu.memory_space<vmem>>, vector<1x16xf32>
    %1375 = vector.broadcast %1374 : vector<1x16xf32> to vector<6x16xf32>
    %1376 = arith.addf %1373, %1375 : vector<6x16xf32>
    %cst_399 = arith.constant dense<0xFF800000> : vector<6xf32>
    %1377 = vector.multi_reduction <maximumf>, %1376, %cst_399 [1] : vector<6x16xf32> to vector<6xf32>
    %1378 = vector.shape_cast %1377 : vector<6xf32> to vector<6x1xf32>
    %1379 = vector.broadcast %1378 : vector<6x1xf32> to vector<6x16xf32>
    %1380 = arith.subf %1376, %1379 : vector<6x16xf32>
    %1381 = math.exp %1380 : vector<6x16xf32>
    %cst_400 = arith.constant dense<0.000000e+00> : vector<6xf32>
    %1382 = vector.multi_reduction <add>, %1381, %cst_400 [1] : vector<6x16xf32> to vector<6xf32>
    %1383 = vector.shape_cast %1382 : vector<6xf32> to vector<6x1xf32>
    %1384 = math.log %1383 : vector<6x1xf32>
    %1385 = vector.broadcast %1384 : vector<6x1xf32> to vector<6x16xf32>
    %1386 = arith.subf %1380, %1385 : vector<6x16xf32>
    %1387 = vector.broadcast %1336 : vector<6x1xf32> to vector<6x16xf32>
    %1388 = arith.addf %1387, %1386 : vector<6x16xf32>
    %c0_i32_401 = arith.constant 0 : i32
    %1389 = vector.broadcast %c0_i32_401 : i32 to vector<6x1xi32>
    %1390 = arith.cmpi eq, %8, %1389 : vector<6x1xi32>
    %cst_402 = arith.constant 0.000000e+00 : f32
    %1391 = vector.shape_cast %1390 : vector<6x1xi1> to vector<6x1xi1>
    %1392 = vector.broadcast %1391 : vector<6x1xi1> to vector<6x16xi1>
    %1393 = vector.broadcast %cst_402 : f32 to vector<6x16xf32>
    %1394 = arith.select %1392, %1388, %1393 : vector<6x16xi1>, vector<6x16xf32>
    %c1_i32_403 = arith.constant 1 : i32
    %1395 = vector.broadcast %c1_i32_403 : i32 to vector<6x1xi32>
    %1396 = arith.cmpi eq, %8, %1395 : vector<6x1xi32>
    %cst_404 = arith.constant 0.000000e+00 : f32
    %1397 = vector.shape_cast %1396 : vector<6x1xi1> to vector<6x1xi1>
    %1398 = vector.broadcast %1397 : vector<6x1xi1> to vector<6x16xi1>
    %1399 = vector.broadcast %cst_404 : f32 to vector<6x16xf32>
    %1400 = arith.select %1398, %1388, %1399 : vector<6x16xi1>, vector<6x16xf32>
    %c2_i32_405 = arith.constant 2 : i32
    %1401 = vector.broadcast %c2_i32_405 : i32 to vector<6x1xi32>
    %1402 = arith.cmpi eq, %8, %1401 : vector<6x1xi32>
    %cst_406 = arith.constant 0.000000e+00 : f32
    %1403 = vector.shape_cast %1402 : vector<6x1xi1> to vector<6x1xi1>
    %1404 = vector.broadcast %1403 : vector<6x1xi1> to vector<6x16xi1>
    %1405 = vector.broadcast %cst_406 : f32 to vector<6x16xf32>
    %1406 = arith.select %1404, %1388, %1405 : vector<6x16xi1>, vector<6x16xf32>
    %1407 = tpu.concatenate %1394, %1400, %1406 in 1 : vector<6x16xf32>, vector<6x16xf32>, vector<6x16xf32> -> vector<6x48xf32>
    %cst_407 = arith.constant dense<0.000000e+00> : vector<2x48xf32>
    %1408 = tpu.matmul %27, %1407, %cst_407 {dimension_numbers = #tpu.dot_dimension_numbers<[1], [0], [0], [1], [0, 0, 1, 1], [], []>} : vector<2x6xf32>, vector<6x48xf32>, vector<2x48xf32> -> vector<2x48xf32>
    %cst_408 = arith.constant 0.000000e+00 : f32
    %1409 = vector.broadcast %cst_408 : f32 to vector<2x3xf32>
    %c0_i32_409 = arith.constant 0 : i32
    %1410 = vector.broadcast %c0_i32_409 : i32 to vector<2x3xi32>
    %cst_410 = arith.constant dense<0xFF800000> : vector<2xf32>
    %1411 = vector.multi_reduction <maximumf>, %1408, %cst_410 [1] : vector<2x48xf32> to vector<2xf32>
    %1412 = vector.shape_cast %1411 : vector<2xf32> to vector<2x1xf32>
    %1413 = vector.broadcast %1412 : vector<2x1xf32> to vector<2x48xf32>
    %1414 = arith.cmpf oeq, %1408, %1413 : vector<2x48xf32>
    %c48_i32_411 = arith.constant 48 : i32
    %1415 = vector.broadcast %c48_i32_411 : i32 to vector<2x48xi32>
    %1416 = arith.select %1414, %10, %1415 : vector<2x48xi1>, vector<2x48xi32>
    %cst_412 = arith.constant dense<2147483647> : vector<2xi32>
    %1417 = vector.multi_reduction <minsi>, %1416, %cst_412 [1] : vector<2x48xi32> to vector<2xi32>
    %1418 = vector.shape_cast %1417 : vector<2xi32> to vector<2x1xi32>
    %c0_i32_413 = arith.constant 0 : i32
    %1419 = vector.broadcast %c0_i32_413 : i32 to vector<2x3xi32>
    %1420 = arith.cmpi eq, %11, %1419 : vector<2x3xi32>
    %cst_414 = arith.constant 0.000000e+00 : f32
    %1421 = vector.shape_cast %1412 : vector<2x1xf32> to vector<2x1xf32>
    %1422 = vector.broadcast %1421 : vector<2x1xf32> to vector<2x3xf32>
    %1423 = vector.broadcast %cst_414 : f32 to vector<2x3xf32>
    %1424 = arith.select %1420, %1422, %1423 : vector<2x3xi1>, vector<2x3xf32>
    %1425 = arith.addf %1409, %1424 : vector<2x3xf32>
    %c0_i32_415 = arith.constant 0 : i32
    %1426 = vector.broadcast %c0_i32_415 : i32 to vector<2x3xi32>
    %1427 = arith.cmpi eq, %11, %1426 : vector<2x3xi32>
    %c0_i32_416 = arith.constant 0 : i32
    %1428 = vector.shape_cast %1418 : vector<2x1xi32> to vector<2x1xi32>
    %1429 = vector.broadcast %1428 : vector<2x1xi32> to vector<2x3xi32>
    %1430 = vector.broadcast %c0_i32_416 : i32 to vector<2x3xi32>
    %1431 = arith.select %1427, %1429, %1430 : vector<2x3xi1>, vector<2x3xi32>
    %1432 = arith.addi %1410, %1431 : vector<2x3xi32>
    %1433 = vector.broadcast %1418 : vector<2x1xi32> to vector<2x48xi32>
    %1434 = arith.cmpi eq, %10, %1433 : vector<2x48xi32>
    %cst_417 = arith.constant -1.000000e+30 : f32
    %1435 = vector.broadcast %cst_417 : f32 to vector<2x48xf32>
    %1436 = arith.select %1434, %1435, %1408 : vector<2x48xi1>, vector<2x48xf32>
    %cst_418 = arith.constant dense<0xFF800000> : vector<2xf32>
    %1437 = vector.multi_reduction <maximumf>, %1436, %cst_418 [1] : vector<2x48xf32> to vector<2xf32>
    %1438 = vector.shape_cast %1437 : vector<2xf32> to vector<2x1xf32>
    %1439 = vector.broadcast %1438 : vector<2x1xf32> to vector<2x48xf32>
    %1440 = arith.cmpf oeq, %1436, %1439 : vector<2x48xf32>
    %c48_i32_419 = arith.constant 48 : i32
    %1441 = vector.broadcast %c48_i32_419 : i32 to vector<2x48xi32>
    %1442 = arith.select %1440, %10, %1441 : vector<2x48xi1>, vector<2x48xi32>
    %cst_420 = arith.constant dense<2147483647> : vector<2xi32>
    %1443 = vector.multi_reduction <minsi>, %1442, %cst_420 [1] : vector<2x48xi32> to vector<2xi32>
    %1444 = vector.shape_cast %1443 : vector<2xi32> to vector<2x1xi32>
    %c1_i32_421 = arith.constant 1 : i32
    %1445 = vector.broadcast %c1_i32_421 : i32 to vector<2x3xi32>
    %1446 = arith.cmpi eq, %11, %1445 : vector<2x3xi32>
    %cst_422 = arith.constant 0.000000e+00 : f32
    %1447 = vector.shape_cast %1438 : vector<2x1xf32> to vector<2x1xf32>
    %1448 = vector.broadcast %1447 : vector<2x1xf32> to vector<2x3xf32>
    %1449 = vector.broadcast %cst_422 : f32 to vector<2x3xf32>
    %1450 = arith.select %1446, %1448, %1449 : vector<2x3xi1>, vector<2x3xf32>
    %1451 = arith.addf %1425, %1450 : vector<2x3xf32>
    %c1_i32_423 = arith.constant 1 : i32
    %1452 = vector.broadcast %c1_i32_423 : i32 to vector<2x3xi32>
    %1453 = arith.cmpi eq, %11, %1452 : vector<2x3xi32>
    %c0_i32_424 = arith.constant 0 : i32
    %1454 = vector.shape_cast %1444 : vector<2x1xi32> to vector<2x1xi32>
    %1455 = vector.broadcast %1454 : vector<2x1xi32> to vector<2x3xi32>
    %1456 = vector.broadcast %c0_i32_424 : i32 to vector<2x3xi32>
    %1457 = arith.select %1453, %1455, %1456 : vector<2x3xi1>, vector<2x3xi32>
    %1458 = arith.addi %1432, %1457 : vector<2x3xi32>
    %1459 = vector.broadcast %1444 : vector<2x1xi32> to vector<2x48xi32>
    %1460 = arith.cmpi eq, %10, %1459 : vector<2x48xi32>
    %cst_425 = arith.constant -1.000000e+30 : f32
    %1461 = vector.broadcast %cst_425 : f32 to vector<2x48xf32>
    %1462 = arith.select %1460, %1461, %1436 : vector<2x48xi1>, vector<2x48xf32>
    %cst_426 = arith.constant dense<0xFF800000> : vector<2xf32>
    %1463 = vector.multi_reduction <maximumf>, %1462, %cst_426 [1] : vector<2x48xf32> to vector<2xf32>
    %1464 = vector.shape_cast %1463 : vector<2xf32> to vector<2x1xf32>
    %1465 = vector.broadcast %1464 : vector<2x1xf32> to vector<2x48xf32>
    %1466 = arith.cmpf oeq, %1462, %1465 : vector<2x48xf32>
    %c48_i32_427 = arith.constant 48 : i32
    %1467 = vector.broadcast %c48_i32_427 : i32 to vector<2x48xi32>
    %1468 = arith.select %1466, %10, %1467 : vector<2x48xi1>, vector<2x48xi32>
    %cst_428 = arith.constant dense<2147483647> : vector<2xi32>
    %1469 = vector.multi_reduction <minsi>, %1468, %cst_428 [1] : vector<2x48xi32> to vector<2xi32>
    %1470 = vector.shape_cast %1469 : vector<2xi32> to vector<2x1xi32>
    %c2_i32_429 = arith.constant 2 : i32
    %1471 = vector.broadcast %c2_i32_429 : i32 to vector<2x3xi32>
    %1472 = arith.cmpi eq, %11, %1471 : vector<2x3xi32>
    %cst_430 = arith.constant 0.000000e+00 : f32
    %1473 = vector.shape_cast %1464 : vector<2x1xf32> to vector<2x1xf32>
    %1474 = vector.broadcast %1473 : vector<2x1xf32> to vector<2x3xf32>
    %1475 = vector.broadcast %cst_430 : f32 to vector<2x3xf32>
    %1476 = arith.select %1472, %1474, %1475 : vector<2x3xi1>, vector<2x3xf32>
    %1477 = arith.addf %1451, %1476 : vector<2x3xf32>
    %c2_i32_431 = arith.constant 2 : i32
    %1478 = vector.broadcast %c2_i32_431 : i32 to vector<2x3xi32>
    %1479 = arith.cmpi eq, %11, %1478 : vector<2x3xi32>
    %c0_i32_432 = arith.constant 0 : i32
    %1480 = vector.shape_cast %1470 : vector<2x1xi32> to vector<2x1xi32>
    %1481 = vector.broadcast %1480 : vector<2x1xi32> to vector<2x3xi32>
    %1482 = vector.broadcast %c0_i32_432 : i32 to vector<2x3xi32>
    %1483 = arith.select %1479, %1481, %1482 : vector<2x3xi1>, vector<2x3xi32>
    %1484 = arith.addi %1458, %1483 : vector<2x3xi32>
    %c0_i32_433 = arith.constant 0 : i32
    %1485 = vector.broadcast %c0_i32_433 : i32 to vector<2x3xi32>
    %c16_i32_434 = arith.constant 16 : i32
    %1486 = vector.broadcast %c16_i32_434 : i32 to vector<2x3xi32>
    %1487 = arith.cmpi sge, %1484, %1486 : vector<2x3xi32>
    %1488 = arith.extui %1487 : vector<2x3xi1> to vector<2x3xi32>
    %1489 = arith.addi %1485, %1488 : vector<2x3xi32>
    %c32_i32_435 = arith.constant 32 : i32
    %1490 = vector.broadcast %c32_i32_435 : i32 to vector<2x3xi32>
    %1491 = arith.cmpi sge, %1484, %1490 : vector<2x3xi32>
    %1492 = arith.extui %1491 : vector<2x3xi1> to vector<2x3xi32>
    %1493 = arith.addi %1489, %1492 : vector<2x3xi32>
    %c16_i32_436 = arith.constant 16 : i32
    %1494 = vector.broadcast %c16_i32_436 : i32 to vector<2x3xi32>
    %1495 = arith.muli %1494, %1493 : vector<2x3xi32>
    %1496 = arith.subi %1484, %1495 : vector<2x3xi32>
    %1497 = arith.sitofp %1493 : vector<2x3xi32> to vector<2x3xf32>
    %1498 = arith.sitofp %1496 : vector<2x3xi32> to vector<2x3xf32>
    %1499 = tpu.concatenate %1497, %1498, %1477 in 1 : vector<2x3xf32>, vector<2x3xf32>, vector<2x3xf32> -> vector<2x9xf32>
    %cst_437 = arith.constant dense<0.000000e+00> : vector<6x9xf32>
    %1500 = tpu.matmul %40, %1499, %cst_437 {dimension_numbers = #tpu.dot_dimension_numbers<[1], [0], [0], [1], [0, 0, 1, 1], [], []>} : vector<6x2xf32>, vector<2x9xf32>, vector<6x9xf32> -> vector<6x9xf32>
    %1501 = vector.broadcast %8 : vector<6x1xi32> to vector<6x9xi32>
    %1502 = arith.cmpi eq, %12, %1501 : vector<6x9xi32>
    %cst_438 = arith.constant 0.000000e+00 : f32
    %1503 = vector.broadcast %cst_438 : f32 to vector<6x9xf32>
    %1504 = arith.select %1502, %1500, %1503 : vector<6x9xi1>, vector<6x9xf32>
    %cst_439 = arith.constant dense<0.000000e+00> : vector<6xf32>
    %1505 = vector.multi_reduction <add>, %1504, %cst_439 [1] : vector<6x9xf32> to vector<6xf32>
    %1506 = vector.shape_cast %1505 : vector<6xf32> to vector<6x1xf32>
    %c3_i32_440 = arith.constant 3 : i32
    %1507 = vector.broadcast %c3_i32_440 : i32 to vector<6x1xi32>
    %1508 = arith.addi %8, %1507 : vector<6x1xi32>
    %1509 = vector.broadcast %1508 : vector<6x1xi32> to vector<6x9xi32>
    %1510 = arith.cmpi eq, %12, %1509 : vector<6x9xi32>
    %cst_441 = arith.constant 0.000000e+00 : f32
    %1511 = vector.broadcast %cst_441 : f32 to vector<6x9xf32>
    %1512 = arith.select %1510, %1500, %1511 : vector<6x9xi1>, vector<6x9xf32>
    %cst_442 = arith.constant dense<0.000000e+00> : vector<6xf32>
    %1513 = vector.multi_reduction <add>, %1512, %cst_442 [1] : vector<6x9xf32> to vector<6xf32>
    %1514 = vector.shape_cast %1513 : vector<6xf32> to vector<6x1xf32>
    %c6_i32_443 = arith.constant 6 : i32
    %1515 = vector.broadcast %c6_i32_443 : i32 to vector<6x1xi32>
    %1516 = arith.addi %8, %1515 : vector<6x1xi32>
    %1517 = vector.broadcast %1516 : vector<6x1xi32> to vector<6x9xi32>
    %1518 = arith.cmpi eq, %12, %1517 : vector<6x9xi32>
    %cst_444 = arith.constant 0.000000e+00 : f32
    %1519 = vector.broadcast %cst_444 : f32 to vector<6x9xf32>
    %1520 = arith.select %1518, %1500, %1519 : vector<6x9xi1>, vector<6x9xf32>
    %cst_445 = arith.constant dense<0.000000e+00> : vector<6xf32>
    %1521 = vector.multi_reduction <add>, %1520, %cst_445 [1] : vector<6x9xf32> to vector<6xf32>
    %1522 = vector.shape_cast %1521 : vector<6xf32> to vector<6x1xf32>
    %1523 = arith.fptosi %1506 : vector<6x1xf32> to vector<6x1xi32>
    %1524 = vector.broadcast %1523 : vector<6x1xi32> to vector<6x6xi32>
    %1525 = arith.cmpi eq, %52, %1524 : vector<6x6xi32>
    %1526 = arith.extui %1525 : vector<6x6xi1> to vector<6x6xi32>
    %1527 = arith.sitofp %1526 : vector<6x6xi32> to vector<6x6xf32>
    %1528 = tpu.concatenate %1371, %1331 in 1 : vector<6x32xf32>, vector<6x9xf32> -> vector<6x41xf32>
    %cst_446 = arith.constant dense<0.000000e+00> : vector<6x41xf32>
    %1529 = tpu.matmul %1527, %1528, %cst_446 {dimension_numbers = #tpu.dot_dimension_numbers<[1], [0], [0], [1], [0, 0, 1, 1], [], []>} : vector<6x6xf32>, vector<6x41xf32>, vector<6x41xf32> -> vector<6x41xf32>
    %1530 = vector.extract_strided_slice %1529 {offsets = [0, 0], sizes = [6, 32], strides = [1, 1]} : vector<6x41xf32> to vector<6x32xf32>
    %c7_i32 = arith.constant 7 : i32
    %1531 = vector.broadcast %c7_i32 : i32 to vector<6x9xi32>
    %1532 = arith.cmpi eq, %13, %1531 : vector<6x9xi32>
    %1533 = vector.extract_strided_slice %1529 {offsets = [0, 32], sizes = [6, 9], strides = [1, 1]} : vector<6x41xf32> to vector<6x9xf32>
    %1534 = vector.shape_cast %1514 : vector<6x1xf32> to vector<6x1xf32>
    %1535 = vector.broadcast %1534 : vector<6x1xf32> to vector<6x9xf32>
    %1536 = arith.select %1532, %1535, %1533 : vector<6x9xi1>, vector<6x9xf32>
    %1537 = vector.broadcast %1357 : vector<1x1xf32> to vector<6x32xf32>
    %1538 = arith.mulf %1537, %1326 : vector<6x32xf32>
    %1539 = vector.broadcast %1359 : vector<1x1xf32> to vector<6x32xf32>
    %1540 = arith.mulf %1539, %1530 : vector<6x32xf32>
    %1541 = arith.addf %1538, %1540 : vector<6x32xf32>
    %1542 = vector.broadcast %1357 : vector<1x1xf32> to vector<6x9xf32>
    %1543 = arith.mulf %1542, %1331 : vector<6x9xf32>
    %1544 = vector.broadcast %1359 : vector<1x1xf32> to vector<6x9xf32>
    %1545 = arith.mulf %1544, %1536 : vector<6x9xf32>
    %1546 = arith.addf %1543, %1545 : vector<6x9xf32>
    %1547 = vector.broadcast %1357 : vector<1x1xf32> to vector<6x1xf32>
    %1548 = arith.mulf %1547, %1336 : vector<6x1xf32>
    %1549 = vector.broadcast %1359 : vector<1x1xf32> to vector<6x1xf32>
    %1550 = arith.mulf %1549, %1522 : vector<6x1xf32>
    %1551 = arith.addf %1548, %1550 : vector<6x1xf32>
    %1552 = vector.broadcast %1357 : vector<1x1xf32> to vector<6x1xf32>
    %1553 = arith.mulf %1552, %1341 : vector<6x1xf32>
    %1554 = vector.broadcast %1359 : vector<1x1xf32> to vector<6x1xf32>
    %1555 = arith.mulf %1554, %1514 : vector<6x1xf32>
    %1556 = arith.addf %1553, %1555 : vector<6x1xf32>
    %cst_447 = arith.constant 1.000000e+00 : f32
    %1557 = vector.broadcast %cst_447 : f32 to vector<6x1xf32>
    %1558 = arith.cmpf oeq, %1514, %1557 : vector<6x1xf32>
    %1559 = arith.extui %1558 : vector<6x1xi1> to vector<6x1xi32>
    %1560 = arith.sitofp %1559 : vector<6x1xi32> to vector<6x1xf32>
    %1561 = arith.maximumf %1351, %1560 : vector<6x1xf32>
    %1562 = vector.broadcast %1357 : vector<1x1xf32> to vector<6x1xf32>
    %1563 = arith.mulf %1562, %1351 : vector<6x1xf32>
    %1564 = vector.broadcast %1359 : vector<1x1xf32> to vector<6x1xf32>
    %1565 = arith.mulf %1564, %1561 : vector<6x1xf32>
    %1566 = arith.addf %1563, %1565 : vector<6x1xf32>
    %cst_448 = arith.constant dense<0.000000e+00> : vector<1xf32>
    %1567 = vector.multi_reduction <add>, %1566, %cst_448 [0] : vector<6x1xf32> to vector<1xf32>
    %1568 = vector.shape_cast %1567 : vector<1xf32> to vector<1x1xf32>
    %cst_449 = arith.constant 6.000000e+00 : f32
    %1569 = vector.broadcast %cst_449 : f32 to vector<1x1xf32>
    %1570 = arith.cmpf oge, %1568, %1569 : vector<1x1xf32>
    %1571 = arith.extui %1570 : vector<1x1xi1> to vector<1x1xi32>
    %1572 = arith.sitofp %1571 : vector<1x1xi32> to vector<1x1xf32>
    %cst_450 = arith.constant 1.000000e+00 : f32
    %1573 = vector.broadcast %cst_450 : f32 to vector<1x1xf32>
    %1574 = arith.subf %1573, %1572 : vector<1x1xf32>
    %1575 = arith.fptosi %1556 : vector<6x1xf32> to vector<6x1xi32>
    %1576 = vector.broadcast %1575 : vector<6x1xi32> to vector<6x16xi32>
    %1577 = arith.cmpi eq, %9, %1576 : vector<6x16xi32>
    %1578 = arith.extui %1577 : vector<6x16xi1> to vector<6x16xi32>
    %1579 = arith.sitofp %1578 : vector<6x16xi32> to vector<6x16xf32>
    %1580 = tpu.concatenate %1579, %1541 in 1 : vector<6x16xf32>, vector<6x32xf32> -> vector<6x48xf32>
    %c0_451 = arith.constant 0 : index
    %c0_452 = arith.constant 0 : index
    %1581 = vector.load %arg1[%c0_451, %c0_452] : memref<48x32xf32, #tpu.memory_space<vmem>>, vector<48x32xf32>
    %cst_453 = arith.constant dense<0.000000e+00> : vector<6x32xf32>
    %1582 = tpu.matmul %1580, %1581, %cst_453 {dimension_numbers = #tpu.dot_dimension_numbers<[1], [0], [0], [1], [0, 0, 1, 1], [], []>} : vector<6x48xf32>, vector<48x32xf32>, vector<6x32xf32> -> vector<6x32xf32>
    %c0_454 = arith.constant 0 : index
    %c0_455 = arith.constant 0 : index
    %1583 = vector.load %arg2[%c0_454, %c0_455] : memref<1x32xf32, #tpu.memory_space<vmem>>, vector<1x32xf32>
    %1584 = vector.broadcast %1583 : vector<1x32xf32> to vector<6x32xf32>
    %1585 = arith.addf %1582, %1584 : vector<6x32xf32>
    %1586 = math.tanh %1585 : vector<6x32xf32>
    %c0_456 = arith.constant 0 : index
    %c0_457 = arith.constant 0 : index
    %1587 = vector.load %arg3[%c0_456, %c0_457] : memref<32x16xf32, #tpu.memory_space<vmem>>, vector<32x16xf32>
    %cst_458 = arith.constant dense<0.000000e+00> : vector<6x16xf32>
    %1588 = tpu.matmul %1586, %1587, %cst_458 {dimension_numbers = #tpu.dot_dimension_numbers<[1], [0], [0], [1], [0, 0, 1, 1], [], []>} : vector<6x32xf32>, vector<32x16xf32>, vector<6x16xf32> -> vector<6x16xf32>
    %c0_459 = arith.constant 0 : index
    %c0_460 = arith.constant 0 : index
    %1589 = vector.load %arg4[%c0_459, %c0_460] : memref<1x16xf32, #tpu.memory_space<vmem>>, vector<1x16xf32>
    %1590 = vector.broadcast %1589 : vector<1x16xf32> to vector<6x16xf32>
    %1591 = arith.addf %1588, %1590 : vector<6x16xf32>
    %cst_461 = arith.constant dense<0xFF800000> : vector<6xf32>
    %1592 = vector.multi_reduction <maximumf>, %1591, %cst_461 [1] : vector<6x16xf32> to vector<6xf32>
    %1593 = vector.shape_cast %1592 : vector<6xf32> to vector<6x1xf32>
    %1594 = vector.broadcast %1593 : vector<6x1xf32> to vector<6x16xf32>
    %1595 = arith.subf %1591, %1594 : vector<6x16xf32>
    %1596 = math.exp %1595 : vector<6x16xf32>
    %cst_462 = arith.constant dense<0.000000e+00> : vector<6xf32>
    %1597 = vector.multi_reduction <add>, %1596, %cst_462 [1] : vector<6x16xf32> to vector<6xf32>
    %1598 = vector.shape_cast %1597 : vector<6xf32> to vector<6x1xf32>
    %1599 = math.log %1598 : vector<6x1xf32>
    %1600 = vector.broadcast %1599 : vector<6x1xf32> to vector<6x16xf32>
    %1601 = arith.subf %1595, %1600 : vector<6x16xf32>
    %1602 = vector.broadcast %1551 : vector<6x1xf32> to vector<6x16xf32>
    %1603 = arith.addf %1602, %1601 : vector<6x16xf32>
    %c0_i32_463 = arith.constant 0 : i32
    %1604 = vector.broadcast %c0_i32_463 : i32 to vector<6x1xi32>
    %1605 = arith.cmpi eq, %8, %1604 : vector<6x1xi32>
    %cst_464 = arith.constant 0.000000e+00 : f32
    %1606 = vector.shape_cast %1605 : vector<6x1xi1> to vector<6x1xi1>
    %1607 = vector.broadcast %1606 : vector<6x1xi1> to vector<6x16xi1>
    %1608 = vector.broadcast %cst_464 : f32 to vector<6x16xf32>
    %1609 = arith.select %1607, %1603, %1608 : vector<6x16xi1>, vector<6x16xf32>
    %c1_i32_465 = arith.constant 1 : i32
    %1610 = vector.broadcast %c1_i32_465 : i32 to vector<6x1xi32>
    %1611 = arith.cmpi eq, %8, %1610 : vector<6x1xi32>
    %cst_466 = arith.constant 0.000000e+00 : f32
    %1612 = vector.shape_cast %1611 : vector<6x1xi1> to vector<6x1xi1>
    %1613 = vector.broadcast %1612 : vector<6x1xi1> to vector<6x16xi1>
    %1614 = vector.broadcast %cst_466 : f32 to vector<6x16xf32>
    %1615 = arith.select %1613, %1603, %1614 : vector<6x16xi1>, vector<6x16xf32>
    %c2_i32_467 = arith.constant 2 : i32
    %1616 = vector.broadcast %c2_i32_467 : i32 to vector<6x1xi32>
    %1617 = arith.cmpi eq, %8, %1616 : vector<6x1xi32>
    %cst_468 = arith.constant 0.000000e+00 : f32
    %1618 = vector.shape_cast %1617 : vector<6x1xi1> to vector<6x1xi1>
    %1619 = vector.broadcast %1618 : vector<6x1xi1> to vector<6x16xi1>
    %1620 = vector.broadcast %cst_468 : f32 to vector<6x16xf32>
    %1621 = arith.select %1619, %1603, %1620 : vector<6x16xi1>, vector<6x16xf32>
    %1622 = tpu.concatenate %1609, %1615, %1621 in 1 : vector<6x16xf32>, vector<6x16xf32>, vector<6x16xf32> -> vector<6x48xf32>
    %cst_469 = arith.constant dense<0.000000e+00> : vector<2x48xf32>
    %1623 = tpu.matmul %27, %1622, %cst_469 {dimension_numbers = #tpu.dot_dimension_numbers<[1], [0], [0], [1], [0, 0, 1, 1], [], []>} : vector<2x6xf32>, vector<6x48xf32>, vector<2x48xf32> -> vector<2x48xf32>
    %cst_470 = arith.constant 0.000000e+00 : f32
    %1624 = vector.broadcast %cst_470 : f32 to vector<2x3xf32>
    %c0_i32_471 = arith.constant 0 : i32
    %1625 = vector.broadcast %c0_i32_471 : i32 to vector<2x3xi32>
    %cst_472 = arith.constant dense<0xFF800000> : vector<2xf32>
    %1626 = vector.multi_reduction <maximumf>, %1623, %cst_472 [1] : vector<2x48xf32> to vector<2xf32>
    %1627 = vector.shape_cast %1626 : vector<2xf32> to vector<2x1xf32>
    %1628 = vector.broadcast %1627 : vector<2x1xf32> to vector<2x48xf32>
    %1629 = arith.cmpf oeq, %1623, %1628 : vector<2x48xf32>
    %c48_i32_473 = arith.constant 48 : i32
    %1630 = vector.broadcast %c48_i32_473 : i32 to vector<2x48xi32>
    %1631 = arith.select %1629, %10, %1630 : vector<2x48xi1>, vector<2x48xi32>
    %cst_474 = arith.constant dense<2147483647> : vector<2xi32>
    %1632 = vector.multi_reduction <minsi>, %1631, %cst_474 [1] : vector<2x48xi32> to vector<2xi32>
    %1633 = vector.shape_cast %1632 : vector<2xi32> to vector<2x1xi32>
    %c0_i32_475 = arith.constant 0 : i32
    %1634 = vector.broadcast %c0_i32_475 : i32 to vector<2x3xi32>
    %1635 = arith.cmpi eq, %11, %1634 : vector<2x3xi32>
    %cst_476 = arith.constant 0.000000e+00 : f32
    %1636 = vector.shape_cast %1627 : vector<2x1xf32> to vector<2x1xf32>
    %1637 = vector.broadcast %1636 : vector<2x1xf32> to vector<2x3xf32>
    %1638 = vector.broadcast %cst_476 : f32 to vector<2x3xf32>
    %1639 = arith.select %1635, %1637, %1638 : vector<2x3xi1>, vector<2x3xf32>
    %1640 = arith.addf %1624, %1639 : vector<2x3xf32>
    %c0_i32_477 = arith.constant 0 : i32
    %1641 = vector.broadcast %c0_i32_477 : i32 to vector<2x3xi32>
    %1642 = arith.cmpi eq, %11, %1641 : vector<2x3xi32>
    %c0_i32_478 = arith.constant 0 : i32
    %1643 = vector.shape_cast %1633 : vector<2x1xi32> to vector<2x1xi32>
    %1644 = vector.broadcast %1643 : vector<2x1xi32> to vector<2x3xi32>
    %1645 = vector.broadcast %c0_i32_478 : i32 to vector<2x3xi32>
    %1646 = arith.select %1642, %1644, %1645 : vector<2x3xi1>, vector<2x3xi32>
    %1647 = arith.addi %1625, %1646 : vector<2x3xi32>
    %1648 = vector.broadcast %1633 : vector<2x1xi32> to vector<2x48xi32>
    %1649 = arith.cmpi eq, %10, %1648 : vector<2x48xi32>
    %cst_479 = arith.constant -1.000000e+30 : f32
    %1650 = vector.broadcast %cst_479 : f32 to vector<2x48xf32>
    %1651 = arith.select %1649, %1650, %1623 : vector<2x48xi1>, vector<2x48xf32>
    %cst_480 = arith.constant dense<0xFF800000> : vector<2xf32>
    %1652 = vector.multi_reduction <maximumf>, %1651, %cst_480 [1] : vector<2x48xf32> to vector<2xf32>
    %1653 = vector.shape_cast %1652 : vector<2xf32> to vector<2x1xf32>
    %1654 = vector.broadcast %1653 : vector<2x1xf32> to vector<2x48xf32>
    %1655 = arith.cmpf oeq, %1651, %1654 : vector<2x48xf32>
    %c48_i32_481 = arith.constant 48 : i32
    %1656 = vector.broadcast %c48_i32_481 : i32 to vector<2x48xi32>
    %1657 = arith.select %1655, %10, %1656 : vector<2x48xi1>, vector<2x48xi32>
    %cst_482 = arith.constant dense<2147483647> : vector<2xi32>
    %1658 = vector.multi_reduction <minsi>, %1657, %cst_482 [1] : vector<2x48xi32> to vector<2xi32>
    %1659 = vector.shape_cast %1658 : vector<2xi32> to vector<2x1xi32>
    %c1_i32_483 = arith.constant 1 : i32
    %1660 = vector.broadcast %c1_i32_483 : i32 to vector<2x3xi32>
    %1661 = arith.cmpi eq, %11, %1660 : vector<2x3xi32>
    %cst_484 = arith.constant 0.000000e+00 : f32
    %1662 = vector.shape_cast %1653 : vector<2x1xf32> to vector<2x1xf32>
    %1663 = vector.broadcast %1662 : vector<2x1xf32> to vector<2x3xf32>
    %1664 = vector.broadcast %cst_484 : f32 to vector<2x3xf32>
    %1665 = arith.select %1661, %1663, %1664 : vector<2x3xi1>, vector<2x3xf32>
    %1666 = arith.addf %1640, %1665 : vector<2x3xf32>
    %c1_i32_485 = arith.constant 1 : i32
    %1667 = vector.broadcast %c1_i32_485 : i32 to vector<2x3xi32>
    %1668 = arith.cmpi eq, %11, %1667 : vector<2x3xi32>
    %c0_i32_486 = arith.constant 0 : i32
    %1669 = vector.shape_cast %1659 : vector<2x1xi32> to vector<2x1xi32>
    %1670 = vector.broadcast %1669 : vector<2x1xi32> to vector<2x3xi32>
    %1671 = vector.broadcast %c0_i32_486 : i32 to vector<2x3xi32>
    %1672 = arith.select %1668, %1670, %1671 : vector<2x3xi1>, vector<2x3xi32>
    %1673 = arith.addi %1647, %1672 : vector<2x3xi32>
    %1674 = vector.broadcast %1659 : vector<2x1xi32> to vector<2x48xi32>
    %1675 = arith.cmpi eq, %10, %1674 : vector<2x48xi32>
    %cst_487 = arith.constant -1.000000e+30 : f32
    %1676 = vector.broadcast %cst_487 : f32 to vector<2x48xf32>
    %1677 = arith.select %1675, %1676, %1651 : vector<2x48xi1>, vector<2x48xf32>
    %cst_488 = arith.constant dense<0xFF800000> : vector<2xf32>
    %1678 = vector.multi_reduction <maximumf>, %1677, %cst_488 [1] : vector<2x48xf32> to vector<2xf32>
    %1679 = vector.shape_cast %1678 : vector<2xf32> to vector<2x1xf32>
    %1680 = vector.broadcast %1679 : vector<2x1xf32> to vector<2x48xf32>
    %1681 = arith.cmpf oeq, %1677, %1680 : vector<2x48xf32>
    %c48_i32_489 = arith.constant 48 : i32
    %1682 = vector.broadcast %c48_i32_489 : i32 to vector<2x48xi32>
    %1683 = arith.select %1681, %10, %1682 : vector<2x48xi1>, vector<2x48xi32>
    %cst_490 = arith.constant dense<2147483647> : vector<2xi32>
    %1684 = vector.multi_reduction <minsi>, %1683, %cst_490 [1] : vector<2x48xi32> to vector<2xi32>
    %1685 = vector.shape_cast %1684 : vector<2xi32> to vector<2x1xi32>
    %c2_i32_491 = arith.constant 2 : i32
    %1686 = vector.broadcast %c2_i32_491 : i32 to vector<2x3xi32>
    %1687 = arith.cmpi eq, %11, %1686 : vector<2x3xi32>
    %cst_492 = arith.constant 0.000000e+00 : f32
    %1688 = vector.shape_cast %1679 : vector<2x1xf32> to vector<2x1xf32>
    %1689 = vector.broadcast %1688 : vector<2x1xf32> to vector<2x3xf32>
    %1690 = vector.broadcast %cst_492 : f32 to vector<2x3xf32>
    %1691 = arith.select %1687, %1689, %1690 : vector<2x3xi1>, vector<2x3xf32>
    %1692 = arith.addf %1666, %1691 : vector<2x3xf32>
    %c2_i32_493 = arith.constant 2 : i32
    %1693 = vector.broadcast %c2_i32_493 : i32 to vector<2x3xi32>
    %1694 = arith.cmpi eq, %11, %1693 : vector<2x3xi32>
    %c0_i32_494 = arith.constant 0 : i32
    %1695 = vector.shape_cast %1685 : vector<2x1xi32> to vector<2x1xi32>
    %1696 = vector.broadcast %1695 : vector<2x1xi32> to vector<2x3xi32>
    %1697 = vector.broadcast %c0_i32_494 : i32 to vector<2x3xi32>
    %1698 = arith.select %1694, %1696, %1697 : vector<2x3xi1>, vector<2x3xi32>
    %1699 = arith.addi %1673, %1698 : vector<2x3xi32>
    %c0_i32_495 = arith.constant 0 : i32
    %1700 = vector.broadcast %c0_i32_495 : i32 to vector<2x3xi32>
    %c16_i32_496 = arith.constant 16 : i32
    %1701 = vector.broadcast %c16_i32_496 : i32 to vector<2x3xi32>
    %1702 = arith.cmpi sge, %1699, %1701 : vector<2x3xi32>
    %1703 = arith.extui %1702 : vector<2x3xi1> to vector<2x3xi32>
    %1704 = arith.addi %1700, %1703 : vector<2x3xi32>
    %c32_i32_497 = arith.constant 32 : i32
    %1705 = vector.broadcast %c32_i32_497 : i32 to vector<2x3xi32>
    %1706 = arith.cmpi sge, %1699, %1705 : vector<2x3xi32>
    %1707 = arith.extui %1706 : vector<2x3xi1> to vector<2x3xi32>
    %1708 = arith.addi %1704, %1707 : vector<2x3xi32>
    %c16_i32_498 = arith.constant 16 : i32
    %1709 = vector.broadcast %c16_i32_498 : i32 to vector<2x3xi32>
    %1710 = arith.muli %1709, %1708 : vector<2x3xi32>
    %1711 = arith.subi %1699, %1710 : vector<2x3xi32>
    %1712 = arith.sitofp %1708 : vector<2x3xi32> to vector<2x3xf32>
    %1713 = arith.sitofp %1711 : vector<2x3xi32> to vector<2x3xf32>
    %1714 = tpu.concatenate %1712, %1713, %1692 in 1 : vector<2x3xf32>, vector<2x3xf32>, vector<2x3xf32> -> vector<2x9xf32>
    %cst_499 = arith.constant dense<0.000000e+00> : vector<6x9xf32>
    %1715 = tpu.matmul %40, %1714, %cst_499 {dimension_numbers = #tpu.dot_dimension_numbers<[1], [0], [0], [1], [0, 0, 1, 1], [], []>} : vector<6x2xf32>, vector<2x9xf32>, vector<6x9xf32> -> vector<6x9xf32>
    %1716 = vector.broadcast %8 : vector<6x1xi32> to vector<6x9xi32>
    %1717 = arith.cmpi eq, %12, %1716 : vector<6x9xi32>
    %cst_500 = arith.constant 0.000000e+00 : f32
    %1718 = vector.broadcast %cst_500 : f32 to vector<6x9xf32>
    %1719 = arith.select %1717, %1715, %1718 : vector<6x9xi1>, vector<6x9xf32>
    %cst_501 = arith.constant dense<0.000000e+00> : vector<6xf32>
    %1720 = vector.multi_reduction <add>, %1719, %cst_501 [1] : vector<6x9xf32> to vector<6xf32>
    %1721 = vector.shape_cast %1720 : vector<6xf32> to vector<6x1xf32>
    %c3_i32_502 = arith.constant 3 : i32
    %1722 = vector.broadcast %c3_i32_502 : i32 to vector<6x1xi32>
    %1723 = arith.addi %8, %1722 : vector<6x1xi32>
    %1724 = vector.broadcast %1723 : vector<6x1xi32> to vector<6x9xi32>
    %1725 = arith.cmpi eq, %12, %1724 : vector<6x9xi32>
    %cst_503 = arith.constant 0.000000e+00 : f32
    %1726 = vector.broadcast %cst_503 : f32 to vector<6x9xf32>
    %1727 = arith.select %1725, %1715, %1726 : vector<6x9xi1>, vector<6x9xf32>
    %cst_504 = arith.constant dense<0.000000e+00> : vector<6xf32>
    %1728 = vector.multi_reduction <add>, %1727, %cst_504 [1] : vector<6x9xf32> to vector<6xf32>
    %1729 = vector.shape_cast %1728 : vector<6xf32> to vector<6x1xf32>
    %c6_i32_505 = arith.constant 6 : i32
    %1730 = vector.broadcast %c6_i32_505 : i32 to vector<6x1xi32>
    %1731 = arith.addi %8, %1730 : vector<6x1xi32>
    %1732 = vector.broadcast %1731 : vector<6x1xi32> to vector<6x9xi32>
    %1733 = arith.cmpi eq, %12, %1732 : vector<6x9xi32>
    %cst_506 = arith.constant 0.000000e+00 : f32
    %1734 = vector.broadcast %cst_506 : f32 to vector<6x9xf32>
    %1735 = arith.select %1733, %1715, %1734 : vector<6x9xi1>, vector<6x9xf32>
    %cst_507 = arith.constant dense<0.000000e+00> : vector<6xf32>
    %1736 = vector.multi_reduction <add>, %1735, %cst_507 [1] : vector<6x9xf32> to vector<6xf32>
    %1737 = vector.shape_cast %1736 : vector<6xf32> to vector<6x1xf32>
    %1738 = arith.fptosi %1721 : vector<6x1xf32> to vector<6x1xi32>
    %1739 = vector.broadcast %1738 : vector<6x1xi32> to vector<6x6xi32>
    %1740 = arith.cmpi eq, %52, %1739 : vector<6x6xi32>
    %1741 = arith.extui %1740 : vector<6x6xi1> to vector<6x6xi32>
    %1742 = arith.sitofp %1741 : vector<6x6xi32> to vector<6x6xf32>
    %1743 = tpu.concatenate %1586, %1546 in 1 : vector<6x32xf32>, vector<6x9xf32> -> vector<6x41xf32>
    %cst_508 = arith.constant dense<0.000000e+00> : vector<6x41xf32>
    %1744 = tpu.matmul %1742, %1743, %cst_508 {dimension_numbers = #tpu.dot_dimension_numbers<[1], [0], [0], [1], [0, 0, 1, 1], [], []>} : vector<6x6xf32>, vector<6x41xf32>, vector<6x41xf32> -> vector<6x41xf32>
    %1745 = vector.extract_strided_slice %1744 {offsets = [0, 0], sizes = [6, 32], strides = [1, 1]} : vector<6x41xf32> to vector<6x32xf32>
    %c8_i32 = arith.constant 8 : i32
    %1746 = vector.broadcast %c8_i32 : i32 to vector<6x9xi32>
    %1747 = arith.cmpi eq, %13, %1746 : vector<6x9xi32>
    %1748 = vector.extract_strided_slice %1744 {offsets = [0, 32], sizes = [6, 9], strides = [1, 1]} : vector<6x41xf32> to vector<6x9xf32>
    %1749 = vector.shape_cast %1729 : vector<6x1xf32> to vector<6x1xf32>
    %1750 = vector.broadcast %1749 : vector<6x1xf32> to vector<6x9xf32>
    %1751 = arith.select %1747, %1750, %1748 : vector<6x9xi1>, vector<6x9xf32>
    %1752 = vector.broadcast %1572 : vector<1x1xf32> to vector<6x32xf32>
    %1753 = arith.mulf %1752, %1541 : vector<6x32xf32>
    %1754 = vector.broadcast %1574 : vector<1x1xf32> to vector<6x32xf32>
    %1755 = arith.mulf %1754, %1745 : vector<6x32xf32>
    %1756 = arith.addf %1753, %1755 : vector<6x32xf32>
    %1757 = vector.broadcast %1572 : vector<1x1xf32> to vector<6x9xf32>
    %1758 = arith.mulf %1757, %1546 : vector<6x9xf32>
    %1759 = vector.broadcast %1574 : vector<1x1xf32> to vector<6x9xf32>
    %1760 = arith.mulf %1759, %1751 : vector<6x9xf32>
    %1761 = arith.addf %1758, %1760 : vector<6x9xf32>
    %1762 = vector.broadcast %1572 : vector<1x1xf32> to vector<6x1xf32>
    %1763 = arith.mulf %1762, %1551 : vector<6x1xf32>
    %1764 = vector.broadcast %1574 : vector<1x1xf32> to vector<6x1xf32>
    %1765 = arith.mulf %1764, %1737 : vector<6x1xf32>
    %1766 = arith.addf %1763, %1765 : vector<6x1xf32>
    %c0_509 = arith.constant 0 : index
    %c0_510 = arith.constant 0 : index
    %1767 = vector.load %arg6[%c0_509, %c0_510] : memref<6x32xf32, #tpu.memory_space<vmem>>, vector<6x32xf32>
    tpu.vector_store %arg6[%c0_509, %c0_510], %1756 {strides = array<i32>} : memref<6x32xf32, #tpu.memory_space<vmem>>, vector<6x32xf32>,
    %1768 = vector.broadcast %8 : vector<6x1xi32> to vector<6x3xi32>
    %1769 = arith.cmpi eq, %14, %1768 : vector<6x3xi32>
    %1770 = arith.extui %1769 : vector<6x3xi1> to vector<6x3xi32>
    %1771 = arith.sitofp %1770 : vector<6x3xi32> to vector<6x3xf32>
    %1772 = vector.broadcast %1766 : vector<6x1xf32> to vector<6x3xf32>
    %1773 = arith.mulf %1772, %1771 : vector<6x3xf32>
    %cst_511 = arith.constant dense<0.000000e+00> : vector<2x3xf32>
    %1774 = tpu.matmul %27, %1773, %cst_511 {dimension_numbers = #tpu.dot_dimension_numbers<[1], [0], [0], [1], [0, 0, 1, 1], [], []>} : vector<2x6xf32>, vector<6x3xf32>, vector<2x3xf32> -> vector<2x3xf32>
    %cst_512 = arith.constant dense<0xFF800000> : vector<2xf32>
    %1775 = vector.multi_reduction <maximumf>, %1774, %cst_512 [1] : vector<2x3xf32> to vector<2xf32>
    %1776 = vector.shape_cast %1775 : vector<2xf32> to vector<2x1xf32>
    %1777 = vector.broadcast %1776 : vector<2x1xf32> to vector<2x3xf32>
    %1778 = arith.cmpf oeq, %1774, %1777 : vector<2x3xf32>
    %c3_i32_513 = arith.constant 3 : i32
    %1779 = vector.broadcast %c3_i32_513 : i32 to vector<2x3xi32>
    %1780 = arith.select %1778, %11, %1779 : vector<2x3xi1>, vector<2x3xi32>
    %cst_514 = arith.constant dense<2147483647> : vector<2xi32>
    %1781 = vector.multi_reduction <minsi>, %1780, %cst_514 [1] : vector<2x3xi32> to vector<2xi32>
    %1782 = vector.shape_cast %1781 : vector<2xi32> to vector<2x1xi32>
    %c3_i32_515 = arith.constant 3 : i32
    %1783 = vector.broadcast %c3_i32_515 : i32 to vector<2x6xi32>
    %1784 = arith.muli %15, %1783 : vector<2x6xi32>
    %1785 = vector.broadcast %1782 : vector<2x1xi32> to vector<2x6xi32>
    %1786 = arith.addi %1784, %1785 : vector<2x6xi32>
    %1787 = arith.cmpi eq, %16, %1786 : vector<2x6xi32>
    %1788 = arith.extui %1787 : vector<2x6xi1> to vector<2x6xi32>
    %1789 = arith.sitofp %1788 : vector<2x6xi32> to vector<2x6xf32>
    %cst_516 = arith.constant dense<0.000000e+00> : vector<2x9xf32>
    %1790 = tpu.matmul %1789, %1761, %cst_516 {dimension_numbers = #tpu.dot_dimension_numbers<[1], [0], [0], [1], [0, 0, 1, 1], [], []>} : vector<2x6xf32>, vector<6x9xf32>, vector<2x9xf32> -> vector<2x9xf32>
    %1791 = vector.extract_strided_slice %1790 {offsets = [0, 1], sizes = [2, 8], strides = [1, 1]} : vector<2x9xf32> to vector<2x8xf32>
    %cst_517 = arith.constant 5.000000e-01 : f32
    %1792 = vector.broadcast %cst_517 : f32 to vector<2x8xf32>
    %1793 = arith.addf %1791, %1792 : vector<2x8xf32>
    %1794 = arith.fptosi %1793 : vector<2x8xf32> to vector<2x8xi32>
    %c0_518 = arith.constant 0 : index
    %c0_519 = arith.constant 0 : index
    %1795 = vector.load %arg5[%c0_518, %c0_519] : memref<2x8xi32, #tpu.memory_space<vmem>>, vector<2x8xi32>
    tpu.vector_store %arg5[%c0_518, %c0_519], %1794 {strides = array<i32>} : memref<2x8xi32, #tpu.memory_space<vmem>>, vector<2x8xi32>,
    return
  }
}

</mosaic_0001>

<llo_original>
// kernel: beam_search_forward.1
$region0: #{beam_search_forward.1}
  #allocation0 [shape = 'u32[]', space=smem, size = 0x4, offset = 0x4, fixed_abs, tag = 'smem constant byte address 0x4 - core index']
  #allocation1 [shape = 'u32[72,128]{1,0:T(1,128)}', space=vmem, size = 0x9000, scoped, tag = 'internal scratch']
  %s0 = inlined_call_operand.vmem [shape: f32[6,32], index: 0, kind: input, shape index: {}]
  %s1 = inlined_call_operand.vmem [shape: f32[48,32], index: 1, kind: input, shape index: {}]
  %s2 = inlined_call_operand.vmem [shape: f32[1,32], index: 2, kind: input, shape index: {}]
  %s3 = inlined_call_operand.vmem [shape: f32[32,16], index: 3, kind: input, shape index: {}]
  %s4 = inlined_call_operand.vmem [shape: f32[1,16], index: 4, kind: input, shape index: {}]
  %s5 = inlined_call_operand.vmem [shape: s32[2,8], index: 5, kind: output, shape index: {0}]
  %s6 = inlined_call_operand.vmem [shape: f32[6,32], index: 6, kind: output, shape index: {1}]
  %7 = xla_tuple %s5, %s6
  %s8 = sld [smem:[#allocation0]]
  $region38: #{beam_search_forward.1} parent=0
    _
  %s10 = ssub.s32 1, %s8
  %s11 = scalar_select 0, %s10, %s8
  // Predicated region
  $region2: #{beam_search_forward.1} parent=0 // pred_check
    _
  $region3: #{beam_search_forward.1} parent=0 // pred_check_branch
    %13 = sbr.rel (0) target = $region5
  $region4: #{beam_search_forward.1} parent=0 // pred_region
    _
  $region5: #{beam_search_forward.1} parent=0 // pred_fallthru
    _
  // Predicated region
  $region6: #{beam_search_forward.1} parent=0 // pred_check
    _
  $region7: #{beam_search_forward.1} parent=0 // pred_check_branch
    %15 = sbr.rel (0) target = $region9
  $region8: #{beam_search_forward.1} parent=0 // pred_region
    _
  $region9: #{beam_search_forward.1} parent=0 // pred_fallthru
    _
  // Predicated region
  $region10: #{beam_search_forward.1} parent=0 // pred_check
    _
  $region11: #{beam_search_forward.1} parent=0 // pred_check_branch
    %17 = sbr.rel (0) target = $region13
  $region12: #{beam_search_forward.1} parent=0 // pred_region
    _
  $region13: #{beam_search_forward.1} parent=0 // pred_fallthru
    _
  // Predicated region
  $region14: #{beam_search_forward.1} parent=0 // pred_check
    _
  $region15: #{beam_search_forward.1} parent=0 // pred_check_branch
    %19 = sbr.rel (0) target = $region17
  $region16: #{beam_search_forward.1} parent=0 // pred_region
    _
  $region17: #{beam_search_forward.1} parent=0 // pred_fallthru
    _
  // Predicated region
  $region18: #{beam_search_forward.1} parent=0 // pred_check
    _
  $region19: #{beam_search_forward.1} parent=0 // pred_check_branch
    %21 = sbr.rel (0) target = $region21
  $region20: #{beam_search_forward.1} parent=0 // pred_region
    _
  $region21: #{beam_search_forward.1} parent=0 // pred_fallthru
    _
  %v22 = vlaneseq
  %v23 = vshrl.u32 %v22, 7
  %vm24 = vcmp.ge.s32.totalorder %v23, 3
  %v25 = vsel %vm24, 1, 0
  %v26 = vmul.u32 %v25, 3
  %v27 = vsub.s32 %v23, %v26
  %v28 = vlaneseq
  %v29 = vand.u32 %v28, 127
  %v30 = vmul.u32 %v23, 3
  %vm31 = vcmp.ge.s32.totalorder %v29, %v30
  %v32 = vadd.s32 %v23, 1
  %v33 = vmul.u32 %v32, 3
  %vm34 = vcmp.lt.s32.totalorder %v29, %v33
  %vm35 = vmand %vm31, %vm34
  %v36 = vsel %vm35, 1, 0
  %v37 = vcvt.s32.f32 %v36
  %v38 = vmul.u32 %v29, 3
  %vm39 = vcmp.ge.s32.totalorder %v23, %v38
  %v40 = vadd.s32 %v29, 1
  %v41 = vmul.u32 %v40, 3
  %vm42 = vcmp.lt.s32.totalorder %v23, %v41
  %vm43 = vmand %vm39, %vm42
  %v44 = vsel %vm43, 1, 0
  %v45 = vcvt.s32.f32 %v44
  %v46 = vsub.s32 %v23, %v27
  %v47 = vsub.s32 %v29, %v46
  %v48 = vld [vmem:[%s0] sm:$0x3f]
  %vm49 = vcmp.ge.f32.partialorder 0.0, 6.0
  %v50 = vsel %vm49, 1, 0
  %v51 = vcvt.s32.f32 %v50
  %v52 = vsub.f32 1.0, %v51
  %vm53 = vcmp.eq.s32.totalorder %v29, 0
  %v54 = vsel %vm53, 1, 0
  %v55 = vcvt.s32.f32 %v54
  %57 = vrot.lane.b32.xlu0 %v48, 16
  %v58 = vpop.permute.xlu0 %57
  %vm60 = vcmask 130048
  %v61 = vsel %vm60, %v55, %v58
  %v62 = vld [vmem:[%s1] sm:$0xff]
  %v63 = vld [vmem:[%s1 + $0x8] sm:$0xff]
  %v64 = vld [vmem:[%s1 + $0x10] sm:$0xff]
  %v65 = vld [vmem:[%s1 + $0x18] sm:$0xff]
  %v66 = vld [vmem:[%s1 + $0x20] sm:$0xff]
  %v67 = vld [vmem:[%s1 + $0x28] sm:$0xff]
  %v68 = vld [vmem:[%s2] sm:$0x1]
  %v70 = vperm.slane %v68, 0
  %vm72 = vcmask 392192
  %v74 = vsel %vm72, %v61, 0
  %76 = vmatpush.msra.mxu0 0.0
  %77 = vmatpush.msra.mxu0 0.0
  %78 = vmatpush.msra.mxu0 0.0
  %79 = vmatpush.msra.mxu0 0.0
  %80 = vmatpush.msra.mxu0 0.0
  %81 = vmatpush.msra.mxu0 0.0
  %82 = vmatpush.msra.mxu0 0.0
  %83 = vmatpush.msra.mxu0 0.0
  %84 = vmatpush.msra.mxu0 0.0
  %85 = vmatpush.msra.mxu0 0.0
  %86 = vmatpush.msra.mxu0 %v67
  %87 = vmatpush.msra.mxu0 %v66
  %88 = vmatpush.msra.mxu0 %v65
  %89 = vmatpush.msra.mxu0 %v64
  %90 = vmatpush.msra.mxu0 %v63
  %91 = vmatpush.msra.mxu0 %v62
  %92 = vmatmul.f32.gmra.mxu0 %v74
  %v93 = vpop.f32.mrf.mxu0
  %v94 = vadd.f32 %v70, %v93
  %95 = vdwg.mxu0
  %v96 = vtanh.pop %v94
  %v97 = vld [vmem:[%s3] sm:$0xff]
  %v98 = vld [vmem:[%s3 + $0x8] sm:$0xff]
  %v99 = vld [vmem:[%s3 + $0x10] sm:$0xff]
  %v100 = vld [vmem:[%s3 + $0x18] sm:$0xff]
  %v101 = vld [vmem:[%s4] sm:$0x1]
  %v103 = vperm.slane %v101, 0
  %vm105 = vcmask 261120
  %v107 = vsel %vm105, %v96, 0
  %109 = vmatpush.msra.mxu0 0.0
  %110 = vmatpush.msra.mxu0 0.0
  %111 = vmatpush.msra.mxu0 0.0
  %112 = vmatpush.msra.mxu0 0.0
  %113 = vmatpush.msra.mxu0 0.0
  %114 = vmatpush.msra.mxu0 0.0
  %115 = vmatpush.msra.mxu0 0.0
  %116 = vmatpush.msra.mxu0 0.0
  %117 = vmatpush.msra.mxu0 0.0
  %118 = vmatpush.msra.mxu0 0.0
  %119 = vmatpush.msra.mxu0 0.0
  %120 = vmatpush.msra.mxu0 0.0
  %121 = vmatpush.msra.mxu0 %v100
  %122 = vmatpush.msra.mxu0 %v99
  %123 = vmatpush.msra.mxu0 %v98
  %124 = vmatpush.msra.mxu0 %v97
  %125 = vmatmul.f32.gmra.mxu0 %v107
  %v126 = vpop.f32.mrf.mxu0
  %v127 = vadd.f32 %v103, %v126
  %128 = vdwg.mxu0
  %vm129 = vcmask 128000
  %v130 = vsel %vm129, %v127, -inf
  %131 = vmax.xlane.f32.xlu0 %v130
  %v132 = vpop.xlane.xlu0 %131
  %v133 = vsub.f32 %v127, %v132
  %v134 = vmul.f32 %v133, 1.442695
  %v135 = vpow.pop %v134
  %v136 = vsel %vm129, %v135, 0.0
  %137 = vadd.xlane.f32.xlu0 %v136
  %v138 = vpop.xlane.xlu0 %137
  %v139 = vlog2.pop %v138
  %v140 = vmul.f32 %v139, 0.6931472
  %v141 = vsub.f32 %v133, %v140
  %v142 = vadd.f32 %v141, 0.0
  %vm143 = vcmp.eq.s32.totalorder %v27, 0
  %v144 = vsel %vm143, 1, 0
  %vm145 = vcmp.eq.s32.totalorder %v144, 1
  %v146 = vsel %vm145, %v142, 0.0
  %vm147 = vcmp.eq.s32.totalorder %v27, 1
  %v148 = vsel %vm147, 1, 0
  %vm149 = vcmp.eq.s32.totalorder %v148, 1
  %v150 = vsel %vm149, %v142, 0.0
  %vm151 = vcmp.eq.s32.totalorder %v27, 2
  %v152 = vsel %vm151, 1, 0
  %vm153 = vcmp.eq.s32.totalorder %v152, 1
  %v154 = vsel %vm153, %v142, 0.0
  %156 = vrot.lane.b32.xlu0 %v150, 16
  %v157 = vpop.permute.xlu0 %156
  %160 = vrot.lane.b32.xlu0 %v154, 32
  %v161 = vpop.permute.xlu0 %160
  %v163 = vsel %vm60, %v146, %v157
  %v164 = vsel %vm105, %v163, %v161
  %vm165 = vcmask 48128
  %v167 = vsel %vm165, %v37, 0
  %vm169 = vcmask 1045504
  %v171 = vsel %vm169, %v164, 0
  %173 = vmatpush.msra.mxu0 0.0
  %174 = vmatpush.msra.mxu0 0.0
  %175 = vmatpush.msra.mxu0 0.0
  %176 = vmatpush.msra.mxu0 0.0
  %177 = vmatpush.msra.mxu0 0.0
  %178 = vmatpush.msra.mxu0 0.0
  %179 = vmatpush.msra.mxu0 0.0
  %180 = vmatpush.msra.mxu0 0.0
  %181 = vmatpush.msra.mxu0 0.0
  %182 = vmatpush.msra.mxu0 0.0
  %183 = vmatpush.msra.mxu0 0.0
  %184 = vmatpush.msra.mxu0 0.0
  %185 = vmatpush.msra.mxu0 0.0
  %186 = vmatpush.msra.mxu0 0.0
  %187 = vmatpush.msra.mxu0 0.0
  %188 = vmatpush.msra.mxu0 %v171
  %189 = vmatmul.f32.gmra.mxu0 %v167
  %v190 = vpop.f32.mrf.mxu0
  %v191 = vadd.f32 0.0, %v190
  %192 = vdwg.mxu0
  %vm193 = vcmask 386048
  %v194 = vsel %vm193, %v191, -inf
  %195 = vmax.xlane.f32.xlu0 %v194
  %v196 = vpop.xlane.xlu0 %195
  %vm197 = vcmp.eq.f32.partialorder %v191, %v196
  %v198 = vsel %vm197, %v29, 48
  %v199 = vsel %vm193, %v198, 2147483647
  %v200 = vand.u32 %v199, 65535
  %v201 = vshra.s32 %v199, 16
  %v202 = vcvt.s32.f32 %v200
  %v203 = vcvt.s32.f32 %v201
  %204 = vmin.xlane.f32.xlu0 %v203
  %v205 = vpop.xlane.xlu0 %204
  %vm206 = vcmp.eq.f32.partialorder %v203, %v205
  %v207 = vsel %vm206, %v202, inf
  %208 = vmin.xlane.f32.xlu0 %v207
  %v209 = vpop.xlane.xlu0 %208
  %v210 = vcvt.f32.s32 %v209
  %v211 = vcvt.f32.s32 %v205
  %v212 = vshll.u32 %v211, 16
  %v213 = vadd.s32 %v212, %v210
  %v214 = vsel %vm53, %v196, 0.0
  %v215 = vadd.f32 %v214, 0.0
  %v216 = vsel %vm53, %v213, 0
  %vm217 = vcmp.eq.s32.totalorder %v29, %v213
  %v218 = vsel %vm217, -1e+30, %v191
  %v219 = vsel %vm193, %v218, -inf
  %220 = vmax.xlane.f32.xlu0 %v219
  %v221 = vpop.xlane.xlu0 %220
  %vm222 = vcmp.eq.f32.partialorder %v218, %v221
  %v223 = vsel %vm222, %v29, 48
  %v224 = vsel %vm193, %v223, 2147483647
  %v225 = vand.u32 %v224, 65535
  %v226 = vshra.s32 %v224, 16
  %v227 = vcvt.s32.f32 %v225
  %v228 = vcvt.s32.f32 %v226
  %229 = vmin.xlane.f32.xlu0 %v228
  %v230 = vpop.xlane.xlu0 %229
  %vm231 = vcmp.eq.f32.partialorder %v228, %v230
  %v232 = vsel %vm231, %v227, inf
  %233 = vmin.xlane.f32.xlu0 %v232
  %v234 = vpop.xlane.xlu0 %233
  %v235 = vcvt.f32.s32 %v234
  %v236 = vcvt.f32.s32 %v230
  %v237 = vshll.u32 %v236, 16
  %v238 = vadd.s32 %v237, %v235
  %vm239 = vcmp.eq.s32.totalorder %v29, 1
  %v240 = vsel %vm239, %v221, 0.0
  %v241 = vadd.f32 %v215, %v240
  %v242 = vsel %vm239, %v238, 0
  %v243 = vadd.s32 %v216, %v242
  %vm244 = vcmp.eq.s32.totalorder %v29, %v238
  %v245 = vsel %vm244, -1e+30, %v218
  %v246 = vsel %vm193, %v245, -inf
  %247 = vmax.xlane.f32.xlu0 %v246
  %v248 = vpop.xlane.xlu0 %247
  %vm249 = vcmp.eq.f32.partialorder %v245, %v248
  %v250 = vsel %vm249, %v29, 48
  %v251 = vsel %vm193, %v250, 2147483647
  %v252 = vand.u32 %v251, 65535
  %v253 = vshra.s32 %v251, 16
  %v254 = vcvt.s32.f32 %v252
  %v255 = vcvt.s32.f32 %v253
  %256 = vmin.xlane.f32.xlu0 %v255
  %v257 = vpop.xlane.xlu0 %256
  %vm258 = vcmp.eq.f32.partialorder %v255, %v257
  %v259 = vsel %vm258, %v254, inf
  %260 = vmin.xlane.f32.xlu0 %v259
  %v261 = vpop.xlane.xlu0 %260
  %v262 = vcvt.f32.s32 %v261
  %v263 = vcvt.f32.s32 %v257
  %v264 = vshll.u32 %v263, 16
  %v265 = vadd.s32 %v264, %v262
  %vm266 = vcmp.eq.s32.totalorder %v29, 2
  %v267 = vsel %vm266, %v248, 0.0
  %v268 = vadd.f32 %v241, %v267
  %v269 = vsel %vm266, %v265, 0
  %v270 = vadd.s32 %v243, %v269
  %vm271 = vcmp.ge.s32.totalorder %v270, 16
  %v272 = vsel %vm271, 1, 0
  %vm273 = vcmp.ge.s32.totalorder %v270, 32
  %v274 = vsel %vm273, 1, 0
  %v275 = vadd.s32 %v272, %v274
  %v276 = vmul.u32 %v275, 16
  %v277 = vsub.s32 %v270, %v276
  %v278 = vcvt.s32.f32 %v275
  %v279 = vcvt.s32.f32 %v277
  %281 = vrot.lane.b32.xlu0 %v279, 3
  %v282 = vpop.permute.xlu0 %281
  %285 = vrot.lane.b32.xlu0 %v268, 6
  %v286 = vpop.permute.xlu0 %285
  %vm288 = vcmask 23552
  %v289 = vsel %vm288, %v278, %v282
  %v290 = vsel %vm165, %v289, %v286
  %vm291 = vcmask 15360
  %v293 = vsel %vm291, %v45, 0
  %vm295 = vcmask 1041408
  %v297 = vsel %vm295, %v290, 0
  %299 = vmatpush.msra.mxu0 0.0
  %300 = vmatpush.msra.mxu0 0.0
  %301 = vmatpush.msra.mxu0 0.0
  %302 = vmatpush.msra.mxu0 0.0
  %303 = vmatpush.msra.mxu0 0.0
  %304 = vmatpush.msra.mxu0 0.0
  %305 = vmatpush.msra.mxu0 0.0
  %306 = vmatpush.msra.mxu0 0.0
  %307 = vmatpush.msra.mxu0 0.0
  %308 = vmatpush.msra.mxu0 0.0
  %309 = vmatpush.msra.mxu0 0.0
  %310 = vmatpush.msra.mxu0 0.0
  %311 = vmatpush.msra.mxu0 0.0
  %312 = vmatpush.msra.mxu0 0.0
  %313 = vmatpush.msra.mxu0 0.0
  %314 = vmatpush.msra.mxu0 %v297
  %315 = vmatmul.f32.gmra.mxu0 %v293
  %v316 = vpop.f32.mrf.mxu0
  %v317 = vadd.f32 0.0, %v316
  %318 = vdwg.mxu0
  %vm319 = vcmp.eq.s32.totalorder %v29, %v27
  %v320 = vsel %vm319, %v317, 0.0
  %vm321 = vcmask 70656
  %v322 = vsel %vm321, %v320, 0.0
  %323 = vadd.xlane.f32.xlu0 %v322
  %v324 = vpop.xlane.xlu0 %323
  %v325 = vadd.s32 %v27, 3
  %vm326 = vcmp.eq.s32.totalorder %v29, %v325
  %v327 = vsel %vm326, %v317, 0.0
  %v328 = vsel %vm321, %v327, 0.0
  %329 = vadd.xlane.f32.xlu0 %v328
  %v330 = vpop.xlane.xlu0 %329
  %v331 = vadd.s32 %v27, 6
  %vm332 = vcmp.eq.s32.totalorder %v29, %v331
  %v333 = vsel %vm332, %v317, 0.0
  %v334 = vsel %vm321, %v333, 0.0
  %335 = vadd.xlane.f32.xlu0 %v334
  %v336 = vpop.xlane.xlu0 %335
  %v337 = vcvt.f32.s32.to.zero.pseudo %v324
  %vm338 = vcmp.eq.s32.totalorder %v47, %v337
  %v339 = vsel %vm338, 1, 0
  %v340 = vcvt.s32.f32 %v339
  %v341 = vsel %vm105, %v96, 0.0
  %v343 = vsel %vm165, %v340, 0
  %v346 = vsel %vm169, %v341, 0
  %348 = vmatpush.msra.mxu0 0.0
  %349 = vmatpush.msra.mxu0 0.0
  %350 = vmatpush.msra.mxu0 0.0
  %351 = vmatpush.msra.mxu0 0.0
  %352 = vmatpush.msra.mxu0 0.0
  %353 = vmatpush.msra.mxu0 0.0
  %354 = vmatpush.msra.mxu0 0.0
  %355 = vmatpush.msra.mxu0 0.0
  %356 = vmatpush.msra.mxu0 0.0
  %357 = vmatpush.msra.mxu0 0.0
  %358 = vmatpush.msra.mxu0 0.0
  %359 = vmatpush.msra.mxu0 0.0
  %360 = vmatpush.msra.mxu0 0.0
  %361 = vmatpush.msra.mxu0 0.0
  %362 = vmatpush.msra.mxu0 0.0
  %363 = vmatpush.msra.mxu0 %v346
  %364 = vmatmul.f32.gmra.mxu0 %v343
  %v365 = vpop.f32.mrf.mxu0
  %v366 = vadd.f32 0.0, %v365
  %367 = vdwg.mxu0
  %369 = vrot.lane.b32.xlu0 %v366, 96
  %v370 = vpop.permute.xlu0 %369
  %v372 = vsel %vm239, %v330, %v370
  %v373 = vmul.f32 %v51, %v48
  %v374 = vmul.f32 %v52, %v366
  %v375 = vadd.f32 %v373, %v374
  %v376 = vmul.f32 %v51, 0.0
  %v377 = vmul.f32 %v52, %v372
  %v378 = vadd.f32 %v376, %v377
  %v379 = vmul.f32 %v52, %v336
  %v380 = vadd.f32 %v376, %v379
  %v381 = vmul.f32 %v52, %v330
  %v382 = vadd.f32 %v376, %v381
  %vm383 = vcmp.eq.f32.partialorder %v330, 1.0
  %v384 = vsel %vm383, 1, 0
  %v385 = vcvt.s32.f32 %v384
  %v386 = vmax.f32 %v385, 0.0
  %v387 = vmul.f32 %v52, %v386
  %v388 = vadd.f32 %v376, %v387
  %v389 = vsel %vm169, %v388, 0.0
  %v390 = vrot.slane %v389, 4
  %v391 = vadd.f32 %v389, %v390
  %v392 = vrot.slane %v391, 2
  %v393 = vadd.f32 %v391, %v392
  %v394 = vrot.slane %v393, 1
  %v395 = vadd.f32 %v393, %v394
  %vm396 = vcmp.ge.f32.partialorder %v395, 6.0
  %v397 = vsel %vm396, 1, 0
  %v398 = vcvt.s32.f32 %v397
  %v399 = vsub.f32 1.0, %v398
  %v400 = vcvt.f32.s32.to.zero.pseudo %v382
  %vm401 = vcmp.eq.s32.totalorder %v29, %v400
  %v402 = vsel %vm401, 1, 0
  %v403 = vcvt.s32.f32 %v402
  %405 = vrot.lane.b32.xlu0 %v375, 16
  %v406 = vpop.permute.xlu0 %405
  %v408 = vsel %vm60, %v403, %v406
  %v410 = vsel %vm72, %v408, 0
  %412 = vmatpush.msra.mxu0 0.0
  %413 = vmatpush.msra.mxu0 0.0
  %414 = vmatpush.msra.mxu0 0.0
  %415 = vmatpush.msra.mxu0 0.0
  %416 = vmatpush.msra.mxu0 0.0
  %417 = vmatpush.msra.mxu0 0.0
  %418 = vmatpush.msra.mxu0 0.0
  %419 = vmatpush.msra.mxu0 0.0
  %420 = vmatpush.msra.mxu0 0.0
  %421 = vmatpush.msra.mxu0 0.0
  %422 = vmatpush.msra.mxu0 %v67
  %423 = vmatpush.msra.mxu0 %v66
  %424 = vmatpush.msra.mxu0 %v65
  %425 = vmatpush.msra.mxu0 %v64
  %426 = vmatpush.msra.mxu0 %v63
  %427 = vmatpush.msra.mxu0 %v62
  %428 = vmatmul.f32.gmra.mxu0 %v410
  %v429 = vpop.f32.mrf.mxu0
  %v430 = vadd.f32 %v70, %v429
  %431 = vdwg.mxu0
  %v432 = vtanh.pop %v430
  %v434 = vsel %vm105, %v432, 0
  %436 = vmatpush.msra.mxu0 0.0
  %437 = vmatpush.msra.mxu0 0.0
  %438 = vmatpush.msra.mxu0 0.0
  %439 = vmatpush.msra.mxu0 0.0
  %440 = vmatpush.msra.mxu0 0.0
  %441 = vmatpush.msra.mxu0 0.0
  %442 = vmatpush.msra.mxu0 0.0
  %443 = vmatpush.msra.mxu0 0.0
  %444 = vmatpush.msra.mxu0 0.0
  %445 = vmatpush.msra.mxu0 0.0
  %446 = vmatpush.msra.mxu0 0.0
  %447 = vmatpush.msra.mxu0 0.0
  %448 = vmatpush.msra.mxu0 %v100
  %449 = vmatpush.msra.mxu0 %v99
  %450 = vmatpush.msra.mxu0 %v98
  %451 = vmatpush.msra.mxu0 %v97
  %452 = vmatmul.f32.gmra.mxu0 %v434
  %v453 = vpop.f32.mrf.mxu0
  %v454 = vadd.f32 %v103, %v453
  %455 = vdwg.mxu0
  %v456 = vsel %vm129, %v454, -inf
  %457 = vmax.xlane.f32.xlu0 %v456
  %v458 = vpop.xlane.xlu0 %457
  %v459 = vsub.f32 %v454, %v458
  %v460 = vmul.f32 %v459, 1.442695
  %v461 = vpow.pop %v460
  %v462 = vsel %vm129, %v461, 0.0
  %463 = vadd.xlane.f32.xlu0 %v462
  %v464 = vpop.xlane.xlu0 %463
  %v465 = vlog2.pop %v464
  %v466 = vmul.f32 %v465, 0.6931472
  %v467 = vsub.f32 %v459, %v466
  %v468 = vadd.f32 %v380, %v467
  %v469 = vsel %vm145, %v468, 0.0
  %v470 = vsel %vm149, %v468, 0.0
  %v471 = vsel %vm153, %v468, 0.0
  %473 = vrot.lane.b32.xlu0 %v470, 16
  %v474 = vpop.permute.xlu0 %473
  %477 = vrot.lane.b32.xlu0 %v471, 32
  %v478 = vpop.permute.xlu0 %477
  %v480 = vsel %vm60, %v469, %v474
  %v481 = vsel %vm105, %v480, %v478
  %v483 = vsel %vm169, %v481, 0
  %485 = vmatpush.msra.mxu0 0.0
  %486 = vmatpush.msra.mxu0 0.0
  %487 = vmatpush.msra.mxu0 0.0
  %488 = vmatpush.msra.mxu0 0.0
  %489 = vmatpush.msra.mxu0 0.0
  %490 = vmatpush.msra.mxu0 0.0
  %491 = vmatpush.msra.mxu0 0.0
  %492 = vmatpush.msra.mxu0 0.0
  %493 = vmatpush.msra.mxu0 0.0
  %494 = vmatpush.msra.mxu0 0.0
  %495 = vmatpush.msra.mxu0 0.0
  %496 = vmatpush.msra.mxu0 0.0
  %497 = vmatpush.msra.mxu0 0.0
  %498 = vmatpush.msra.mxu0 0.0
  %499 = vmatpush.msra.mxu0 0.0
  %500 = vmatpush.msra.mxu0 %v483
  %501 = vmatmul.f32.gmra.mxu0 %v167
  %v502 = vpop.f32.mrf.mxu0
  %v503 = vadd.f32 0.0, %v502
  %504 = vdwg.mxu0
  %v505 = vsel %vm193, %v503, -inf
  %506 = vmax.xlane.f32.xlu0 %v505
  %v507 = vpop.xlane.xlu0 %506
  %vm508 = vcmp.eq.f32.partialorder %v503, %v507
  %v509 = vsel %vm508, %v29, 48
  %v510 = vsel %vm193, %v509, 2147483647
  %v511 = vand.u32 %v510, 65535
  %v512 = vshra.s32 %v510, 16
  %v513 = vcvt.s32.f32 %v511
  %v514 = vcvt.s32.f32 %v512
  %515 = vmin.xlane.f32.xlu0 %v514
  %v516 = vpop.xlane.xlu0 %515
  %vm517 = vcmp.eq.f32.partialorder %v514, %v516
  %v518 = vsel %vm517, %v513, inf
  %519 = vmin.xlane.f32.xlu0 %v518
  %v520 = vpop.xlane.xlu0 %519
  %v521 = vcvt.f32.s32 %v520
  %v522 = vcvt.f32.s32 %v516
  %v523 = vshll.u32 %v522, 16
  %v524 = vadd.s32 %v523, %v521
  %v525 = vsel %vm53, %v507, 0.0
  %v526 = vadd.f32 %v525, 0.0
  %v527 = vsel %vm53, %v524, 0
  %vm528 = vcmp.eq.s32.totalorder %v29, %v524
  %v529 = vsel %vm528, -1e+30, %v503
  %v530 = vsel %vm193, %v529, -inf
  %531 = vmax.xlane.f32.xlu0 %v530
  %v532 = vpop.xlane.xlu0 %531
  %vm533 = vcmp.eq.f32.partialorder %v529, %v532
  %v534 = vsel %vm533, %v29, 48
  %v535 = vsel %vm193, %v534, 2147483647
  %v536 = vand.u32 %v535, 65535
  %v537 = vshra.s32 %v535, 16
  %v538 = vcvt.s32.f32 %v536
  %v539 = vcvt.s32.f32 %v537
  %540 = vmin.xlane.f32.xlu0 %v539
  %v541 = vpop.xlane.xlu0 %540
  %vm542 = vcmp.eq.f32.partialorder %v539, %v541
  %v543 = vsel %vm542, %v538, inf
  %544 = vmin.xlane.f32.xlu0 %v543
  %v545 = vpop.xlane.xlu0 %544
  %v546 = vcvt.f32.s32 %v545
  %v547 = vcvt.f32.s32 %v541
  %v548 = vshll.u32 %v547, 16
  %v549 = vadd.s32 %v548, %v546
  %v550 = vsel %vm239, %v532, 0.0
  %v551 = vadd.f32 %v526, %v550
  %v552 = vsel %vm239, %v549, 0
  %v553 = vadd.s32 %v527, %v552
  %vm554 = vcmp.eq.s32.totalorder %v29, %v549
  %v555 = vsel %vm554, -1e+30, %v529
  %v556 = vsel %vm193, %v555, -inf
  %557 = vmax.xlane.f32.xlu0 %v556
  %v558 = vpop.xlane.xlu0 %557
  %vm559 = vcmp.eq.f32.partialorder %v555, %v558
  %v560 = vsel %vm559, %v29, 48
  %v561 = vsel %vm193, %v560, 2147483647
  %v562 = vand.u32 %v561, 65535
  %v563 = vshra.s32 %v561, 16
  %v564 = vcvt.s32.f32 %v562
  %v565 = vcvt.s32.f32 %v563
  %566 = vmin.xlane.f32.xlu0 %v565
  %v567 = vpop.xlane.xlu0 %566
  %vm568 = vcmp.eq.f32.partialorder %v565, %v567
  %v569 = vsel %vm568, %v564, inf
  %570 = vmin.xlane.f32.xlu0 %v569
  %v571 = vpop.xlane.xlu0 %570
  %v572 = vcvt.f32.s32 %v571
  %v573 = vcvt.f32.s32 %v567
  %v574 = vshll.u32 %v573, 16
  %v575 = vadd.s32 %v574, %v572
  %v576 = vsel %vm266, %v558, 0.0
  %v577 = vadd.f32 %v551, %v576
  %v578 = vsel %vm266, %v575, 0
  %v579 = vadd.s32 %v553, %v578
  %vm580 = vcmp.ge.s32.totalorder %v579, 16
  %v581 = vsel %vm580, 1, 0
  %vm582 = vcmp.ge.s32.totalorder %v579, 32
  %v583 = vsel %vm582, 1, 0
  %v584 = vadd.s32 %v581, %v583
  %v585 = vmul.u32 %v584, 16
  %v586 = vsub.s32 %v579, %v585
  %v587 = vcvt.s32.f32 %v584
  %v588 = vcvt.s32.f32 %v586
  %590 = vrot.lane.b32.xlu0 %v588, 3
  %v591 = vpop.permute.xlu0 %590
  %594 = vrot.lane.b32.xlu0 %v577, 6
  %v595 = vpop.permute.xlu0 %594
  %v597 = vsel %vm288, %v587, %v591
  %v598 = vsel %vm165, %v597, %v595
  %v600 = vsel %vm295, %v598, 0
  %602 = vmatpush.msra.mxu0 0.0
  %603 = vmatpush.msra.mxu0 0.0
  %604 = vmatpush.msra.mxu0 0.0
  %605 = vmatpush.msra.mxu0 0.0
  %606 = vmatpush.msra.mxu0 0.0
  %607 = vmatpush.msra.mxu0 0.0
  %608 = vmatpush.msra.mxu0 0.0
  %609 = vmatpush.msra.mxu0 0.0
  %610 = vmatpush.msra.mxu0 0.0
  %611 = vmatpush.msra.mxu0 0.0
  %612 = vmatpush.msra.mxu0 0.0
  %613 = vmatpush.msra.mxu0 0.0
  %614 = vmatpush.msra.mxu0 0.0
  %615 = vmatpush.msra.mxu0 0.0
  %616 = vmatpush.msra.mxu0 0.0
  %617 = vmatpush.msra.mxu0 %v600
  %618 = vmatmul.f32.gmra.mxu0 %v293
  %v619 = vpop.f32.mrf.mxu0
  %v620 = vadd.f32 0.0, %v619
  %621 = vdwg.mxu0
  %v622 = vsel %vm319, %v620, 0.0
  %v623 = vsel %vm321, %v622, 0.0
  %624 = vadd.xlane.f32.xlu0 %v623
  %v625 = vpop.xlane.xlu0 %624
  %v626 = vsel %vm326, %v620, 0.0
  %v627 = vsel %vm321, %v626, 0.0
  %628 = vadd.xlane.f32.xlu0 %v627
  %v629 = vpop.xlane.xlu0 %628
  %v630 = vsel %vm332, %v620, 0.0
  %v631 = vsel %vm321, %v630, 0.0
  %632 = vadd.xlane.f32.xlu0 %v631
  %v633 = vpop.xlane.xlu0 %632
  %v634 = vcvt.f32.s32.to.zero.pseudo %v625
  %vm635 = vcmp.eq.s32.totalorder %v47, %v634
  %v636 = vsel %vm635, 1, 0
  %v637 = vcvt.s32.f32 %v636
  %639 = vrot.lane.b32.xlu0 %v378, 32
  %v640 = vpop.permute.xlu0 %639
  %v642 = vsel %vm105, %v432, %v640
  %v644 = vsel %vm165, %v637, 0
  %v647 = vsel %vm169, %v642, 0
  %649 = vmatpush.msra.mxu0 0.0
  %650 = vmatpush.msra.mxu0 0.0
  %651 = vmatpush.msra.mxu0 0.0
  %652 = vmatpush.msra.mxu0 0.0
  %653 = vmatpush.msra.mxu0 0.0
  %654 = vmatpush.msra.mxu0 0.0
  %655 = vmatpush.msra.mxu0 0.0
  %656 = vmatpush.msra.mxu0 0.0
  %657 = vmatpush.msra.mxu0 0.0
  %658 = vmatpush.msra.mxu0 0.0
  %659 = vmatpush.msra.mxu0 0.0
  %660 = vmatpush.msra.mxu0 0.0
  %661 = vmatpush.msra.mxu0 0.0
  %662 = vmatpush.msra.mxu0 0.0
  %663 = vmatpush.msra.mxu0 0.0
  %664 = vmatpush.msra.mxu0 %v647
  %665 = vmatmul.f32.gmra.mxu0 %v644
  %v666 = vpop.f32.mrf.mxu0
  %v667 = vadd.f32 0.0, %v666
  %668 = vdwg.mxu0
  %670 = vrot.lane.b32.xlu0 %v667, 96
  %v671 = vpop.permute.xlu0 %670
  %v673 = vsel %vm266, %v629, %v671
  %v674 = vmul.f32 %v398, %v375
  %v675 = vmul.f32 %v399, %v667
  %v676 = vadd.f32 %v674, %v675
  %v677 = vmul.f32 %v398, %v378
  %v678 = vmul.f32 %v399, %v673
  %v679 = vadd.f32 %v677, %v678
  %v680 = vmul.f32 %v398, %v380
  %v681 = vmul.f32 %v399, %v633
  %v682 = vadd.f32 %v680, %v681
  %v683 = vmul.f32 %v398, %v382
  %v684 = vmul.f32 %v399, %v629
  %v685 = vadd.f32 %v683, %v684
  %vm686 = vcmp.eq.f32.partialorder %v629, 1.0
  %v687 = vsel %vm686, 1, 0
  %v688 = vcvt.s32.f32 %v687
  %v689 = vmax.f32 %v388, %v688
  %v690 = vmul.f32 %v398, %v388
  %v691 = vmul.f32 %v399, %v689
  %v692 = vadd.f32 %v690, %v691
  %v693 = vsel %vm169, %v692, 0.0
  %v694 = vrot.slane %v693, 4
  %v695 = vadd.f32 %v693, %v694
  %v696 = vrot.slane %v695, 2
  %v697 = vadd.f32 %v695, %v696
  %v698 = vrot.slane %v697, 1
  %v699 = vadd.f32 %v697, %v698
  %vm700 = vcmp.ge.f32.partialorder %v699, 6.0
  %v701 = vsel %vm700, 1, 0
  %v702 = vcvt.s32.f32 %v701
  %v703 = vsub.f32 1.0, %v702
  %v704 = vcvt.f32.s32.to.zero.pseudo %v685
  %vm705 = vcmp.eq.s32.totalorder %v29, %v704
  %v706 = vsel %vm705, 1, 0
  %v707 = vcvt.s32.f32 %v706
  %709 = vrot.lane.b32.xlu0 %v676, 16
  %v710 = vpop.permute.xlu0 %709
  %v712 = vsel %vm60, %v707, %v710
  %v714 = vsel %vm72, %v712, 0
  %716 = vmatpush.msra.mxu0 0.0
  %717 = vmatpush.msra.mxu0 0.0
  %718 = vmatpush.msra.mxu0 0.0
  %719 = vmatpush.msra.mxu0 0.0
  %720 = vmatpush.msra.mxu0 0.0
  %721 = vmatpush.msra.mxu0 0.0
  %722 = vmatpush.msra.mxu0 0.0
  %723 = vmatpush.msra.mxu0 0.0
  %724 = vmatpush.msra.mxu0 0.0
  %725 = vmatpush.msra.mxu0 0.0
  %726 = vmatpush.msra.mxu0 %v67
  %727 = vmatpush.msra.mxu0 %v66
  %728 = vmatpush.msra.mxu0 %v65
  %729 = vmatpush.msra.mxu0 %v64
  %730 = vmatpush.msra.mxu0 %v63
  %731 = vmatpush.msra.mxu0 %v62
  %732 = vmatmul.f32.gmra.mxu0 %v714
  %v733 = vpop.f32.mrf.mxu0
  %v734 = vadd.f32 %v70, %v733
  %735 = vdwg.mxu0
  %v736 = vtanh.pop %v734
  %v738 = vsel %vm105, %v736, 0
  %740 = vmatpush.msra.mxu0 0.0
  %741 = vmatpush.msra.mxu0 0.0
  %742 = vmatpush.msra.mxu0 0.0
  %743 = vmatpush.msra.mxu0 0.0
  %744 = vmatpush.msra.mxu0 0.0
  %745 = vmatpush.msra.mxu0 0.0
  %746 = vmatpush.msra.mxu0 0.0
  %747 = vmatpush.msra.mxu0 0.0
  %748 = vmatpush.msra.mxu0 0.0
  %749 = vmatpush.msra.mxu0 0.0
  %750 = vmatpush.msra.mxu0 0.0
  %751 = vmatpush.msra.mxu0 0.0
  %752 = vmatpush.msra.mxu0 %v100
  %753 = vmatpush.msra.mxu0 %v99
  %754 = vmatpush.msra.mxu0 %v98
  %755 = vmatpush.msra.mxu0 %v97
  %756 = vmatmul.f32.gmra.mxu0 %v738
  %v757 = vpop.f32.mrf.mxu0
  %v758 = vadd.f32 %v103, %v757
  %759 = vdwg.mxu0
  %v760 = vsel %vm129, %v758, -inf
  %761 = vmax.xlane.f32.xlu0 %v760
  %v762 = vpop.xlane.xlu0 %761
  %v763 = vsub.f32 %v758, %v762
  %v764 = vmul.f32 %v763, 1.442695
  %v765 = vpow.pop %v764
  %v766 = vsel %vm129, %v765, 0.0
  %767 = vadd.xlane.f32.xlu0 %v766
  %v768 = vpop.xlane.xlu0 %767
  %v769 = vlog2.pop %v768
  %v770 = vmul.f32 %v769, 0.6931472
  %v771 = vsub.f32 %v763, %v770
  %v772 = vadd.f32 %v682, %v771
  %v773 = vsel %vm145, %v772, 0.0
  %v774 = vsel %vm149, %v772, 0.0
  %v775 = vsel %vm153, %v772, 0.0
  %777 = vrot.lane.b32.xlu0 %v774, 16
  %v778 = vpop.permute.xlu0 %777
  %781 = vrot.lane.b32.xlu0 %v775, 32
  %v782 = vpop.permute.xlu0 %781
  %v784 = vsel %vm60, %v773, %v778
  %v785 = vsel %vm105, %v784, %v782
  %v787 = vsel %vm169, %v785, 0
  %789 = vmatpush.msra.mxu0 0.0
  %790 = vmatpush.msra.mxu0 0.0
  %791 = vmatpush.msra.mxu0 0.0
  %792 = vmatpush.msra.mxu0 0.0
  %793 = vmatpush.msra.mxu0 0.0
  %794 = vmatpush.msra.mxu0 0.0
  %795 = vmatpush.msra.mxu0 0.0
  %796 = vmatpush.msra.mxu0 0.0
  %797 = vmatpush.msra.mxu0 0.0
  %798 = vmatpush.msra.mxu0 0.0
  %799 = vmatpush.msra.mxu0 0.0
  %800 = vmatpush.msra.mxu0 0.0
  %801 = vmatpush.msra.mxu0 0.0
  %802 = vmatpush.msra.mxu0 0.0
  %803 = vmatpush.msra.mxu0 0.0
  %804 = vmatpush.msra.mxu0 %v787
  %805 = vmatmul.f32.gmra.mxu0 %v167
  %v806 = vpop.f32.mrf.mxu0
  %v807 = vadd.f32 0.0, %v806
  %808 = vdwg.mxu0
  %v809 = vsel %vm193, %v807, -inf
  %810 = vmax.xlane.f32.xlu0 %v809
  %v811 = vpop.xlane.xlu0 %810
  %vm812 = vcmp.eq.f32.partialorder %v807, %v811
  %v813 = vsel %vm812, %v29, 48
  %v814 = vsel %vm193, %v813, 2147483647
  %v815 = vand.u32 %v814, 65535
  %v816 = vshra.s32 %v814, 16
  %v817 = vcvt.s32.f32 %v815
  %v818 = vcvt.s32.f32 %v816
  %819 = vmin.xlane.f32.xlu0 %v818
  %v820 = vpop.xlane.xlu0 %819
  %vm821 = vcmp.eq.f32.partialorder %v818, %v820
  %v822 = vsel %vm821, %v817, inf
  %823 = vmin.xlane.f32.xlu0 %v822
  %v824 = vpop.xlane.xlu0 %823
  %v825 = vcvt.f32.s32 %v824
  %v826 = vcvt.f32.s32 %v820
  %v827 = vshll.u32 %v826, 16
  %v828 = vadd.s32 %v827, %v825
  %v829 = vsel %vm53, %v811, 0.0
  %v830 = vadd.f32 %v829, 0.0
  %v831 = vsel %vm53, %v828, 0
  %vm832 = vcmp.eq.s32.totalorder %v29, %v828
  %v833 = vsel %vm832, -1e+30, %v807
  %v834 = vsel %vm193, %v833, -inf
  %835 = vmax.xlane.f32.xlu0 %v834
  %v836 = vpop.xlane.xlu0 %835
  %vm837 = vcmp.eq.f32.partialorder %v833, %v836
  %v838 = vsel %vm837, %v29, 48
  %v839 = vsel %vm193, %v838, 2147483647
  %v840 = vand.u32 %v839, 65535
  %v841 = vshra.s32 %v839, 16
  %v842 = vcvt.s32.f32 %v840
  %v843 = vcvt.s32.f32 %v841
  %844 = vmin.xlane.f32.xlu0 %v843
  %v845 = vpop.xlane.xlu0 %844
  %vm846 = vcmp.eq.f32.partialorder %v843, %v845
  %v847 = vsel %vm846, %v842, inf
  %848 = vmin.xlane.f32.xlu0 %v847
  %v849 = vpop.xlane.xlu0 %848
  %v850 = vcvt.f32.s32 %v849
  %v851 = vcvt.f32.s32 %v845
  %v852 = vshll.u32 %v851, 16
  %v853 = vadd.s32 %v852, %v850
  %v854 = vsel %vm239, %v836, 0.0
  %v855 = vadd.f32 %v830, %v854
  %v856 = vsel %vm239, %v853, 0
  %v857 = vadd.s32 %v831, %v856
  %vm858 = vcmp.eq.s32.totalorder %v29, %v853
  %v859 = vsel %vm858, -1e+30, %v833
  %v860 = vsel %vm193, %v859, -inf
  %861 = vmax.xlane.f32.xlu0 %v860
  %v862 = vpop.xlane.xlu0 %861
  %vm863 = vcmp.eq.f32.partialorder %v859, %v862
  %v864 = vsel %vm863, %v29, 48
  %v865 = vsel %vm193, %v864, 2147483647
  %v866 = vand.u32 %v865, 65535
  %v867 = vshra.s32 %v865, 16
  %v868 = vcvt.s32.f32 %v866
  %v869 = vcvt.s32.f32 %v867
  %870 = vmin.xlane.f32.xlu0 %v869
  %v871 = vpop.xlane.xlu0 %870
  %vm872 = vcmp.eq.f32.partialorder %v869, %v871
  %v873 = vsel %vm872, %v868, inf
  %874 = vmin.xlane.f32.xlu0 %v873
  %v875 = vpop.xlane.xlu0 %874
  %v876 = vcvt.f32.s32 %v875
  %v877 = vcvt.f32.s32 %v871
  %v878 = vshll.u32 %v877, 16
  %v879 = vadd.s32 %v878, %v876
  %v880 = vsel %vm266, %v862, 0.0
  %v881 = vadd.f32 %v855, %v880
  %v882 = vsel %vm266, %v879, 0
  %v883 = vadd.s32 %v857, %v882
  %vm884 = vcmp.ge.s32.totalorder %v883, 16
  %v885 = vsel %vm884, 1, 0
  %vm886 = vcmp.ge.s32.totalorder %v883, 32
  %v887 = vsel %vm886, 1, 0
  %v888 = vadd.s32 %v885, %v887
  %v889 = vmul.u32 %v888, 16
  %v890 = vsub.s32 %v883, %v889
  %v891 = vcvt.s32.f32 %v888
  %v892 = vcvt.s32.f32 %v890
  %894 = vrot.lane.b32.xlu0 %v892, 3
  %v895 = vpop.permute.xlu0 %894
  %898 = vrot.lane.b32.xlu0 %v881, 6
  %v899 = vpop.permute.xlu0 %898
  %v901 = vsel %vm288, %v891, %v895
  %v902 = vsel %vm165, %v901, %v899
  %v904 = vsel %vm295, %v902, 0
  %906 = vmatpush.msra.mxu0 0.0
  %907 = vmatpush.msra.mxu0 0.0
  %908 = vmatpush.msra.mxu0 0.0
  %909 = vmatpush.msra.mxu0 0.0
  %910 = vmatpush.msra.mxu0 0.0
  %911 = vmatpush.msra.mxu0 0.0
  %912 = vmatpush.msra.mxu0 0.0
  %913 = vmatpush.msra.mxu0 0.0
  %914 = vmatpush.msra.mxu0 0.0
  %915 = vmatpush.msra.mxu0 0.0
  %916 = vmatpush.msra.mxu0 0.0
  %917 = vmatpush.msra.mxu0 0.0
  %918 = vmatpush.msra.mxu0 0.0
  %919 = vmatpush.msra.mxu0 0.0
  %920 = vmatpush.msra.mxu0 0.0
  %921 = vmatpush.msra.mxu0 %v904
  %922 = vmatmul.f32.gmra.mxu0 %v293
  %v923 = vpop.f32.mrf.mxu0
  %v924 = vadd.f32 0.0, %v923
  %925 = vdwg.mxu0
  %v926 = vsel %vm319, %v924, 0.0
  %v927 = vsel %vm321, %v926, 0.0
  %928 = vadd.xlane.f32.xlu0 %v927
  %v929 = vpop.xlane.xlu0 %928
  %v930 = vsel %vm326, %v924, 0.0
  %v931 = vsel %vm321, %v930, 0.0
  %932 = vadd.xlane.f32.xlu0 %v931
  %v933 = vpop.xlane.xlu0 %932
  %v934 = vsel %vm332, %v924, 0.0
  %v935 = vsel %vm321, %v934, 0.0
  %936 = vadd.xlane.f32.xlu0 %v935
  %v937 = vpop.xlane.xlu0 %936
  %v938 = vcvt.f32.s32.to.zero.pseudo %v929
  %vm939 = vcmp.eq.s32.totalorder %v47, %v938
  %v940 = vsel %vm939, 1, 0
  %v941 = vcvt.s32.f32 %v940
  %943 = vrot.lane.b32.xlu0 %v679, 32
  %v944 = vpop.permute.xlu0 %943
  %v946 = vsel %vm105, %v736, %v944
  %v948 = vsel %vm165, %v941, 0
  %v951 = vsel %vm169, %v946, 0
  %953 = vmatpush.msra.mxu0 0.0
  %954 = vmatpush.msra.mxu0 0.0
  %955 = vmatpush.msra.mxu0 0.0
  %956 = vmatpush.msra.mxu0 0.0
  %957 = vmatpush.msra.mxu0 0.0
  %958 = vmatpush.msra.mxu0 0.0
  %959 = vmatpush.msra.mxu0 0.0
  %960 = vmatpush.msra.mxu0 0.0
  %961 = vmatpush.msra.mxu0 0.0
  %962 = vmatpush.msra.mxu0 0.0
  %963 = vmatpush.msra.mxu0 0.0
  %964 = vmatpush.msra.mxu0 0.0
  %965 = vmatpush.msra.mxu0 0.0
  %966 = vmatpush.msra.mxu0 0.0
  %967 = vmatpush.msra.mxu0 0.0
  %968 = vmatpush.msra.mxu0 %v951
  %969 = vmatmul.f32.gmra.mxu0 %v948
  %v970 = vpop.f32.mrf.mxu0
  %v971 = vadd.f32 0.0, %v970
  %972 = vdwg.mxu0
  %vm973 = vcmp.eq.s32.totalorder %v29, 3
  %975 = vrot.lane.b32.xlu0 %v971, 96
  %v976 = vpop.permute.xlu0 %975
  %v978 = vsel %vm973, %v933, %v976
  %v979 = vmul.f32 %v702, %v676
  %v980 = vmul.f32 %v703, %v971
  %v981 = vadd.f32 %v979, %v980
  %v982 = vmul.f32 %v702, %v679
  %v983 = vmul.f32 %v703, %v978
  %v984 = vadd.f32 %v982, %v983
  %v985 = vmul.f32 %v702, %v682
  %v986 = vmul.f32 %v703, %v937
  %v987 = vadd.f32 %v985, %v986
  %v988 = vmul.f32 %v702, %v685
  %v989 = vmul.f32 %v703, %v933
  %v990 = vadd.f32 %v988, %v989
  %vm991 = vcmp.eq.f32.partialorder %v933, 1.0
  %v992 = vsel %vm991, 1, 0
  %v993 = vcvt.s32.f32 %v992
  %v994 = vmax.f32 %v692, %v993
  %v995 = vmul.f32 %v702, %v692
  %v996 = vmul.f32 %v703, %v994
  %v997 = vadd.f32 %v995, %v996
  %v998 = vsel %vm169, %v997, 0.0
  %v999 = vrot.slane %v998, 4
  %v1000 = vadd.f32 %v998, %v999
  %v1001 = vrot.slane %v1000, 2
  %v1002 = vadd.f32 %v1000, %v1001
  %v1003 = vrot.slane %v1002, 1
  %v1004 = vadd.f32 %v1002, %v1003
  %vm1005 = vcmp.ge.f32.partialorder %v1004, 6.0
  %v1006 = vsel %vm1005, 1, 0
  %v1007 = vcvt.s32.f32 %v1006
  %v1008 = vsub.f32 1.0, %v1007
  %v1009 = vcvt.f32.s32.to.zero.pseudo %v990
  %vm1010 = vcmp.eq.s32.totalorder %v29, %v1009
  %v1011 = vsel %vm1010, 1, 0
  %v1012 = vcvt.s32.f32 %v1011
  %1014 = vrot.lane.b32.xlu0 %v981, 16
  %v1015 = vpop.permute.xlu0 %1014
  %v1017 = vsel %vm60, %v1012, %v1015
  %v1019 = vsel %vm72, %v1017, 0
  %1021 = vmatpush.msra.mxu0 0.0
  %1022 = vmatpush.msra.mxu0 0.0
  %1023 = vmatpush.msra.mxu0 0.0
  %1024 = vmatpush.msra.mxu0 0.0
  %1025 = vmatpush.msra.mxu0 0.0
  %1026 = vmatpush.msra.mxu0 0.0
  %1027 = vmatpush.msra.mxu0 0.0
  %1028 = vmatpush.msra.mxu0 0.0
  %1029 = vmatpush.msra.mxu0 0.0
  %1030 = vmatpush.msra.mxu0 0.0
  %1031 = vmatpush.msra.mxu0 %v67
  %1032 = vmatpush.msra.mxu0 %v66
  %1033 = vmatpush.msra.mxu0 %v65
  %1034 = vmatpush.msra.mxu0 %v64
  %1035 = vmatpush.msra.mxu0 %v63
  %1036 = vmatpush.msra.mxu0 %v62
  %1037 = vmatmul.f32.gmra.mxu0 %v1019
  %v1038 = vpop.f32.mrf.mxu0
  %v1039 = vadd.f32 %v70, %v1038
  %1040 = vdwg.mxu0
  %v1041 = vtanh.pop %v1039
  %v1043 = vsel %vm105, %v1041, 0
  %1045 = vmatpush.msra.mxu0 0.0
  %1046 = vmatpush.msra.mxu0 0.0
  %1047 = vmatpush.msra.mxu0 0.0
  %1048 = vmatpush.msra.mxu0 0.0
  %1049 = vmatpush.msra.mxu0 0.0
  %1050 = vmatpush.msra.mxu0 0.0
  %1051 = vmatpush.msra.mxu0 0.0
  %1052 = vmatpush.msra.mxu0 0.0
  %1053 = vmatpush.msra.mxu0 0.0
  %1054 = vmatpush.msra.mxu0 0.0
  %1055 = vmatpush.msra.mxu0 0.0
  %1056 = vmatpush.msra.mxu0 0.0
  %1057 = vmatpush.msra.mxu0 %v100
  %1058 = vmatpush.msra.mxu0 %v99
  %1059 = vmatpush.msra.mxu0 %v98
  %1060 = vmatpush.msra.mxu0 %v97
  %1061 = vmatmul.f32.gmra.mxu0 %v1043
  %v1062 = vpop.f32.mrf.mxu0
  %v1063 = vadd.f32 %v103, %v1062
  %1064 = vdwg.mxu0
  %v1065 = vsel %vm129, %v1063, -inf
  %1066 = vmax.xlane.f32.xlu0 %v1065
  %v1067 = vpop.xlane.xlu0 %1066
  %v1068 = vsub.f32 %v1063, %v1067
  %v1069 = vmul.f32 %v1068, 1.442695
  %v1070 = vpow.pop %v1069
  %v1071 = vsel %vm129, %v1070, 0.0
  %1072 = vadd.xlane.f32.xlu0 %v1071
  %v1073 = vpop.xlane.xlu0 %1072
  %v1074 = vlog2.pop %v1073
  %v1075 = vmul.f32 %v1074, 0.6931472
  %v1076 = vsub.f32 %v1068, %v1075
  %v1077 = vadd.f32 %v987, %v1076
  %v1078 = vsel %vm145, %v1077, 0.0
  %v1079 = vsel %vm149, %v1077, 0.0
  %v1080 = vsel %vm153, %v1077, 0.0
  %1082 = vrot.lane.b32.xlu0 %v1079, 16
  %v1083 = vpop.permute.xlu0 %1082
  %1086 = vrot.lane.b32.xlu0 %v1080, 32
  %v1087 = vpop.permute.xlu0 %1086
  %v1089 = vsel %vm60, %v1078, %v1083
  %v1090 = vsel %vm105, %v1089, %v1087
  %v1092 = vsel %vm169, %v1090, 0
  %1094 = vmatpush.msra.mxu0 0.0
  %1095 = vmatpush.msra.mxu0 0.0
  %1096 = vmatpush.msra.mxu0 0.0
  %1097 = vmatpush.msra.mxu0 0.0
  %1098 = vmatpush.msra.mxu0 0.0
  %1099 = vmatpush.msra.mxu0 0.0
  %1100 = vmatpush.msra.mxu0 0.0
  %1101 = vmatpush.msra.mxu0 0.0
  %1102 = vmatpush.msra.mxu0 0.0
  %1103 = vmatpush.msra.mxu0 0.0
  %1104 = vmatpush.msra.mxu0 0.0
  %1105 = vmatpush.msra.mxu0 0.0
  %1106 = vmatpush.msra.mxu0 0.0
  %1107 = vmatpush.msra.mxu0 0.0
  %1108 = vmatpush.msra.mxu0 0.0
  %1109 = vmatpush.msra.mxu0 %v1092
  %1110 = vmatmul.f32.gmra.mxu0 %v167
  %v1111 = vpop.f32.mrf.mxu0
  %v1112 = vadd.f32 0.0, %v1111
  %1113 = vdwg.mxu0
  %v1114 = vsel %vm193, %v1112, -inf
  %1115 = vmax.xlane.f32.xlu0 %v1114
  %v1116 = vpop.xlane.xlu0 %1115
  %vm1117 = vcmp.eq.f32.partialorder %v1112, %v1116
  %v1118 = vsel %vm1117, %v29, 48
  %v1119 = vsel %vm193, %v1118, 2147483647
  %v1120 = vand.u32 %v1119, 65535
  %v1121 = vshra.s32 %v1119, 16
  %v1122 = vcvt.s32.f32 %v1120
  %v1123 = vcvt.s32.f32 %v1121
  %1124 = vmin.xlane.f32.xlu0 %v1123
  %v1125 = vpop.xlane.xlu0 %1124
  %vm1126 = vcmp.eq.f32.partialorder %v1123, %v1125
  %v1127 = vsel %vm1126, %v1122, inf
  %1128 = vmin.xlane.f32.xlu0 %v1127
  %v1129 = vpop.xlane.xlu0 %1128
  %v1130 = vcvt.f32.s32 %v1129
  %v1131 = vcvt.f32.s32 %v1125
  %v1132 = vshll.u32 %v1131, 16
  %v1133 = vadd.s32 %v1132, %v1130
  %v1134 = vsel %vm53, %v1116, 0.0
  %v1135 = vadd.f32 %v1134, 0.0
  %v1136 = vsel %vm53, %v1133, 0
  %vm1137 = vcmp.eq.s32.totalorder %v29, %v1133
  %v1138 = vsel %vm1137, -1e+30, %v1112
  %v1139 = vsel %vm193, %v1138, -inf
  %1140 = vmax.xlane.f32.xlu0 %v1139
  %v1141 = vpop.xlane.xlu0 %1140
  %vm1142 = vcmp.eq.f32.partialorder %v1138, %v1141
  %v1143 = vsel %vm1142, %v29, 48
  %v1144 = vsel %vm193, %v1143, 2147483647
  %v1145 = vand.u32 %v1144, 65535
  %v1146 = vshra.s32 %v1144, 16
  %v1147 = vcvt.s32.f32 %v1145
  %v1148 = vcvt.s32.f32 %v1146
  %1149 = vmin.xlane.f32.xlu0 %v1148
  %v1150 = vpop.xlane.xlu0 %1149
  %vm1151 = vcmp.eq.f32.partialorder %v1148, %v1150
  %v1152 = vsel %vm1151, %v1147, inf
  %1153 = vmin.xlane.f32.xlu0 %v1152
  %v1154 = vpop.xlane.xlu0 %1153
  %v1155 = vcvt.f32.s32 %v1154
  %v1156 = vcvt.f32.s32 %v1150
  %v1157 = vshll.u32 %v1156, 16
  %v1158 = vadd.s32 %v1157, %v1155
  %v1159 = vsel %vm239, %v1141, 0.0
  %v1160 = vadd.f32 %v1135, %v1159
  %v1161 = vsel %vm239, %v1158, 0
  %v1162 = vadd.s32 %v1136, %v1161
  %vm1163 = vcmp.eq.s32.totalorder %v29, %v1158
  %v1164 = vsel %vm1163, -1e+30, %v1138
  %v1165 = vsel %vm193, %v1164, -inf
  %1166 = vmax.xlane.f32.xlu0 %v1165
  %v1167 = vpop.xlane.xlu0 %1166
  %vm1168 = vcmp.eq.f32.partialorder %v1164, %v1167
  %v1169 = vsel %vm1168, %v29, 48
  %v1170 = vsel %vm193, %v1169, 2147483647
  %v1171 = vand.u32 %v1170, 65535
  %v1172 = vshra.s32 %v1170, 16
  %v1173 = vcvt.s32.f32 %v1171
  %v1174 = vcvt.s32.f32 %v1172
  %1175 = vmin.xlane.f32.xlu0 %v1174
  %v1176 = vpop.xlane.xlu0 %1175
  %vm1177 = vcmp.eq.f32.partialorder %v1174, %v1176
  %v1178 = vsel %vm1177, %v1173, inf
  %1179 = vmin.xlane.f32.xlu0 %v1178
  %v1180 = vpop.xlane.xlu0 %1179
  %v1181 = vcvt.f32.s32 %v1180
  %v1182 = vcvt.f32.s32 %v1176
  %v1183 = vshll.u32 %v1182, 16
  %v1184 = vadd.s32 %v1183, %v1181
  %v1185 = vsel %vm266, %v1167, 0.0
  %v1186 = vadd.f32 %v1160, %v1185
  %v1187 = vsel %vm266, %v1184, 0
  %v1188 = vadd.s32 %v1162, %v1187
  %vm1189 = vcmp.ge.s32.totalorder %v1188, 16
  %v1190 = vsel %vm1189, 1, 0
  %vm1191 = vcmp.ge.s32.totalorder %v1188, 32
  %v1192 = vsel %vm1191, 1, 0
  %v1193 = vadd.s32 %v1190, %v1192
  %v1194 = vmul.u32 %v1193, 16
  %v1195 = vsub.s32 %v1188, %v1194
  %v1196 = vcvt.s32.f32 %v1193
  %v1197 = vcvt.s32.f32 %v1195
  %1199 = vrot.lane.b32.xlu0 %v1197, 3
  %v1200 = vpop.permute.xlu0 %1199
  %1203 = vrot.lane.b32.xlu0 %v1186, 6
  %v1204 = vpop.permute.xlu0 %1203
  %v1206 = vsel %vm288, %v1196, %v1200
  %v1207 = vsel %vm165, %v1206, %v1204
  %v1209 = vsel %vm295, %v1207, 0
  %1211 = vmatpush.msra.mxu0 0.0
  %1212 = vmatpush.msra.mxu0 0.0
  %1213 = vmatpush.msra.mxu0 0.0
  %1214 = vmatpush.msra.mxu0 0.0
  %1215 = vmatpush.msra.mxu0 0.0
  %1216 = vmatpush.msra.mxu0 0.0
  %1217 = vmatpush.msra.mxu0 0.0
  %1218 = vmatpush.msra.mxu0 0.0
  %1219 = vmatpush.msra.mxu0 0.0
  %1220 = vmatpush.msra.mxu0 0.0
  %1221 = vmatpush.msra.mxu0 0.0
  %1222 = vmatpush.msra.mxu0 0.0
  %1223 = vmatpush.msra.mxu0 0.0
  %1224 = vmatpush.msra.mxu0 0.0
  %1225 = vmatpush.msra.mxu0 0.0
  %1226 = vmatpush.msra.mxu0 %v1209
  %1227 = vmatmul.f32.gmra.mxu0 %v293
  %v1228 = vpop.f32.mrf.mxu0
  %v1229 = vadd.f32 0.0, %v1228
  %1230 = vdwg.mxu0
  %v1231 = vsel %vm319, %v1229, 0.0
  %v1232 = vsel %vm321, %v1231, 0.0
  %1233 = vadd.xlane.f32.xlu0 %v1232
  %v1234 = vpop.xlane.xlu0 %1233
  %v1235 = vsel %vm326, %v1229, 0.0
  %v1236 = vsel %vm321, %v1235, 0.0
  %1237 = vadd.xlane.f32.xlu0 %v1236
  %v1238 = vpop.xlane.xlu0 %1237
  %v1239 = vsel %vm332, %v1229, 0.0
  %v1240 = vsel %vm321, %v1239, 0.0
  %1241 = vadd.xlane.f32.xlu0 %v1240
  %v1242 = vpop.xlane.xlu0 %1241
  %v1243 = vcvt.f32.s32.to.zero.pseudo %v1234
  %vm1244 = vcmp.eq.s32.totalorder %v47, %v1243
  %v1245 = vsel %vm1244, 1, 0
  %v1246 = vcvt.s32.f32 %v1245
  %1248 = vrot.lane.b32.xlu0 %v984, 32
  %v1249 = vpop.permute.xlu0 %1248
  %v1251 = vsel %vm105, %v1041, %v1249
  %v1253 = vsel %vm165, %v1246, 0
  %v1256 = vsel %vm169, %v1251, 0
  %1258 = vmatpush.msra.mxu0 0.0
  %1259 = vmatpush.msra.mxu0 0.0
  %1260 = vmatpush.msra.mxu0 0.0
  %1261 = vmatpush.msra.mxu0 0.0
  %1262 = vmatpush.msra.mxu0 0.0
  %1263 = vmatpush.msra.mxu0 0.0
  %1264 = vmatpush.msra.mxu0 0.0
  %1265 = vmatpush.msra.mxu0 0.0
  %1266 = vmatpush.msra.mxu0 0.0
  %1267 = vmatpush.msra.mxu0 0.0
  %1268 = vmatpush.msra.mxu0 0.0
  %1269 = vmatpush.msra.mxu0 0.0
  %1270 = vmatpush.msra.mxu0 0.0
  %1271 = vmatpush.msra.mxu0 0.0
  %1272 = vmatpush.msra.mxu0 0.0
  %1273 = vmatpush.msra.mxu0 %v1256
  %1274 = vmatmul.f32.gmra.mxu0 %v1253
  %v1275 = vpop.f32.mrf.mxu0
  %v1276 = vadd.f32 0.0, %v1275
  %1277 = vdwg.mxu0
  %vm1278 = vcmp.eq.s32.totalorder %v29, 4
  %1280 = vrot.lane.b32.xlu0 %v1276, 96
  %v1281 = vpop.permute.xlu0 %1280
  %v1283 = vsel %vm1278, %v1238, %v1281
  %v1284 = vmul.f32 %v1007, %v981
  %v1285 = vmul.f32 %v1008, %v1276
  %v1286 = vadd.f32 %v1284, %v1285
  %v1287 = vmul.f32 %v1007, %v984
  %v1288 = vmul.f32 %v1008, %v1283
  %v1289 = vadd.f32 %v1287, %v1288
  %v1290 = vmul.f32 %v1007, %v987
  %v1291 = vmul.f32 %v1008, %v1242
  %v1292 = vadd.f32 %v1290, %v1291
  %v1293 = vmul.f32 %v1007, %v990
  %v1294 = vmul.f32 %v1008, %v1238
  %v1295 = vadd.f32 %v1293, %v1294
  %vm1296 = vcmp.eq.f32.partialorder %v1238, 1.0
  %v1297 = vsel %vm1296, 1, 0
  %v1298 = vcvt.s32.f32 %v1297
  %v1299 = vmax.f32 %v997, %v1298
  %v1300 = vmul.f32 %v1007, %v997
  %v1301 = vmul.f32 %v1008, %v1299
  %v1302 = vadd.f32 %v1300, %v1301
  %v1303 = vsel %vm169, %v1302, 0.0
  %v1304 = vrot.slane %v1303, 4
  %v1305 = vadd.f32 %v1303, %v1304
  %v1306 = vrot.slane %v1305, 2
  %v1307 = vadd.f32 %v1305, %v1306
  %v1308 = vrot.slane %v1307, 1
  %v1309 = vadd.f32 %v1307, %v1308
  %vm1310 = vcmp.ge.f32.partialorder %v1309, 6.0
  %v1311 = vsel %vm1310, 1, 0
  %v1312 = vcvt.s32.f32 %v1311
  %v1313 = vsub.f32 1.0, %v1312
  %v1314 = vcvt.f32.s32.to.zero.pseudo %v1295
  %vm1315 = vcmp.eq.s32.totalorder %v29, %v1314
  %v1316 = vsel %vm1315, 1, 0
  %v1317 = vcvt.s32.f32 %v1316
  %1319 = vrot.lane.b32.xlu0 %v1286, 16
  %v1320 = vpop.permute.xlu0 %1319
  %v1322 = vsel %vm60, %v1317, %v1320
  %v1324 = vsel %vm72, %v1322, 0
  %1326 = vmatpush.msra.mxu0 0.0
  %1327 = vmatpush.msra.mxu0 0.0
  %1328 = vmatpush.msra.mxu0 0.0
  %1329 = vmatpush.msra.mxu0 0.0
  %1330 = vmatpush.msra.mxu0 0.0
  %1331 = vmatpush.msra.mxu0 0.0
  %1332 = vmatpush.msra.mxu0 0.0
  %1333 = vmatpush.msra.mxu0 0.0
  %1334 = vmatpush.msra.mxu0 0.0
  %1335 = vmatpush.msra.mxu0 0.0
  %1336 = vmatpush.msra.mxu0 %v67
  %1337 = vmatpush.msra.mxu0 %v66
  %1338 = vmatpush.msra.mxu0 %v65
  %1339 = vmatpush.msra.mxu0 %v64
  %1340 = vmatpush.msra.mxu0 %v63
  %1341 = vmatpush.msra.mxu0 %v62
  %1342 = vmatmul.f32.gmra.mxu0 %v1324
  %v1343 = vpop.f32.mrf.mxu0
  %v1344 = vadd.f32 %v70, %v1343
  %1345 = vdwg.mxu0
  %v1346 = vtanh.pop %v1344
  %v1348 = vsel %vm105, %v1346, 0
  %1350 = vmatpush.msra.mxu0 0.0
  %1351 = vmatpush.msra.mxu0 0.0
  %1352 = vmatpush.msra.mxu0 0.0
  %1353 = vmatpush.msra.mxu0 0.0
  %1354 = vmatpush.msra.mxu0 0.0
  %1355 = vmatpush.msra.mxu0 0.0
  %1356 = vmatpush.msra.mxu0 0.0
  %1357 = vmatpush.msra.mxu0 0.0
  %1358 = vmatpush.msra.mxu0 0.0
  %1359 = vmatpush.msra.mxu0 0.0
  %1360 = vmatpush.msra.mxu0 0.0
  %1361 = vmatpush.msra.mxu0 0.0
  %1362 = vmatpush.msra.mxu0 %v100
  %1363 = vmatpush.msra.mxu0 %v99
  %1364 = vmatpush.msra.mxu0 %v98
  %1365 = vmatpush.msra.mxu0 %v97
  %1366 = vmatmul.f32.gmra.mxu0 %v1348
  %v1367 = vpop.f32.mrf.mxu0
  %v1368 = vadd.f32 %v103, %v1367
  %1369 = vdwg.mxu0
  %v1370 = vsel %vm129, %v1368, -inf
  %1371 = vmax.xlane.f32.xlu0 %v1370
  %v1372 = vpop.xlane.xlu0 %1371
  %v1373 = vsub.f32 %v1368, %v1372
  %v1374 = vmul.f32 %v1373, 1.442695
  %v1375 = vpow.pop %v1374
  %v1376 = vsel %vm129, %v1375, 0.0
  %1377 = vadd.xlane.f32.xlu0 %v1376
  %v1378 = vpop.xlane.xlu0 %1377
  %v1379 = vlog2.pop %v1378
  %v1380 = vmul.f32 %v1379, 0.6931472
  %v1381 = vsub.f32 %v1373, %v1380
  %v1382 = vadd.f32 %v1292, %v1381
  %v1383 = vsel %vm145, %v1382, 0.0
  %v1384 = vsel %vm149, %v1382, 0.0
  %v1385 = vsel %vm153, %v1382, 0.0
  %1387 = vrot.lane.b32.xlu0 %v1384, 16
  %v1388 = vpop.permute.xlu0 %1387
  %1391 = vrot.lane.b32.xlu0 %v1385, 32
  %v1392 = vpop.permute.xlu0 %1391
  %v1394 = vsel %vm60, %v1383, %v1388
  %v1395 = vsel %vm105, %v1394, %v1392
  %v1397 = vsel %vm169, %v1395, 0
  %1399 = vmatpush.msra.mxu0 0.0
  %1400 = vmatpush.msra.mxu0 0.0
  %1401 = vmatpush.msra.mxu0 0.0
  %1402 = vmatpush.msra.mxu0 0.0
  %1403 = vmatpush.msra.mxu0 0.0
  %1404 = vmatpush.msra.mxu0 0.0
  %1405 = vmatpush.msra.mxu0 0.0
  %1406 = vmatpush.msra.mxu0 0.0
  %1407 = vmatpush.msra.mxu0 0.0
  %1408 = vmatpush.msra.mxu0 0.0
  %1409 = vmatpush.msra.mxu0 0.0
  %1410 = vmatpush.msra.mxu0 0.0
  %1411 = vmatpush.msra.mxu0 0.0
  %1412 = vmatpush.msra.mxu0 0.0
  %1413 = vmatpush.msra.mxu0 0.0
  %1414 = vmatpush.msra.mxu0 %v1397
  %1415 = vmatmul.f32.gmra.mxu0 %v167
  %v1416 = vpop.f32.mrf.mxu0
  %v1417 = vadd.f32 0.0, %v1416
  %1418 = vdwg.mxu0
  %v1419 = vsel %vm193, %v1417, -inf
  %1420 = vmax.xlane.f32.xlu0 %v1419
  %v1421 = vpop.xlane.xlu0 %1420
  %vm1422 = vcmp.eq.f32.partialorder %v1417, %v1421
  %v1423 = vsel %vm1422, %v29, 48
  %v1424 = vsel %vm193, %v1423, 2147483647
  %v1425 = vand.u32 %v1424, 65535
  %v1426 = vshra.s32 %v1424, 16
  %v1427 = vcvt.s32.f32 %v1425
  %v1428 = vcvt.s32.f32 %v1426
  %1429 = vmin.xlane.f32.xlu0 %v1428
  %v1430 = vpop.xlane.xlu0 %1429
  %vm1431 = vcmp.eq.f32.partialorder %v1428, %v1430
  %v1432 = vsel %vm1431, %v1427, inf
  %1433 = vmin.xlane.f32.xlu0 %v1432
  %v1434 = vpop.xlane.xlu0 %1433
  %v1435 = vcvt.f32.s32 %v1434
  %v1436 = vcvt.f32.s32 %v1430
  %v1437 = vshll.u32 %v1436, 16
  %v1438 = vadd.s32 %v1437, %v1435
  %v1439 = vsel %vm53, %v1421, 0.0
  %v1440 = vadd.f32 %v1439, 0.0
  %v1441 = vsel %vm53, %v1438, 0
  %vm1442 = vcmp.eq.s32.totalorder %v29, %v1438
  %v1443 = vsel %vm1442, -1e+30, %v1417
  %v1444 = vsel %vm193, %v1443, -inf
  %1445 = vmax.xlane.f32.xlu0 %v1444
  %v1446 = vpop.xlane.xlu0 %1445
  %vm1447 = vcmp.eq.f32.partialorder %v1443, %v1446
  %v1448 = vsel %vm1447, %v29, 48
  %v1449 = vsel %vm193, %v1448, 2147483647
  %v1450 = vand.u32 %v1449, 65535
  %v1451 = vshra.s32 %v1449, 16
  %v1452 = vcvt.s32.f32 %v1450
  %v1453 = vcvt.s32.f32 %v1451
  %1454 = vmin.xlane.f32.xlu0 %v1453
  %v1455 = vpop.xlane.xlu0 %1454
  %vm1456 = vcmp.eq.f32.partialorder %v1453, %v1455
  %v1457 = vsel %vm1456, %v1452, inf
  %1458 = vmin.xlane.f32.xlu0 %v1457
  %v1459 = vpop.xlane.xlu0 %1458
  %v1460 = vcvt.f32.s32 %v1459
  %v1461 = vcvt.f32.s32 %v1455
  %v1462 = vshll.u32 %v1461, 16
  %v1463 = vadd.s32 %v1462, %v1460
  %v1464 = vsel %vm239, %v1446, 0.0
  %v1465 = vadd.f32 %v1440, %v1464
  %v1466 = vsel %vm239, %v1463, 0
  %v1467 = vadd.s32 %v1441, %v1466
  %vm1468 = vcmp.eq.s32.totalorder %v29, %v1463
  %v1469 = vsel %vm1468, -1e+30, %v1443
  %v1470 = vsel %vm193, %v1469, -inf
  %1471 = vmax.xlane.f32.xlu0 %v1470
  %v1472 = vpop.xlane.xlu0 %1471
  %vm1473 = vcmp.eq.f32.partialorder %v1469, %v1472
  %v1474 = vsel %vm1473, %v29, 48
  %v1475 = vsel %vm193, %v1474, 2147483647
  %v1476 = vand.u32 %v1475, 65535
  %v1477 = vshra.s32 %v1475, 16
  %v1478 = vcvt.s32.f32 %v1476
  %v1479 = vcvt.s32.f32 %v1477
  %1480 = vmin.xlane.f32.xlu0 %v1479
  %v1481 = vpop.xlane.xlu0 %1480
  %vm1482 = vcmp.eq.f32.partialorder %v1479, %v1481
  %v1483 = vsel %vm1482, %v1478, inf
  %1484 = vmin.xlane.f32.xlu0 %v1483
  %v1485 = vpop.xlane.xlu0 %1484
  %v1486 = vcvt.f32.s32 %v1485
  %v1487 = vcvt.f32.s32 %v1481
  %v1488 = vshll.u32 %v1487, 16
  %v1489 = vadd.s32 %v1488, %v1486
  %v1490 = vsel %vm266, %v1472, 0.0
  %v1491 = vadd.f32 %v1465, %v1490
  %v1492 = vsel %vm266, %v1489, 0
  %v1493 = vadd.s32 %v1467, %v1492
  %vm1494 = vcmp.ge.s32.totalorder %v1493, 16
  %v1495 = vsel %vm1494, 1, 0
  %vm1496 = vcmp.ge.s32.totalorder %v1493, 32
  %v1497 = vsel %vm1496, 1, 0
  %v1498 = vadd.s32 %v1495, %v1497
  %v1499 = vmul.u32 %v1498, 16
  %v1500 = vsub.s32 %v1493, %v1499
  %v1501 = vcvt.s32.f32 %v1498
  %v1502 = vcvt.s32.f32 %v1500
  %1504 = vrot.lane.b32.xlu0 %v1502, 3
  %v1505 = vpop.permute.xlu0 %1504
  %1508 = vrot.lane.b32.xlu0 %v1491, 6
  %v1509 = vpop.permute.xlu0 %1508
  %v1511 = vsel %vm288, %v1501, %v1505
  %v1512 = vsel %vm165, %v1511, %v1509
  %v1514 = vsel %vm295, %v1512, 0
  %1516 = vmatpush.msra.mxu0 0.0
  %1517 = vmatpush.msra.mxu0 0.0
  %1518 = vmatpush.msra.mxu0 0.0
  %1519 = vmatpush.msra.mxu0 0.0
  %1520 = vmatpush.msra.mxu0 0.0
  %1521 = vmatpush.msra.mxu0 0.0
  %1522 = vmatpush.msra.mxu0 0.0
  %1523 = vmatpush.msra.mxu0 0.0
  %1524 = vmatpush.msra.mxu0 0.0
  %1525 = vmatpush.msra.mxu0 0.0
  %1526 = vmatpush.msra.mxu0 0.0
  %1527 = vmatpush.msra.mxu0 0.0
  %1528 = vmatpush.msra.mxu0 0.0
  %1529 = vmatpush.msra.mxu0 0.0
  %1530 = vmatpush.msra.mxu0 0.0
  %1531 = vmatpush.msra.mxu0 %v1514
  %1532 = vmatmul.f32.gmra.mxu0 %v293
  %v1533 = vpop.f32.mrf.mxu0
  %v1534 = vadd.f32 0.0, %v1533
  %1535 = vdwg.mxu0
  %v1536 = vsel %vm319, %v1534, 0.0
  %v1537 = vsel %vm321, %v1536, 0.0
  %1538 = vadd.xlane.f32.xlu0 %v1537
  %v1539 = vpop.xlane.xlu0 %1538
  %v1540 = vsel %vm326, %v1534, 0.0
  %v1541 = vsel %vm321, %v1540, 0.0
  %1542 = vadd.xlane.f32.xlu0 %v1541
  %v1543 = vpop.xlane.xlu0 %1542
  %v1544 = vsel %vm332, %v1534, 0.0
  %v1545 = vsel %vm321, %v1544, 0.0
  %1546 = vadd.xlane.f32.xlu0 %v1545
  %v1547 = vpop.xlane.xlu0 %1546
  %v1548 = vcvt.f32.s32.to.zero.pseudo %v1539
  %vm1549 = vcmp.eq.s32.totalorder %v47, %v1548
  %v1550 = vsel %vm1549, 1, 0
  %v1551 = vcvt.s32.f32 %v1550
  %1553 = vrot.lane.b32.xlu0 %v1289, 32
  %v1554 = vpop.permute.xlu0 %1553
  %v1556 = vsel %vm105, %v1346, %v1554
  %v1558 = vsel %vm165, %v1551, 0
  %v1561 = vsel %vm169, %v1556, 0
  %1563 = vmatpush.msra.mxu0 0.0
  %1564 = vmatpush.msra.mxu0 0.0
  %1565 = vmatpush.msra.mxu0 0.0
  %1566 = vmatpush.msra.mxu0 0.0
  %1567 = vmatpush.msra.mxu0 0.0
  %1568 = vmatpush.msra.mxu0 0.0
  %1569 = vmatpush.msra.mxu0 0.0
  %1570 = vmatpush.msra.mxu0 0.0
  %1571 = vmatpush.msra.mxu0 0.0
  %1572 = vmatpush.msra.mxu0 0.0
  %1573 = vmatpush.msra.mxu0 0.0
  %1574 = vmatpush.msra.mxu0 0.0
  %1575 = vmatpush.msra.mxu0 0.0
  %1576 = vmatpush.msra.mxu0 0.0
  %1577 = vmatpush.msra.mxu0 0.0
  %1578 = vmatpush.msra.mxu0 %v1561
  %1579 = vmatmul.f32.gmra.mxu0 %v1558
  %v1580 = vpop.f32.mrf.mxu0
  %v1581 = vadd.f32 0.0, %v1580
  %1582 = vdwg.mxu0
  %vm1583 = vcmp.eq.s32.totalorder %v29, 5
  %1585 = vrot.lane.b32.xlu0 %v1581, 96
  %v1586 = vpop.permute.xlu0 %1585
  %v1588 = vsel %vm1583, %v1543, %v1586
  %v1589 = vmul.f32 %v1312, %v1286
  %v1590 = vmul.f32 %v1313, %v1581
  %v1591 = vadd.f32 %v1589, %v1590
  %v1592 = vmul.f32 %v1312, %v1289
  %v1593 = vmul.f32 %v1313, %v1588
  %v1594 = vadd.f32 %v1592, %v1593
  %v1595 = vmul.f32 %v1312, %v1292
  %v1596 = vmul.f32 %v1313, %v1547
  %v1597 = vadd.f32 %v1595, %v1596
  %v1598 = vmul.f32 %v1312, %v1295
  %v1599 = vmul.f32 %v1313, %v1543
  %v1600 = vadd.f32 %v1598, %v1599
  %vm1601 = vcmp.eq.f32.partialorder %v1543, 1.0
  %v1602 = vsel %vm1601, 1, 0
  %v1603 = vcvt.s32.f32 %v1602
  %v1604 = vmax.f32 %v1302, %v1603
  %v1605 = vmul.f32 %v1312, %v1302
  %v1606 = vmul.f32 %v1313, %v1604
  %v1607 = vadd.f32 %v1605, %v1606
  %v1608 = vsel %vm169, %v1607, 0.0
  %v1609 = vrot.slane %v1608, 4
  %v1610 = vadd.f32 %v1608, %v1609
  %v1611 = vrot.slane %v1610, 2
  %v1612 = vadd.f32 %v1610, %v1611
  %v1613 = vrot.slane %v1612, 1
  %v1614 = vadd.f32 %v1612, %v1613
  %vm1615 = vcmp.ge.f32.partialorder %v1614, 6.0
  %v1616 = vsel %vm1615, 1, 0
  %v1617 = vcvt.s32.f32 %v1616
  %v1618 = vsub.f32 1.0, %v1617
  %v1619 = vcvt.f32.s32.to.zero.pseudo %v1600
  %vm1620 = vcmp.eq.s32.totalorder %v29, %v1619
  %v1621 = vsel %vm1620, 1, 0
  %v1622 = vcvt.s32.f32 %v1621
  %1624 = vrot.lane.b32.xlu0 %v1591, 16
  %v1625 = vpop.permute.xlu0 %1624
  %v1627 = vsel %vm60, %v1622, %v1625
  %v1629 = vsel %vm72, %v1627, 0
  %1631 = vmatpush.msra.mxu0 0.0
  %1632 = vmatpush.msra.mxu0 0.0
  %1633 = vmatpush.msra.mxu0 0.0
  %1634 = vmatpush.msra.mxu0 0.0
  %1635 = vmatpush.msra.mxu0 0.0
  %1636 = vmatpush.msra.mxu0 0.0
  %1637 = vmatpush.msra.mxu0 0.0
  %1638 = vmatpush.msra.mxu0 0.0
  %1639 = vmatpush.msra.mxu0 0.0
  %1640 = vmatpush.msra.mxu0 0.0
  %1641 = vmatpush.msra.mxu0 %v67
  %1642 = vmatpush.msra.mxu0 %v66
  %1643 = vmatpush.msra.mxu0 %v65
  %1644 = vmatpush.msra.mxu0 %v64
  %1645 = vmatpush.msra.mxu0 %v63
  %1646 = vmatpush.msra.mxu0 %v62
  %1647 = vmatmul.f32.gmra.mxu0 %v1629
  %v1648 = vpop.f32.mrf.mxu0
  %v1649 = vadd.f32 %v70, %v1648
  %1650 = vdwg.mxu0
  %v1651 = vtanh.pop %v1649
  %v1653 = vsel %vm105, %v1651, 0
  %1655 = vmatpush.msra.mxu0 0.0
  %1656 = vmatpush.msra.mxu0 0.0
  %1657 = vmatpush.msra.mxu0 0.0
  %1658 = vmatpush.msra.mxu0 0.0
  %1659 = vmatpush.msra.mxu0 0.0
  %1660 = vmatpush.msra.mxu0 0.0
  %1661 = vmatpush.msra.mxu0 0.0
  %1662 = vmatpush.msra.mxu0 0.0
  %1663 = vmatpush.msra.mxu0 0.0
  %1664 = vmatpush.msra.mxu0 0.0
  %1665 = vmatpush.msra.mxu0 0.0
  %1666 = vmatpush.msra.mxu0 0.0
  %1667 = vmatpush.msra.mxu0 %v100
  %1668 = vmatpush.msra.mxu0 %v99
  %1669 = vmatpush.msra.mxu0 %v98
  %1670 = vmatpush.msra.mxu0 %v97
  %1671 = vmatmul.f32.gmra.mxu0 %v1653
  %v1672 = vpop.f32.mrf.mxu0
  %v1673 = vadd.f32 %v103, %v1672
  %1674 = vdwg.mxu0
  %v1675 = vsel %vm129, %v1673, -inf
  %1676 = vmax.xlane.f32.xlu0 %v1675
  %v1677 = vpop.xlane.xlu0 %1676
  %v1678 = vsub.f32 %v1673, %v1677
  %v1679 = vmul.f32 %v1678, 1.442695
  %v1680 = vpow.pop %v1679
  %v1681 = vsel %vm129, %v1680, 0.0
  %1682 = vadd.xlane.f32.xlu0 %v1681
  %v1683 = vpop.xlane.xlu0 %1682
  %v1684 = vlog2.pop %v1683
  %v1685 = vmul.f32 %v1684, 0.6931472
  %v1686 = vsub.f32 %v1678, %v1685
  %v1687 = vadd.f32 %v1597, %v1686
  %v1688 = vsel %vm145, %v1687, 0.0
  %v1689 = vsel %vm149, %v1687, 0.0
  %v1690 = vsel %vm153, %v1687, 0.0
  %1692 = vrot.lane.b32.xlu0 %v1689, 16
  %v1693 = vpop.permute.xlu0 %1692
  %1696 = vrot.lane.b32.xlu0 %v1690, 32
  %v1697 = vpop.permute.xlu0 %1696
  %v1699 = vsel %vm60, %v1688, %v1693
  %v1700 = vsel %vm105, %v1699, %v1697
  %v1702 = vsel %vm169, %v1700, 0
  %1704 = vmatpush.msra.mxu0 0.0
  %1705 = vmatpush.msra.mxu0 0.0
  %1706 = vmatpush.msra.mxu0 0.0
  %1707 = vmatpush.msra.mxu0 0.0
  %1708 = vmatpush.msra.mxu0 0.0
  %1709 = vmatpush.msra.mxu0 0.0
  %1710 = vmatpush.msra.mxu0 0.0
  %1711 = vmatpush.msra.mxu0 0.0
  %1712 = vmatpush.msra.mxu0 0.0
  %1713 = vmatpush.msra.mxu0 0.0
  %1714 = vmatpush.msra.mxu0 0.0
  %1715 = vmatpush.msra.mxu0 0.0
  %1716 = vmatpush.msra.mxu0 0.0
  %1717 = vmatpush.msra.mxu0 0.0
  %1718 = vmatpush.msra.mxu0 0.0
  %1719 = vmatpush.msra.mxu0 %v1702
  %1720 = vmatmul.f32.gmra.mxu0 %v167
  %v1721 = vpop.f32.mrf.mxu0
  %v1722 = vadd.f32 0.0, %v1721
  %1723 = vdwg.mxu0
  %v1724 = vsel %vm193, %v1722, -inf
  %1725 = vmax.xlane.f32.xlu0 %v1724
  %v1726 = vpop.xlane.xlu0 %1725
  %vm1727 = vcmp.eq.f32.partialorder %v1722, %v1726
  %v1728 = vsel %vm1727, %v29, 48
  %v1729 = vsel %vm193, %v1728, 2147483647
  %v1730 = vand.u32 %v1729, 65535
  %v1731 = vshra.s32 %v1729, 16
  %v1732 = vcvt.s32.f32 %v1730
  %v1733 = vcvt.s32.f32 %v1731
  %1734 = vmin.xlane.f32.xlu0 %v1733
  %v1735 = vpop.xlane.xlu0 %1734
  %vm1736 = vcmp.eq.f32.partialorder %v1733, %v1735
  %v1737 = vsel %vm1736, %v1732, inf
  %1738 = vmin.xlane.f32.xlu0 %v1737
  %v1739 = vpop.xlane.xlu0 %1738
  %v1740 = vcvt.f32.s32 %v1739
  %v1741 = vcvt.f32.s32 %v1735
  %v1742 = vshll.u32 %v1741, 16
  %v1743 = vadd.s32 %v1742, %v1740
  %v1744 = vsel %vm53, %v1726, 0.0
  %v1745 = vadd.f32 %v1744, 0.0
  %v1746 = vsel %vm53, %v1743, 0
  %vm1747 = vcmp.eq.s32.totalorder %v29, %v1743
  %v1748 = vsel %vm1747, -1e+30, %v1722
  %v1749 = vsel %vm193, %v1748, -inf
  %1750 = vmax.xlane.f32.xlu0 %v1749
  %v1751 = vpop.xlane.xlu0 %1750
  %vm1752 = vcmp.eq.f32.partialorder %v1748, %v1751
  %v1753 = vsel %vm1752, %v29, 48
  %v1754 = vsel %vm193, %v1753, 2147483647
  %v1755 = vand.u32 %v1754, 65535
  %v1756 = vshra.s32 %v1754, 16
  %v1757 = vcvt.s32.f32 %v1755
  %v1758 = vcvt.s32.f32 %v1756
  %1759 = vmin.xlane.f32.xlu0 %v1758
  %v1760 = vpop.xlane.xlu0 %1759
  %vm1761 = vcmp.eq.f32.partialorder %v1758, %v1760
  %v1762 = vsel %vm1761, %v1757, inf
  %1763 = vmin.xlane.f32.xlu0 %v1762
  %v1764 = vpop.xlane.xlu0 %1763
  %v1765 = vcvt.f32.s32 %v1764
  %v1766 = vcvt.f32.s32 %v1760
  %v1767 = vshll.u32 %v1766, 16
  %v1768 = vadd.s32 %v1767, %v1765
  %v1769 = vsel %vm239, %v1751, 0.0
  %v1770 = vadd.f32 %v1745, %v1769
  %v1771 = vsel %vm239, %v1768, 0
  %v1772 = vadd.s32 %v1746, %v1771
  %vm1773 = vcmp.eq.s32.totalorder %v29, %v1768
  %v1774 = vsel %vm1773, -1e+30, %v1748
  %v1775 = vsel %vm193, %v1774, -inf
  %1776 = vmax.xlane.f32.xlu0 %v1775
  %v1777 = vpop.xlane.xlu0 %1776
  %vm1778 = vcmp.eq.f32.partialorder %v1774, %v1777
  %v1779 = vsel %vm1778, %v29, 48
  %v1780 = vsel %vm193, %v1779, 2147483647
  %v1781 = vand.u32 %v1780, 65535
  %v1782 = vshra.s32 %v1780, 16
  %v1783 = vcvt.s32.f32 %v1781
  %v1784 = vcvt.s32.f32 %v1782
  %1785 = vmin.xlane.f32.xlu0 %v1784
  %v1786 = vpop.xlane.xlu0 %1785
  %vm1787 = vcmp.eq.f32.partialorder %v1784, %v1786
  %v1788 = vsel %vm1787, %v1783, inf
  %1789 = vmin.xlane.f32.xlu0 %v1788
  %v1790 = vpop.xlane.xlu0 %1789
  %v1791 = vcvt.f32.s32 %v1790
  %v1792 = vcvt.f32.s32 %v1786
  %v1793 = vshll.u32 %v1792, 16
  %v1794 = vadd.s32 %v1793, %v1791
  %v1795 = vsel %vm266, %v1777, 0.0
  %v1796 = vadd.f32 %v1770, %v1795
  %v1797 = vsel %vm266, %v1794, 0
  %v1798 = vadd.s32 %v1772, %v1797
  %vm1799 = vcmp.ge.s32.totalorder %v1798, 16
  %v1800 = vsel %vm1799, 1, 0
  %vm1801 = vcmp.ge.s32.totalorder %v1798, 32
  %v1802 = vsel %vm1801, 1, 0
  %v1803 = vadd.s32 %v1800, %v1802
  %v1804 = vmul.u32 %v1803, 16
  %v1805 = vsub.s32 %v1798, %v1804
  %v1806 = vcvt.s32.f32 %v1803
  %v1807 = vcvt.s32.f32 %v1805
  %1809 = vrot.lane.b32.xlu0 %v1807, 3
  %v1810 = vpop.permute.xlu0 %1809
  %1813 = vrot.lane.b32.xlu0 %v1796, 6
  %v1814 = vpop.permute.xlu0 %1813
  %v1816 = vsel %vm288, %v1806, %v1810
  %v1817 = vsel %vm165, %v1816, %v1814
  %v1819 = vsel %vm295, %v1817, 0
  %1821 = vmatpush.msra.mxu0 0.0
  %1822 = vmatpush.msra.mxu0 0.0
  %1823 = vmatpush.msra.mxu0 0.0
  %1824 = vmatpush.msra.mxu0 0.0
  %1825 = vmatpush.msra.mxu0 0.0
  %1826 = vmatpush.msra.mxu0 0.0
  %1827 = vmatpush.msra.mxu0 0.0
  %1828 = vmatpush.msra.mxu0 0.0
  %1829 = vmatpush.msra.mxu0 0.0
  %1830 = vmatpush.msra.mxu0 0.0
  %1831 = vmatpush.msra.mxu0 0.0
  %1832 = vmatpush.msra.mxu0 0.0
  %1833 = vmatpush.msra.mxu0 0.0
  %1834 = vmatpush.msra.mxu0 0.0
  %1835 = vmatpush.msra.mxu0 0.0
  %1836 = vmatpush.msra.mxu0 %v1819
  %1837 = vmatmul.f32.gmra.mxu0 %v293
  %v1838 = vpop.f32.mrf.mxu0
  %v1839 = vadd.f32 0.0, %v1838
  %1840 = vdwg.mxu0
  %v1841 = vsel %vm319, %v1839, 0.0
  %v1842 = vsel %vm321, %v1841, 0.0
  %1843 = vadd.xlane.f32.xlu0 %v1842
  %v1844 = vpop.xlane.xlu0 %1843
  %v1845 = vsel %vm326, %v1839, 0.0
  %v1846 = vsel %vm321, %v1845, 0.0
  %1847 = vadd.xlane.f32.xlu0 %v1846
  %v1848 = vpop.xlane.xlu0 %1847
  %v1849 = vsel %vm332, %v1839, 0.0
  %v1850 = vsel %vm321, %v1849, 0.0
  %1851 = vadd.xlane.f32.xlu0 %v1850
  %v1852 = vpop.xlane.xlu0 %1851
  %v1853 = vcvt.f32.s32.to.zero.pseudo %v1844
  %vm1854 = vcmp.eq.s32.totalorder %v47, %v1853
  %v1855 = vsel %vm1854, 1, 0
  %v1856 = vcvt.s32.f32 %v1855
  %1858 = vrot.lane.b32.xlu0 %v1594, 32
  %v1859 = vpop.permute.xlu0 %1858
  %v1861 = vsel %vm105, %v1651, %v1859
  %v1863 = vsel %vm165, %v1856, 0
  %v1866 = vsel %vm169, %v1861, 0
  %1868 = vmatpush.msra.mxu0 0.0
  %1869 = vmatpush.msra.mxu0 0.0
  %1870 = vmatpush.msra.mxu0 0.0
  %1871 = vmatpush.msra.mxu0 0.0
  %1872 = vmatpush.msra.mxu0 0.0
  %1873 = vmatpush.msra.mxu0 0.0
  %1874 = vmatpush.msra.mxu0 0.0
  %1875 = vmatpush.msra.mxu0 0.0
  %1876 = vmatpush.msra.mxu0 0.0
  %1877 = vmatpush.msra.mxu0 0.0
  %1878 = vmatpush.msra.mxu0 0.0
  %1879 = vmatpush.msra.mxu0 0.0
  %1880 = vmatpush.msra.mxu0 0.0
  %1881 = vmatpush.msra.mxu0 0.0
  %1882 = vmatpush.msra.mxu0 0.0
  %1883 = vmatpush.msra.mxu0 %v1866
  %1884 = vmatmul.f32.gmra.mxu0 %v1863
  %v1885 = vpop.f32.mrf.mxu0
  %v1886 = vadd.f32 0.0, %v1885
  %1887 = vdwg.mxu0
  %vm1888 = vcmp.eq.s32.totalorder %v29, 6
  %1890 = vrot.lane.b32.xlu0 %v1886, 96
  %v1891 = vpop.permute.xlu0 %1890
  %v1893 = vsel %vm1888, %v1848, %v1891
  %v1894 = vmul.f32 %v1617, %v1591
  %v1895 = vmul.f32 %v1618, %v1886
  %v1896 = vadd.f32 %v1894, %v1895
  %v1897 = vmul.f32 %v1617, %v1594
  %v1898 = vmul.f32 %v1618, %v1893
  %v1899 = vadd.f32 %v1897, %v1898
  %v1900 = vmul.f32 %v1617, %v1597
  %v1901 = vmul.f32 %v1618, %v1852
  %v1902 = vadd.f32 %v1900, %v1901
  %v1903 = vmul.f32 %v1617, %v1600
  %v1904 = vmul.f32 %v1618, %v1848
  %v1905 = vadd.f32 %v1903, %v1904
  %vm1906 = vcmp.eq.f32.partialorder %v1848, 1.0
  %v1907 = vsel %vm1906, 1, 0
  %v1908 = vcvt.s32.f32 %v1907
  %v1909 = vmax.f32 %v1607, %v1908
  %v1910 = vmul.f32 %v1617, %v1607
  %v1911 = vmul.f32 %v1618, %v1909
  %v1912 = vadd.f32 %v1910, %v1911
  %v1913 = vsel %vm169, %v1912, 0.0
  %v1914 = vrot.slane %v1913, 4
  %v1915 = vadd.f32 %v1913, %v1914
  %v1916 = vrot.slane %v1915, 2
  %v1917 = vadd.f32 %v1915, %v1916
  %v1918 = vrot.slane %v1917, 1
  %v1919 = vadd.f32 %v1917, %v1918
  %vm1920 = vcmp.ge.f32.partialorder %v1919, 6.0
  %v1921 = vsel %vm1920, 1, 0
  %v1922 = vcvt.s32.f32 %v1921
  %v1923 = vsub.f32 1.0, %v1922
  %v1924 = vcvt.f32.s32.to.zero.pseudo %v1905
  %vm1925 = vcmp.eq.s32.totalorder %v29, %v1924
  %v1926 = vsel %vm1925, 1, 0
  %v1927 = vcvt.s32.f32 %v1926
  %1929 = vrot.lane.b32.xlu0 %v1896, 16
  %v1930 = vpop.permute.xlu0 %1929
  %v1932 = vsel %vm60, %v1927, %v1930
  %v1934 = vsel %vm72, %v1932, 0
  %1936 = vmatpush.msra.mxu0 0.0
  %1937 = vmatpush.msra.mxu0 0.0
  %1938 = vmatpush.msra.mxu0 0.0
  %1939 = vmatpush.msra.mxu0 0.0
  %1940 = vmatpush.msra.mxu0 0.0
  %1941 = vmatpush.msra.mxu0 0.0
  %1942 = vmatpush.msra.mxu0 0.0
  %1943 = vmatpush.msra.mxu0 0.0
  %1944 = vmatpush.msra.mxu0 0.0
  %1945 = vmatpush.msra.mxu0 0.0
  %1946 = vmatpush.msra.mxu0 %v67
  %1947 = vmatpush.msra.mxu0 %v66
  %1948 = vmatpush.msra.mxu0 %v65
  %1949 = vmatpush.msra.mxu0 %v64
  %1950 = vmatpush.msra.mxu0 %v63
  %1951 = vmatpush.msra.mxu0 %v62
  %1952 = vmatmul.f32.gmra.mxu0 %v1934
  %v1953 = vpop.f32.mrf.mxu0
  %v1954 = vadd.f32 %v70, %v1953
  %1955 = vdwg.mxu0
  %v1956 = vtanh.pop %v1954
  %v1958 = vsel %vm105, %v1956, 0
  %1960 = vmatpush.msra.mxu0 0.0
  %1961 = vmatpush.msra.mxu0 0.0
  %1962 = vmatpush.msra.mxu0 0.0
  %1963 = vmatpush.msra.mxu0 0.0
  %1964 = vmatpush.msra.mxu0 0.0
  %1965 = vmatpush.msra.mxu0 0.0
  %1966 = vmatpush.msra.mxu0 0.0
  %1967 = vmatpush.msra.mxu0 0.0
  %1968 = vmatpush.msra.mxu0 0.0
  %1969 = vmatpush.msra.mxu0 0.0
  %1970 = vmatpush.msra.mxu0 0.0
  %1971 = vmatpush.msra.mxu0 0.0
  %1972 = vmatpush.msra.mxu0 %v100
  %1973 = vmatpush.msra.mxu0 %v99
  %1974 = vmatpush.msra.mxu0 %v98
  %1975 = vmatpush.msra.mxu0 %v97
  %1976 = vmatmul.f32.gmra.mxu0 %v1958
  %v1977 = vpop.f32.mrf.mxu0
  %v1978 = vadd.f32 %v103, %v1977
  %1979 = vdwg.mxu0
  %v1980 = vsel %vm129, %v1978, -inf
  %1981 = vmax.xlane.f32.xlu0 %v1980
  %v1982 = vpop.xlane.xlu0 %1981
  %v1983 = vsub.f32 %v1978, %v1982
  %v1984 = vmul.f32 %v1983, 1.442695
  %v1985 = vpow.pop %v1984
  %v1986 = vsel %vm129, %v1985, 0.0
  %1987 = vadd.xlane.f32.xlu0 %v1986
  %v1988 = vpop.xlane.xlu0 %1987
  %v1989 = vlog2.pop %v1988
  %v1990 = vmul.f32 %v1989, 0.6931472
  %v1991 = vsub.f32 %v1983, %v1990
  %v1992 = vadd.f32 %v1902, %v1991
  %v1993 = vsel %vm145, %v1992, 0.0
  %v1994 = vsel %vm149, %v1992, 0.0
  %v1995 = vsel %vm153, %v1992, 0.0
  %1997 = vrot.lane.b32.xlu0 %v1994, 16
  %v1998 = vpop.permute.xlu0 %1997
  %2001 = vrot.lane.b32.xlu0 %v1995, 32
  %v2002 = vpop.permute.xlu0 %2001
  %v2004 = vsel %vm60, %v1993, %v1998
  %v2005 = vsel %vm105, %v2004, %v2002
  %v2007 = vsel %vm169, %v2005, 0
  %2009 = vmatpush.msra.mxu0 0.0
  %2010 = vmatpush.msra.mxu0 0.0
  %2011 = vmatpush.msra.mxu0 0.0
  %2012 = vmatpush.msra.mxu0 0.0
  %2013 = vmatpush.msra.mxu0 0.0
  %2014 = vmatpush.msra.mxu0 0.0
  %2015 = vmatpush.msra.mxu0 0.0
  %2016 = vmatpush.msra.mxu0 0.0
  %2017 = vmatpush.msra.mxu0 0.0
  %2018 = vmatpush.msra.mxu0 0.0
  %2019 = vmatpush.msra.mxu0 0.0
  %2020 = vmatpush.msra.mxu0 0.0
  %2021 = vmatpush.msra.mxu0 0.0
  %2022 = vmatpush.msra.mxu0 0.0
  %2023 = vmatpush.msra.mxu0 0.0
  %2024 = vmatpush.msra.mxu0 %v2007
  %2025 = vmatmul.f32.gmra.mxu0 %v167
  %v2026 = vpop.f32.mrf.mxu0
  %v2027 = vadd.f32 0.0, %v2026
  %2028 = vdwg.mxu0
  %v2029 = vsel %vm193, %v2027, -inf
  %2030 = vmax.xlane.f32.xlu0 %v2029
  %v2031 = vpop.xlane.xlu0 %2030
  %vm2032 = vcmp.eq.f32.partialorder %v2027, %v2031
  %v2033 = vsel %vm2032, %v29, 48
  %v2034 = vsel %vm193, %v2033, 2147483647
  %v2035 = vand.u32 %v2034, 65535
  %v2036 = vshra.s32 %v2034, 16
  %v2037 = vcvt.s32.f32 %v2035
  %v2038 = vcvt.s32.f32 %v2036
  %2039 = vmin.xlane.f32.xlu0 %v2038
  %v2040 = vpop.xlane.xlu0 %2039
  %vm2041 = vcmp.eq.f32.partialorder %v2038, %v2040
  %v2042 = vsel %vm2041, %v2037, inf
  %2043 = vmin.xlane.f32.xlu0 %v2042
  %v2044 = vpop.xlane.xlu0 %2043
  %v2045 = vcvt.f32.s32 %v2044
  %v2046 = vcvt.f32.s32 %v2040
  %v2047 = vshll.u32 %v2046, 16
  %v2048 = vadd.s32 %v2047, %v2045
  %v2049 = vsel %vm53, %v2031, 0.0
  %v2050 = vadd.f32 %v2049, 0.0
  %v2051 = vsel %vm53, %v2048, 0
  %vm2052 = vcmp.eq.s32.totalorder %v29, %v2048
  %v2053 = vsel %vm2052, -1e+30, %v2027
  %v2054 = vsel %vm193, %v2053, -inf
  %2055 = vmax.xlane.f32.xlu0 %v2054
  %v2056 = vpop.xlane.xlu0 %2055
  %vm2057 = vcmp.eq.f32.partialorder %v2053, %v2056
  %v2058 = vsel %vm2057, %v29, 48
  %v2059 = vsel %vm193, %v2058, 2147483647
  %v2060 = vand.u32 %v2059, 65535
  %v2061 = vshra.s32 %v2059, 16
  %v2062 = vcvt.s32.f32 %v2060
  %v2063 = vcvt.s32.f32 %v2061
  %2064 = vmin.xlane.f32.xlu0 %v2063
  %v2065 = vpop.xlane.xlu0 %2064
  %vm2066 = vcmp.eq.f32.partialorder %v2063, %v2065
  %v2067 = vsel %vm2066, %v2062, inf
  %2068 = vmin.xlane.f32.xlu0 %v2067
  %v2069 = vpop.xlane.xlu0 %2068
  %v2070 = vcvt.f32.s32 %v2069
  %v2071 = vcvt.f32.s32 %v2065
  %v2072 = vshll.u32 %v2071, 16
  %v2073 = vadd.s32 %v2072, %v2070
  %v2074 = vsel %vm239, %v2056, 0.0
  %v2075 = vadd.f32 %v2050, %v2074
  %v2076 = vsel %vm239, %v2073, 0
  %v2077 = vadd.s32 %v2051, %v2076
  %vm2078 = vcmp.eq.s32.totalorder %v29, %v2073
  %v2079 = vsel %vm2078, -1e+30, %v2053
  %v2080 = vsel %vm193, %v2079, -inf
  %2081 = vmax.xlane.f32.xlu0 %v2080
  %v2082 = vpop.xlane.xlu0 %2081
  %vm2083 = vcmp.eq.f32.partialorder %v2079, %v2082
  %v2084 = vsel %vm2083, %v29, 48
  %v2085 = vsel %vm193, %v2084, 2147483647
  %v2086 = vand.u32 %v2085, 65535
  %v2087 = vshra.s32 %v2085, 16
  %v2088 = vcvt.s32.f32 %v2086
  %v2089 = vcvt.s32.f32 %v2087
  %2090 = vmin.xlane.f32.xlu0 %v2089
  %v2091 = vpop.xlane.xlu0 %2090
  %vm2092 = vcmp.eq.f32.partialorder %v2089, %v2091
  %v2093 = vsel %vm2092, %v2088, inf
  %2094 = vmin.xlane.f32.xlu0 %v2093
  %v2095 = vpop.xlane.xlu0 %2094
  %v2096 = vcvt.f32.s32 %v2095
  %v2097 = vcvt.f32.s32 %v2091
  %v2098 = vshll.u32 %v2097, 16
  %v2099 = vadd.s32 %v2098, %v2096
  %v2100 = vsel %vm266, %v2082, 0.0
  %v2101 = vadd.f32 %v2075, %v2100
  %v2102 = vsel %vm266, %v2099, 0
  %v2103 = vadd.s32 %v2077, %v2102
  %vm2104 = vcmp.ge.s32.totalorder %v2103, 16
  %v2105 = vsel %vm2104, 1, 0
  %vm2106 = vcmp.ge.s32.totalorder %v2103, 32
  %v2107 = vsel %vm2106, 1, 0
  %v2108 = vadd.s32 %v2105, %v2107
  %v2109 = vmul.u32 %v2108, 16
  %v2110 = vsub.s32 %v2103, %v2109
  %v2111 = vcvt.s32.f32 %v2108
  %v2112 = vcvt.s32.f32 %v2110
  %2114 = vrot.lane.b32.xlu0 %v2112, 3
  %v2115 = vpop.permute.xlu0 %2114
  %2118 = vrot.lane.b32.xlu0 %v2101, 6
  %v2119 = vpop.permute.xlu0 %2118
  %v2121 = vsel %vm288, %v2111, %v2115
  %v2122 = vsel %vm165, %v2121, %v2119
  %v2124 = vsel %vm295, %v2122, 0
  %2126 = vmatpush.msra.mxu0 0.0
  %2127 = vmatpush.msra.mxu0 0.0
  %2128 = vmatpush.msra.mxu0 0.0
  %2129 = vmatpush.msra.mxu0 0.0
  %2130 = vmatpush.msra.mxu0 0.0
  %2131 = vmatpush.msra.mxu0 0.0
  %2132 = vmatpush.msra.mxu0 0.0
  %2133 = vmatpush.msra.mxu0 0.0
  %2134 = vmatpush.msra.mxu0 0.0
  %2135 = vmatpush.msra.mxu0 0.0
  %2136 = vmatpush.msra.mxu0 0.0
  %2137 = vmatpush.msra.mxu0 0.0
  %2138 = vmatpush.msra.mxu0 0.0
  %2139 = vmatpush.msra.mxu0 0.0
  %2140 = vmatpush.msra.mxu0 0.0
  %2141 = vmatpush.msra.mxu0 %v2124
  %2142 = vmatmul.f32.gmra.mxu0 %v293
  %v2143 = vpop.f32.mrf.mxu0
  %v2144 = vadd.f32 0.0, %v2143
  %2145 = vdwg.mxu0
  %v2146 = vsel %vm319, %v2144, 0.0
  %v2147 = vsel %vm321, %v2146, 0.0
  %2148 = vadd.xlane.f32.xlu0 %v2147
  %v2149 = vpop.xlane.xlu0 %2148
  %v2150 = vsel %vm326, %v2144, 0.0
  %v2151 = vsel %vm321, %v2150, 0.0
  %2152 = vadd.xlane.f32.xlu0 %v2151
  %v2153 = vpop.xlane.xlu0 %2152
  %v2154 = vsel %vm332, %v2144, 0.0
  %v2155 = vsel %vm321, %v2154, 0.0
  %2156 = vadd.xlane.f32.xlu0 %v2155
  %v2157 = vpop.xlane.xlu0 %2156
  %v2158 = vcvt.f32.s32.to.zero.pseudo %v2149
  %vm2159 = vcmp.eq.s32.totalorder %v47, %v2158
  %v2160 = vsel %vm2159, 1, 0
  %v2161 = vcvt.s32.f32 %v2160
  %2163 = vrot.lane.b32.xlu0 %v1899, 32
  %v2164 = vpop.permute.xlu0 %2163
  %v2166 = vsel %vm105, %v1956, %v2164
  %v2168 = vsel %vm165, %v2161, 0
  %v2171 = vsel %vm169, %v2166, 0
  %2173 = vmatpush.msra.mxu0 0.0
  %2174 = vmatpush.msra.mxu0 0.0
  %2175 = vmatpush.msra.mxu0 0.0
  %2176 = vmatpush.msra.mxu0 0.0
  %2177 = vmatpush.msra.mxu0 0.0
  %2178 = vmatpush.msra.mxu0 0.0
  %2179 = vmatpush.msra.mxu0 0.0
  %2180 = vmatpush.msra.mxu0 0.0
  %2181 = vmatpush.msra.mxu0 0.0
  %2182 = vmatpush.msra.mxu0 0.0
  %2183 = vmatpush.msra.mxu0 0.0
  %2184 = vmatpush.msra.mxu0 0.0
  %2185 = vmatpush.msra.mxu0 0.0
  %2186 = vmatpush.msra.mxu0 0.0
  %2187 = vmatpush.msra.mxu0 0.0
  %2188 = vmatpush.msra.mxu0 %v2171
  %2189 = vmatmul.f32.gmra.mxu0 %v2168
  %v2190 = vpop.f32.mrf.mxu0
  %v2191 = vadd.f32 0.0, %v2190
  %2192 = vdwg.mxu0
  %vm2193 = vcmp.eq.s32.totalorder %v29, 7
  %2195 = vrot.lane.b32.xlu0 %v2191, 96
  %v2196 = vpop.permute.xlu0 %2195
  %v2198 = vsel %vm2193, %v2153, %v2196
  %v2199 = vmul.f32 %v1922, %v1896
  %v2200 = vmul.f32 %v1923, %v2191
  %v2201 = vadd.f32 %v2199, %v2200
  %v2202 = vmul.f32 %v1922, %v1899
  %v2203 = vmul.f32 %v1923, %v2198
  %v2204 = vadd.f32 %v2202, %v2203
  %v2205 = vmul.f32 %v1922, %v1902
  %v2206 = vmul.f32 %v1923, %v2157
  %v2207 = vadd.f32 %v2205, %v2206
  %v2208 = vmul.f32 %v1922, %v1905
  %v2209 = vmul.f32 %v1923, %v2153
  %v2210 = vadd.f32 %v2208, %v2209
  %vm2211 = vcmp.eq.f32.partialorder %v2153, 1.0
  %v2212 = vsel %vm2211, 1, 0
  %v2213 = vcvt.s32.f32 %v2212
  %v2214 = vmax.f32 %v1912, %v2213
  %v2215 = vmul.f32 %v1922, %v1912
  %v2216 = vmul.f32 %v1923, %v2214
  %v2217 = vadd.f32 %v2215, %v2216
  %v2218 = vsel %vm169, %v2217, 0.0
  %v2219 = vrot.slane %v2218, 4
  %v2220 = vadd.f32 %v2218, %v2219
  %v2221 = vrot.slane %v2220, 2
  %v2222 = vadd.f32 %v2220, %v2221
  %v2223 = vrot.slane %v2222, 1
  %v2224 = vadd.f32 %v2222, %v2223
  %vm2225 = vcmp.ge.f32.partialorder %v2224, 6.0
  %v2226 = vsel %vm2225, 1, 0
  %v2227 = vcvt.s32.f32 %v2226
  %v2228 = vsub.f32 1.0, %v2227
  %v2229 = vcvt.f32.s32.to.zero.pseudo %v2210
  %vm2230 = vcmp.eq.s32.totalorder %v29, %v2229
  %v2231 = vsel %vm2230, 1, 0
  %v2232 = vcvt.s32.f32 %v2231
  %2234 = vrot.lane.b32.xlu0 %v2201, 16
  %v2235 = vpop.permute.xlu0 %2234
  %v2237 = vsel %vm60, %v2232, %v2235
  %v2239 = vsel %vm72, %v2237, 0
  %2241 = vmatpush.msra.mxu0 0.0
  %2242 = vmatpush.msra.mxu0 0.0
  %2243 = vmatpush.msra.mxu0 0.0
  %2244 = vmatpush.msra.mxu0 0.0
  %2245 = vmatpush.msra.mxu0 0.0
  %2246 = vmatpush.msra.mxu0 0.0
  %2247 = vmatpush.msra.mxu0 0.0
  %2248 = vmatpush.msra.mxu0 0.0
  %2249 = vmatpush.msra.mxu0 0.0
  %2250 = vmatpush.msra.mxu0 0.0
  %2251 = vmatpush.msra.mxu0 %v67
  %2252 = vmatpush.msra.mxu0 %v66
  %2253 = vmatpush.msra.mxu0 %v65
  %2254 = vmatpush.msra.mxu0 %v64
  %2255 = vmatpush.msra.mxu0 %v63
  %2256 = vmatpush.msra.mxu0 %v62
  %2257 = vmatmul.f32.gmra.mxu0 %v2239
  %v2258 = vpop.f32.mrf.mxu0
  %v2259 = vadd.f32 %v70, %v2258
  %2260 = vdwg.mxu0
  %v2261 = vtanh.pop %v2259
  %v2263 = vsel %vm105, %v2261, 0
  %2265 = vmatpush.msra.mxu0 0.0
  %2266 = vmatpush.msra.mxu0 0.0
  %2267 = vmatpush.msra.mxu0 0.0
  %2268 = vmatpush.msra.mxu0 0.0
  %2269 = vmatpush.msra.mxu0 0.0
  %2270 = vmatpush.msra.mxu0 0.0
  %2271 = vmatpush.msra.mxu0 0.0
  %2272 = vmatpush.msra.mxu0 0.0
  %2273 = vmatpush.msra.mxu0 0.0
  %2274 = vmatpush.msra.mxu0 0.0
  %2275 = vmatpush.msra.mxu0 0.0
  %2276 = vmatpush.msra.mxu0 0.0
  %2277 = vmatpush.msra.mxu0 %v100
  %2278 = vmatpush.msra.mxu0 %v99
  %2279 = vmatpush.msra.mxu0 %v98
  %2280 = vmatpush.msra.mxu0 %v97
  %2281 = vmatmul.f32.gmra.mxu0 %v2263
  %v2282 = vpop.f32.mrf.mxu0
  %v2283 = vadd.f32 %v103, %v2282
  %2284 = vdwg.mxu0
  %v2285 = vsel %vm129, %v2283, -inf
  %2286 = vmax.xlane.f32.xlu0 %v2285
  %v2287 = vpop.xlane.xlu0 %2286
  %v2288 = vsub.f32 %v2283, %v2287
  %v2289 = vmul.f32 %v2288, 1.442695
  %v2290 = vpow.pop %v2289
  %v2291 = vsel %vm129, %v2290, 0.0
  %2292 = vadd.xlane.f32.xlu0 %v2291
  %v2293 = vpop.xlane.xlu0 %2292
  %v2294 = vlog2.pop %v2293
  %v2295 = vmul.f32 %v2294, 0.6931472
  %v2296 = vsub.f32 %v2288, %v2295
  %v2297 = vadd.f32 %v2207, %v2296
  %v2298 = vsel %vm145, %v2297, 0.0
  %v2299 = vsel %vm149, %v2297, 0.0
  %v2300 = vsel %vm153, %v2297, 0.0
  %2302 = vrot.lane.b32.xlu0 %v2299, 16
  %v2303 = vpop.permute.xlu0 %2302
  %2306 = vrot.lane.b32.xlu0 %v2300, 32
  %v2307 = vpop.permute.xlu0 %2306
  %v2309 = vsel %vm60, %v2298, %v2303
  %v2310 = vsel %vm105, %v2309, %v2307
  %v2312 = vsel %vm169, %v2310, 0
  %2314 = vmatpush.msra.mxu0 0.0
  %2315 = vmatpush.msra.mxu0 0.0
  %2316 = vmatpush.msra.mxu0 0.0
  %2317 = vmatpush.msra.mxu0 0.0
  %2318 = vmatpush.msra.mxu0 0.0
  %2319 = vmatpush.msra.mxu0 0.0
  %2320 = vmatpush.msra.mxu0 0.0
  %2321 = vmatpush.msra.mxu0 0.0
  %2322 = vmatpush.msra.mxu0 0.0
  %2323 = vmatpush.msra.mxu0 0.0
  %2324 = vmatpush.msra.mxu0 0.0
  %2325 = vmatpush.msra.mxu0 0.0
  %2326 = vmatpush.msra.mxu0 0.0
  %2327 = vmatpush.msra.mxu0 0.0
  %2328 = vmatpush.msra.mxu0 0.0
  %2329 = vmatpush.msra.mxu0 %v2312
  %2330 = vmatmul.f32.gmra.mxu0 %v167
  %v2331 = vpop.f32.mrf.mxu0
  %v2332 = vadd.f32 0.0, %v2331
  %2333 = vdwg.mxu0
  %v2334 = vsel %vm193, %v2332, -inf
  %2335 = vmax.xlane.f32.xlu0 %v2334
  %v2336 = vpop.xlane.xlu0 %2335
  %vm2337 = vcmp.eq.f32.partialorder %v2332, %v2336
  %v2338 = vsel %vm2337, %v29, 48
  %v2339 = vsel %vm193, %v2338, 2147483647
  %v2340 = vand.u32 %v2339, 65535
  %v2341 = vshra.s32 %v2339, 16
  %v2342 = vcvt.s32.f32 %v2340
  %v2343 = vcvt.s32.f32 %v2341
  %2344 = vmin.xlane.f32.xlu0 %v2343
  %v2345 = vpop.xlane.xlu0 %2344
  %vm2346 = vcmp.eq.f32.partialorder %v2343, %v2345
  %v2347 = vsel %vm2346, %v2342, inf
  %2348 = vmin.xlane.f32.xlu0 %v2347
  %v2349 = vpop.xlane.xlu0 %2348
  %v2350 = vcvt.f32.s32 %v2349
  %v2351 = vcvt.f32.s32 %v2345
  %v2352 = vshll.u32 %v2351, 16
  %v2353 = vadd.s32 %v2352, %v2350
  %v2354 = vsel %vm53, %v2336, 0.0
  %v2355 = vadd.f32 %v2354, 0.0
  %v2356 = vsel %vm53, %v2353, 0
  %vm2357 = vcmp.eq.s32.totalorder %v29, %v2353
  %v2358 = vsel %vm2357, -1e+30, %v2332
  %v2359 = vsel %vm193, %v2358, -inf
  %2360 = vmax.xlane.f32.xlu0 %v2359
  %v2361 = vpop.xlane.xlu0 %2360
  %vm2362 = vcmp.eq.f32.partialorder %v2358, %v2361
  %v2363 = vsel %vm2362, %v29, 48
  %v2364 = vsel %vm193, %v2363, 2147483647
  %v2365 = vand.u32 %v2364, 65535
  %v2366 = vshra.s32 %v2364, 16
  %v2367 = vcvt.s32.f32 %v2365
  %v2368 = vcvt.s32.f32 %v2366
  %2369 = vmin.xlane.f32.xlu0 %v2368
  %v2370 = vpop.xlane.xlu0 %2369
  %vm2371 = vcmp.eq.f32.partialorder %v2368, %v2370
  %v2372 = vsel %vm2371, %v2367, inf
  %2373 = vmin.xlane.f32.xlu0 %v2372
  %v2374 = vpop.xlane.xlu0 %2373
  %v2375 = vcvt.f32.s32 %v2374
  %v2376 = vcvt.f32.s32 %v2370
  %v2377 = vshll.u32 %v2376, 16
  %v2378 = vadd.s32 %v2377, %v2375
  %v2379 = vsel %vm239, %v2361, 0.0
  %v2380 = vadd.f32 %v2355, %v2379
  %v2381 = vsel %vm239, %v2378, 0
  %v2382 = vadd.s32 %v2356, %v2381
  %vm2383 = vcmp.eq.s32.totalorder %v29, %v2378
  %v2384 = vsel %vm2383, -1e+30, %v2358
  %v2385 = vsel %vm193, %v2384, -inf
  %2386 = vmax.xlane.f32.xlu0 %v2385
  %v2387 = vpop.xlane.xlu0 %2386
  %vm2388 = vcmp.eq.f32.partialorder %v2384, %v2387
  %v2389 = vsel %vm2388, %v29, 48
  %v2390 = vsel %vm193, %v2389, 2147483647
  %v2391 = vand.u32 %v2390, 65535
  %v2392 = vshra.s32 %v2390, 16
  %v2393 = vcvt.s32.f32 %v2391
  %v2394 = vcvt.s32.f32 %v2392
  %2395 = vmin.xlane.f32.xlu0 %v2394
  %v2396 = vpop.xlane.xlu0 %2395
  %vm2397 = vcmp.eq.f32.partialorder %v2394, %v2396
  %v2398 = vsel %vm2397, %v2393, inf
  %2399 = vmin.xlane.f32.xlu0 %v2398
  %v2400 = vpop.xlane.xlu0 %2399
  %v2401 = vcvt.f32.s32 %v2400
  %v2402 = vcvt.f32.s32 %v2396
  %v2403 = vshll.u32 %v2402, 16
  %v2404 = vadd.s32 %v2403, %v2401
  %v2405 = vsel %vm266, %v2387, 0.0
  %v2406 = vadd.f32 %v2380, %v2405
  %v2407 = vsel %vm266, %v2404, 0
  %v2408 = vadd.s32 %v2382, %v2407
  %vm2409 = vcmp.ge.s32.totalorder %v2408, 16
  %v2410 = vsel %vm2409, 1, 0
  %vm2411 = vcmp.ge.s32.totalorder %v2408, 32
  %v2412 = vsel %vm2411, 1, 0
  %v2413 = vadd.s32 %v2410, %v2412
  %v2414 = vmul.u32 %v2413, 16
  %v2415 = vsub.s32 %v2408, %v2414
  %v2416 = vcvt.s32.f32 %v2413
  %v2417 = vcvt.s32.f32 %v2415
  %2419 = vrot.lane.b32.xlu0 %v2417, 3
  %v2420 = vpop.permute.xlu0 %2419
  %2423 = vrot.lane.b32.xlu0 %v2406, 6
  %v2424 = vpop.permute.xlu0 %2423
  %v2426 = vsel %vm288, %v2416, %v2420
  %v2427 = vsel %vm165, %v2426, %v2424
  %v2429 = vsel %vm295, %v2427, 0
  %2431 = vmatpush.msra.mxu0 0.0
  %2432 = vmatpush.msra.mxu0 0.0
  %2433 = vmatpush.msra.mxu0 0.0
  %2434 = vmatpush.msra.mxu0 0.0
  %2435 = vmatpush.msra.mxu0 0.0
  %2436 = vmatpush.msra.mxu0 0.0
  %2437 = vmatpush.msra.mxu0 0.0
  %2438 = vmatpush.msra.mxu0 0.0
  %2439 = vmatpush.msra.mxu0 0.0
  %2440 = vmatpush.msra.mxu0 0.0
  %2441 = vmatpush.msra.mxu0 0.0
  %2442 = vmatpush.msra.mxu0 0.0
  %2443 = vmatpush.msra.mxu0 0.0
  %2444 = vmatpush.msra.mxu0 0.0
  %2445 = vmatpush.msra.mxu0 0.0
  %2446 = vmatpush.msra.mxu0 %v2429
  %2447 = vmatmul.f32.gmra.mxu0 %v293
  %v2448 = vpop.f32.mrf.mxu0
  %v2449 = vadd.f32 0.0, %v2448
  %2450 = vdwg.mxu0
  %v2451 = vsel %vm319, %v2449, 0.0
  %v2452 = vsel %vm321, %v2451, 0.0
  %2453 = vadd.xlane.f32.xlu0 %v2452
  %v2454 = vpop.xlane.xlu0 %2453
  %v2455 = vsel %vm326, %v2449, 0.0
  %v2456 = vsel %vm321, %v2455, 0.0
  %2457 = vadd.xlane.f32.xlu0 %v2456
  %v2458 = vpop.xlane.xlu0 %2457
  %v2459 = vsel %vm332, %v2449, 0.0
  %v2460 = vsel %vm321, %v2459, 0.0
  %2461 = vadd.xlane.f32.xlu0 %v2460
  %v2462 = vpop.xlane.xlu0 %2461
  %v2463 = vcvt.f32.s32.to.zero.pseudo %v2454
  %vm2464 = vcmp.eq.s32.totalorder %v47, %v2463
  %v2465 = vsel %vm2464, 1, 0
  %v2466 = vcvt.s32.f32 %v2465
  %2468 = vrot.lane.b32.xlu0 %v2204, 32
  %v2469 = vpop.permute.xlu0 %2468
  %v2471 = vsel %vm105, %v2261, %v2469
  %v2473 = vsel %vm165, %v2466, 0
  %v2476 = vsel %vm169, %v2471, 0
  %2478 = vmatpush.msra.mxu0 0.0
  %2479 = vmatpush.msra.mxu0 0.0
  %2480 = vmatpush.msra.mxu0 0.0
  %2481 = vmatpush.msra.mxu0 0.0
  %2482 = vmatpush.msra.mxu0 0.0
  %2483 = vmatpush.msra.mxu0 0.0
  %2484 = vmatpush.msra.mxu0 0.0
  %2485 = vmatpush.msra.mxu0 0.0
  %2486 = vmatpush.msra.mxu0 0.0
  %2487 = vmatpush.msra.mxu0 0.0
  %2488 = vmatpush.msra.mxu0 0.0
  %2489 = vmatpush.msra.mxu0 0.0
  %2490 = vmatpush.msra.mxu0 0.0
  %2491 = vmatpush.msra.mxu0 0.0
  %2492 = vmatpush.msra.mxu0 0.0
  %2493 = vmatpush.msra.mxu0 %v2476
  %2494 = vmatmul.f32.gmra.mxu0 %v2473
  %v2495 = vpop.f32.mrf.mxu0
  %v2496 = vadd.f32 0.0, %v2495
  %2497 = vdwg.mxu0
  %vm2498 = vcmp.eq.s32.totalorder %v29, 8
  %2500 = vrot.lane.b32.xlu0 %v2496, 96
  %v2501 = vpop.permute.xlu0 %2500
  %v2503 = vsel %vm2498, %v2458, %v2501
  %v2504 = vmul.f32 %v2227, %v2201
  %v2505 = vmul.f32 %v2228, %v2496
  %v2506 = vadd.f32 %v2504, %v2505
  %v2507 = vmul.f32 %v2227, %v2204
  %v2508 = vmul.f32 %v2228, %v2503
  %v2509 = vadd.f32 %v2507, %v2508
  %v2510 = vmul.f32 %v2227, %v2207
  %v2511 = vmul.f32 %v2228, %v2462
  %v2512 = vadd.f32 %v2510, %v2511
  %vm2513 = vcmask 259072
  %2514 = vst.msk [vmem:[%s6] sm:$0x3f] %vm2513, %v2506
  %v2515 = vsel %vm319, 1, 0
  %v2516 = vcvt.s32.f32 %v2515
  %v2517 = vmul.f32 %v2512, %v2516
  %v2519 = vsel %vm169, %v2517, 0
  %2521 = vmatpush.msra.mxu0 0.0
  %2522 = vmatpush.msra.mxu0 0.0
  %2523 = vmatpush.msra.mxu0 0.0
  %2524 = vmatpush.msra.mxu0 0.0
  %2525 = vmatpush.msra.mxu0 0.0
  %2526 = vmatpush.msra.mxu0 0.0
  %2527 = vmatpush.msra.mxu0 0.0
  %2528 = vmatpush.msra.mxu0 0.0
  %2529 = vmatpush.msra.mxu0 0.0
  %2530 = vmatpush.msra.mxu0 0.0
  %2531 = vmatpush.msra.mxu0 0.0
  %2532 = vmatpush.msra.mxu0 0.0
  %2533 = vmatpush.msra.mxu0 0.0
  %2534 = vmatpush.msra.mxu0 0.0
  %2535 = vmatpush.msra.mxu0 0.0
  %2536 = vmatpush.msra.mxu0 %v2519
  %2537 = vmatmul.f32.gmra.mxu0 %v167
  %v2538 = vpop.f32.mrf.mxu0
  %v2539 = vadd.f32 0.0, %v2538
  %2540 = vdwg.mxu0
  %vm2541 = vcmask 17408
  %v2542 = vsel %vm2541, %v2539, -inf
  %2543 = vmax.xlane.f32.xlu0 %v2542
  %v2544 = vpop.xlane.xlu0 %2543
  %vm2545 = vcmp.eq.f32.partialorder %v2539, %v2544
  %v2546 = vsel %vm2545, %v29, 3
  %v2547 = vsel %vm2541, %v2546, 2147483647
  %v2548 = vand.u32 %v2547, 65535
  %v2549 = vshra.s32 %v2547, 16
  %v2550 = vcvt.s32.f32 %v2548
  %v2551 = vcvt.s32.f32 %v2549
  %2552 = vmin.xlane.f32.xlu0 %v2551
  %v2553 = vpop.xlane.xlu0 %2552
  %vm2554 = vcmp.eq.f32.partialorder %v2551, %v2553
  %v2555 = vsel %vm2554, %v2550, inf
  %2556 = vmin.xlane.f32.xlu0 %v2555
  %v2557 = vpop.xlane.xlu0 %2556
  %v2558 = vcvt.f32.s32 %v2557
  %v2559 = vcvt.f32.s32 %v2553
  %v2560 = vshll.u32 %v2559, 16
  %v2561 = vadd.s32 %v2560, %v2558
  %v2562 = vadd.s32 %v30, %v2561
  %vm2563 = vcmp.eq.s32.totalorder %v29, %v2562
  %v2564 = vsel %vm2563, 1, 0
  %v2565 = vcvt.s32.f32 %v2564
  %v2567 = vsel %vm165, %v2565, 0
  %v2570 = vsel %vm169, %v2509, 0
  %2572 = vmatpush.msra.mxu0 0.0
  %2573 = vmatpush.msra.mxu0 0.0
  %2574 = vmatpush.msra.mxu0 0.0
  %2575 = vmatpush.msra.mxu0 0.0
  %2576 = vmatpush.msra.mxu0 0.0
  %2577 = vmatpush.msra.mxu0 0.0
  %2578 = vmatpush.msra.mxu0 0.0
  %2579 = vmatpush.msra.mxu0 0.0
  %2580 = vmatpush.msra.mxu0 0.0
  %2581 = vmatpush.msra.mxu0 0.0
  %2582 = vmatpush.msra.mxu0 0.0
  %2583 = vmatpush.msra.mxu0 0.0
  %2584 = vmatpush.msra.mxu0 0.0
  %2585 = vmatpush.msra.mxu0 0.0
  %2586 = vmatpush.msra.mxu0 0.0
  %2587 = vmatpush.msra.mxu0 %v2570
  %2588 = vmatmul.f32.gmra.mxu0 %v2567
  %v2589 = vpop.f32.mrf.mxu0
  %v2590 = vadd.f32 0.0, %v2589
  %2591 = vdwg.mxu0
  %v2592 = vadd.f32 %v2590, 0.5
  %v2593 = vcvt.f32.s32.to.zero.pseudo %v2592
  %2594 = vrot.lane.b32.xlu0 %v2593, 127
  %v2595 = vpop.permute.xlu0 %2594
  %vm2596 = vcmask 58368
  %2597 = vst.msk [vmem:[%s5] sm:$0x3] %vm2596, %v2595
  // Predicated region
  $region22: #{beam_search_forward.1} parent=0 // pred_check
    _
  $region23: #{beam_search_forward.1} parent=0 // pred_check_branch
    %2599 = sbr.rel (0) target = $region25
  $region24: #{beam_search_forward.1} parent=0 // pred_region
    _
  $region25: #{beam_search_forward.1} parent=0 // pred_fallthru
    _
  // Predicated region
  $region26: #{beam_search_forward.1} parent=0 // pred_check
    _
  $region27: #{beam_search_forward.1} parent=0 // pred_check_branch
    %2601 = sbr.rel (0) target = $region29
  $region28: #{beam_search_forward.1} parent=0 // pred_region
    _
  $region29: #{beam_search_forward.1} parent=0 // pred_fallthru
    _
  // Predicated region
  $region30: #{beam_search_forward.1} parent=0 // pred_check
    _
  $region31: #{beam_search_forward.1} parent=0 // pred_check_branch
    %2603 = sbr.rel (0) target = $region33
  $region32: #{beam_search_forward.1} parent=0 // pred_region
    _
  $region33: #{beam_search_forward.1} parent=0 // pred_fallthru
    _
  // Predicated region
  $region34: #{beam_search_forward.1} parent=0 // pred_check
    _
  $region35: #{beam_search_forward.1} parent=0 // pred_check_branch
    %2605 = sbr.rel (0) target = $region37
  $region36: #{beam_search_forward.1} parent=0 // pred_region
    _
  $region37: #{beam_search_forward.1} parent=0 // pred_fallthru
    _

</llo_original>
